<compile_context>
chip_gen: v7x
topology: tpu7x:2x2x1
jax: 0.10.0
libtpu: 0.0.40
codegen_flags: <defaults>
</compile_context>

<pallas_src>
import functools

import jax
import jax.numpy as jnp
from jax.experimental import pallas as pl
from jax.experimental.pallas import tpu as pltpu

ACT_DTYPE = jnp.bfloat16          # activations / weights on the MXU path


def _round_up(x, m):
    return ((x + m - 1) // m) * m


def _pick_tile(dim, pref, align):
    """Largest tile <= pref that divides `dim` and is a multiple of `align`,
    falling back to the full dim (always a legal BlockSpec block)."""
    if dim % pref == 0:
        return pref
    t = (pref // align) * align
    while t >= align:
        if dim % t == 0:
            return t
        t -= align
    return dim


@functools.lru_cache(maxsize=None)
def _vmem_limit_bytes():
    """Generation-aware scoped-VMEM limit: ~48 MiB on v7x (64 MiB physical),
    ~96 MiB on v5e/v6e (128 MiB physical)."""
    cap = 64 * 1024 * 1024
    try:
        cap = int(pltpu.get_tpu_info().vmem_capacity_bytes)
    except Exception:
        pass
    return max(32 * 1024 * 1024, min(cap * 3 // 4, 112 * 1024 * 1024))


def _mosaic_params(dimension_semantics):
    return pltpu.CompilerParams(dimension_semantics=dimension_semantics,
                                vmem_limit_bytes=_vmem_limit_bytes())


# ------------------- tiled matmul (+bias / GELU / fused residual) -------------------

def _matmul_kernel(*refs, activation, has_residual):
    if has_residual:
        x_ref, w_ref, b_ref, res_ref, o_ref, acc_ref = refs
    else:
        x_ref, w_ref, b_ref, o_ref, acc_ref = refs
        res_ref = None
    k = pl.program_id(2)

    @pl.when(k == 0)
    def _():
        acc_ref[...] = jnp.zeros_like(acc_ref)

    acc_ref[...] += jnp.dot(x_ref[...], w_ref[...],
                            preferred_element_type=jnp.float32)

    @pl.when(k == pl.num_programs(2) - 1)
    def _():
        acc = acc_ref[...] + b_ref[...].astype(jnp.float32)
        if activation == "gelu":
            # TODO(synk): PyTorch nn.GELU defaults to exact erf; tanh approx used here.
            acc = jax.nn.gelu(acc, approximate=True)
        if has_residual:
            acc = acc + res_ref[...].astype(jnp.float32)
        o_ref[...] = acc.astype(o_ref.dtype)


def matmul_tiled(x, w, b, *, activation=None, residual=None, out_dtype=None,
                 tm=256, tn=256, tk=512):
    """x:(M,K) @ w:(K,N) + b, optional GELU and fused residual add; f32 VMEM acc.
    Default tm x tn = 256x256 keeps double-buffered A/B + acc inside v7x VMEM."""
    M, K = x.shape
    K2, N = w.shape
    assert K == K2
    out_dtype = out_dtype or x.dtype
    tm = _pick_tile(M, tm, 8)
    tn = _pick_tile(N, tn, 128)
    tk = _pick_tile(K, tk, 128)
    grid = (M // tm, N // tn, K // tk)
    b2 = b.reshape(1, N)

    in_specs = [
        pl.BlockSpec((tm, tk), lambda i, j, k: (i, k)),
        pl.BlockSpec((tk, tn), lambda i, j, k: (k, j)),
        pl.BlockSpec((1, tn), lambda i, j, k: (0, j)),
    ]
    args = [x, w, b2]
    has_residual = residual is not None
    if has_residual:
        in_specs.append(pl.BlockSpec((tm, tn), lambda i, j, k: (i, j)))
        args.append(residual)

    bytes_accessed = (x.size * x.dtype.itemsize + w.size * w.dtype.itemsize
                      + M * N * jnp.dtype(out_dtype).itemsize
                      + (residual.size * residual.dtype.itemsize if has_residual else 0))
    return pl.pallas_call(
        functools.partial(_matmul_kernel, activation=activation,
                          has_residual=has_residual),
        out_shape=jax.ShapeDtypeStruct((M, N), out_dtype),
        grid=grid,
        in_specs=in_specs,
        out_specs=pl.BlockSpec((tm, tn), lambda i, j, k: (i, j)),
        scratch_shapes=[pltpu.VMEM((tm, tn), jnp.float32)],
        compiler_params=_mosaic_params(("parallel", "parallel", "arbitrary")),
        cost_estimate=pl.CostEstimate(
            flops=2 * M * N * K,
            transcendentals=(M * N if activation == "gelu" else 0),
            bytes_accessed=bytes_accessed),
    )(*args)


# ---------------- fused LayerNorm + matmul (LN cached across column tiles) ----------------

def _ln_matmul_kernel(x_ref, g_ref, be_ref, w_ref, bias_ref, o_ref, xn_ref, *,
                      eps, activation):
    # LayerNorm of the (tm, K) row block is computed ONCE (j == 0) and cached in
    # VMEM scratch; the output-column axis j reuses the normalized activations.
    @pl.when(pl.program_id(1) == 0)
    def _():
        x = x_ref[...].astype(jnp.float32)
        mean = jnp.mean(x, axis=-1, keepdims=True)
        var = jnp.mean(jnp.square(x - mean), axis=-1, keepdims=True)
        xn = (x - mean) * jax.lax.rsqrt(var + eps)
        xn = xn * g_ref[...].astype(jnp.float32) + be_ref[...].astype(jnp.float32)
        xn_ref[...] = xn.astype(xn_ref.dtype)

    acc = jnp.dot(xn_ref[...], w_ref[...], preferred_element_type=jnp.float32)
    acc = acc + bias_ref[...].astype(jnp.float32)
    if activation == "gelu":
        acc = jax.nn.gelu(acc, approximate=True)
    o_ref[...] = acc.astype(o_ref.dtype)


def ln_matmul(x, gamma, beta, w, b, *, activation=None, eps=1e-6, out_dtype=None,
              tm=256, tn=256):
    """out = LayerNorm(x; gamma, beta) @ w + b (full-K block so LN stats are exact)."""
    M, K = x.shape
    K2, N = w.shape
    assert K == K2
    out_dtype = out_dtype or x.dtype
    tm = _pick_tile(M, tm, 8)
    tn = _pick_tile(N, tn, 128)
    grid = (M // tm, N // tn)
    return pl.pallas_call(
        functools.partial(_ln_matmul_kernel, eps=eps, activation=activation),
        out_shape=jax.ShapeDtypeStruct((M, N), out_dtype),
        grid=grid,
        in_specs=[
            pl.BlockSpec((tm, K), lambda i, j: (i, 0)),
            pl.BlockSpec((1, K), lambda i, j: (0, 0)),
            pl.BlockSpec((1, K), lambda i, j: (0, 0)),
            pl.BlockSpec((K, tn), lambda i, j: (0, j)),
            pl.BlockSpec((1, tn), lambda i, j: (0, j)),
        ],
        out_specs=pl.BlockSpec((tm, tn), lambda i, j: (i, j)),
        scratch_shapes=[pltpu.VMEM((tm, K), w.dtype)],
        # j axis reuses the cached LN block -> keep it sequential ("arbitrary").
        compiler_params=_mosaic_params(("parallel", "arbitrary")),
        cost_estimate=pl.CostEstimate(
            flops=2 * M * N * K,
            transcendentals=M + (M * N if activation == "gelu" else 0),
            bytes_accessed=x.size * x.dtype.itemsize + w.size * w.dtype.itemsize
                           + M * N * jnp.dtype(out_dtype).itemsize),
    )(x, gamma.reshape(1, K), beta.reshape(1, K), w, b.reshape(1, N))


# --------- fused MLP block: LN2 + fc1 + GELU + fc2 + residual, H-chunked ---------

def _mlp_kernel(x_ref, g_ref, be_ref, w1_ref, b1_ref, w2_ref, b2_ref, o_ref,
                xn_ref, acc_ref, *, eps):
    h = pl.program_id(1)

    @pl.when(h == 0)
    def _():
        x = x_ref[...].astype(jnp.float32)
        mean = jnp.mean(x, axis=-1, keepdims=True)
        var = jnp.mean(jnp.square(x - mean), axis=-1, keepdims=True)
        xn = (x - mean) * jax.lax.rsqrt(var + eps)
        xn = xn * g_ref[...].astype(jnp.float32) + be_ref[...].astype(jnp.float32)
        xn_ref[...] = xn.astype(xn_ref.dtype)
        acc_ref[...] = jnp.zeros_like(acc_ref)

    # Hidden chunk lives only in VMEM/registers; fc2 partials accumulate in f32.
    hid = jnp.dot(xn_ref[...], w1_ref[...], preferred_element_type=jnp.float32)
    hid = jax.nn.gelu(hid + b1_ref[...].astype(jnp.float32), approximate=True)
    acc_ref[...] += jnp.dot(hid.astype(w2_ref.dtype), w2_ref[...],
                            preferred_element_type=jnp.float32)

    @pl.when(h == pl.num_programs(1) - 1)
    def _():
        out = (acc_ref[...] + b2_ref[...].astype(jnp.float32)
               + x_ref[...].astype(jnp.float32))          # residual fused
        o_ref[...] = out.astype(o_ref.dtype)


def mlp_fused(x, gamma, beta, w1, b1, w2, b2, *, eps=1e-6, tm=256, th=1024):
    """out = x + fc2(GELU(fc1(LayerNorm(x)))); hidden dim streamed in th chunks."""
    M, E = x.shape
    E2, H = w1.shape
    assert E == E2 and w2.shape == (H, E)
    tm = _pick_tile(M, tm, 8)
    th = _pick_tile(H, th, 128)
    grid = (M // tm, H // th)
    return pl.pallas_call(
        functools.partial(_mlp_kernel, eps=eps),
        out_shape=jax.ShapeDtypeStruct((M, E), x.dtype),
        grid=grid,
        in_specs=[
            pl.BlockSpec((tm, E), lambda i, h: (i, 0)),
            pl.BlockSpec((1, E), lambda i, h: (0, 0)),
            pl.BlockSpec((1, E), lambda i, h: (0, 0)),
            pl.BlockSpec((E, th), lambda i, h: (0, h)),
            pl.BlockSpec((1, th), lambda i, h: (0, h)),
            pl.BlockSpec((th, E), lambda i, h: (h, 0)),
            pl.BlockSpec((1, E), lambda i, h: (0, 0)),
        ],
        out_specs=pl.BlockSpec((tm, E), lambda i, h: (i, 0)),
        scratch_shapes=[pltpu.VMEM((tm, E), w1.dtype),      # cached LN(x)
                        pltpu.VMEM((tm, E), jnp.float32)],  # fc2 accumulator
        compiler_params=_mosaic_params(("parallel", "arbitrary")),
        cost_estimate=pl.CostEstimate(
            flops=4 * M * E * H,
            transcendentals=M * H + M,
            bytes_accessed=2 * M * E * x.dtype.itemsize
                           + (w1.size + w2.size) * w1.dtype.itemsize),
    )(x, gamma.reshape(1, E), beta.reshape(1, E), w1, b1.reshape(1, H),
      w2, b2.reshape(1, E))


# ------- fused attention sub-block: head split + masked softmax + proj + residual -------

def _attn_proj_kernel(qkv_ref, res_ref, w_ref, b_ref, o_ref, *,
                      num_heads, head_dim, scale, n_valid):
    E = num_heads * head_dim
    n1p = qkv_ref.shape[1]
    heads = []
    for h in range(num_heads):                    # static unroll; nh is small
        qh = qkv_ref[0, :, h * head_dim:(h + 1) * head_dim]                  # (N1p, Dh)
        kh = qkv_ref[0, :, E + h * head_dim:E + (h + 1) * head_dim]          # (N1p, Dh)
        vh = qkv_ref[0, :, 2 * E + h * head_dim:2 * E + (h + 1) * head_dim]  # (N1p, Dh)
        # q k^T contracting the last dims directly (no explicit transpose), f32 scores.
        s = jnp.einsum('qd,kd->qk', qh, kh,
                       preferred_element_type=jnp.float32) * scale           # (N1p, N1p)
        if n_valid < n1p:
            kidx = jax.lax.broadcasted_iota(jnp.int32, s.shape, 1)
            s = jnp.where(kidx < n_valid, s, -1e30)   # mask padded keys out of softmax
        m = jnp.max(s, axis=-1, keepdims=True)
        p = jnp.exp(s - m)
        denom = jnp.sum(p, axis=-1, keepdims=True)
        attn = p * pl.reciprocal(denom, approx=True)
        heads.append(jnp.dot(attn.astype(vh.dtype), vh,
                             preferred_element_type=jnp.float32))            # (N1p, Dh)
    o = jnp.concatenate(heads, axis=-1).astype(w_ref.dtype)                  # (N1p, E)
    out = jnp.dot(o, w_ref[...], preferred_element_type=jnp.float32)
    out = out + b_ref[...].astype(jnp.float32) + res_ref[0].astype(jnp.float32)
    o_ref[0] = out.astype(o_ref.dtype)


def attn_proj(qkv, residual, w, b, *, num_heads, head_dim, scale, n_valid):
    """Per-batch fused attention sub-block.  `qkv` stays in the raw (B, N1p, 3E)
    layout produced by the QKV matmul (no XLA 5-D transposes); the output is
    written directly in (B, N1p, E) residual-stream layout."""
    B, N1p, threeE = qkv.shape
    E = num_heads * head_dim
    assert threeE == 3 * E and residual.shape == (B, N1p, E)
    return pl.pallas_call(
        functools.partial(_attn_proj_kernel, num_heads=num_heads,
                          head_dim=head_dim, scale=scale, n_valid=n_valid),
        out_shape=jax.ShapeDtypeStruct((B, N1p, E), residual.dtype),
        grid=(B,),
        in_specs=[
            pl.BlockSpec((1, N1p, 3 * E), lambda bi: (bi, 0, 0)),
            pl.BlockSpec((1, N1p, E), lambda bi: (bi, 0, 0)),
            pl.BlockSpec((E, E), lambda bi: (0, 0)),
            pl.BlockSpec((1, E), lambda bi: (0, 0)),
        ],
        out_specs=pl.BlockSpec((1, N1p, E), lambda bi: (bi, 0, 0)),
        compiler_params=_mosaic_params(("parallel",)),
        cost_estimate=pl.CostEstimate(
            flops=2 * B * (2 * num_heads * N1p * N1p * head_dim + N1p * E * E),
            transcendentals=B * num_heads * N1p * N1p,
            bytes_accessed=(qkv.size * qkv.dtype.itemsize
                            + residual.size * residual.dtype.itemsize
                            + w.size * w.dtype.itemsize
                            + B * N1p * E * residual.dtype.itemsize)),
    )(qkv, residual, w, b.reshape(1, E))


# --------------------------- parameter creation ---------------------------

def trunc_normal(key, shape, std=0.02, dtype=jnp.float32):
    # matches timm trunc_normal_ (truncate at +/- 2 std)
    return std * jax.random.truncated_normal(key, -2.0, 2.0, shape, dtype)


def init_vit_params(key, *, patch_size, in_channels, num_classes,
                    embed_dim, depth, num_heads, mlp_ratio, num_patches):
    hidden = int(embed_dim * mlp_ratio)
    keys = iter(jax.random.split(key, 8 + 6 * depth))
    wd = ACT_DTYPE   # weight dtype on the MXU path (f32 accumulation in-kernel)
    kp = in_channels * patch_size * patch_size
    kp_pad = _round_up(kp, 128)              # lane-aligned contraction depth
    ncls_pad = _round_up(num_classes, 128)   # lane-dense head output, sliced later
    p = {}
    # PatchEmbed conv (E, C, ph, pw) stored already flattened/transposed as (C*ph*pw, E),
    # zero-padded in K so the patch matmul contraction is 128-aligned.
    patch_w = trunc_normal(next(keys), (kp, embed_dim)).astype(wd)
    p["patch_w"] = jnp.pad(patch_w, ((0, kp_pad - kp), (0, 0)))
    p["patch_b"] = jnp.zeros((embed_dim,), jnp.float32)
    p["cls_token"] = trunc_normal(next(keys), (1, 1, embed_dim))
    p["pos_embed"] = trunc_normal(next(keys), (1, num_patches + 1, embed_dim))
    blocks = []
    for _ in range(depth):
        blocks.append({
            "ln1_g": jnp.ones((embed_dim,), jnp.float32),
            "ln1_b": jnp.zeros((embed_dim,), jnp.float32),
            "qkv_w": trunc_normal(next(keys), (embed_dim, 3 * embed_dim)).astype(wd),
            "qkv_b": jnp.zeros((3 * embed_dim,), jnp.float32),
            "proj_w": trunc_normal(next(keys), (embed_dim, embed_dim)).astype(wd),
            "proj_b": jnp.zeros((embed_dim,), jnp.float32),
            "ln2_g": jnp.ones((embed_dim,), jnp.float32),
            "ln2_b": jnp.zeros((embed_dim,), jnp.float32),
            "fc1_w": trunc_normal(next(keys), (embed_dim, hidden)).astype(wd),
            "fc1_b": jnp.zeros((hidden,), jnp.float32),
            "fc2_w": trunc_normal(next(keys), (hidden, embed_dim)).astype(wd),
            "fc2_b": jnp.zeros((embed_dim,), jnp.float32),
        })
    p["blocks"] = blocks
    p["norm_g"] = jnp.ones((embed_dim,), jnp.float32)
    p["norm_b"] = jnp.zeros((embed_dim,), jnp.float32)
    head_w = trunc_normal(next(keys), (embed_dim, num_classes)).astype(wd)
    p["head_w"] = jnp.pad(head_w, ((0, 0), (0, ncls_pad - num_classes)))
    p["head_b"] = jnp.zeros((ncls_pad,), jnp.float32)
    return p


# ------------------------------- forward ----------------------------------

def vit_forward(params, x, *, patch_size, embed_dim, num_heads, num_classes,
                qk_scale=None):
    B, C, H, W = x.shape  # layout: NCHW (PyTorch convention)
    p = patch_size
    E = embed_dim
    nh = num_heads
    Dh = E // nh
    gh, gw = H // p, W // p
    N = gh * gw
    N1 = N + 1                                # +1 cls token
    # Pad tokens: multiple of 128 for realistic ViT shapes (lane-dense score tiles,
    # e.g. 197 -> 256), multiple of 8 for tiny shapes (sublane-aligned blocks).
    N1p = _round_up(N1, 128 if N1 >= 96 else 8)
    M = B * N1p
    kp = C * p * p
    kp_pad = params["patch_w"].shape[0]
    scale = qk_scale if qk_scale is not None else Dh ** -0.5

    # ---- PatchEmbed: strided conv == patchify (C, ph, pw ordering) + tiled matmul.
    # The cls-token slot, positional embedding and token padding are fused into the
    # matmul epilogue via the residual input (no separate concat / pos-add passes).
    patches = x.reshape(B, C, gh, p, gw, p).transpose(0, 2, 4, 1, 3, 5)
    patches = patches.reshape(B, N, kp)
    # row 0 per batch = cls slot (zeros); tail rows = token padding (zeros); K padded.
    patches = jnp.pad(patches, ((0, 0), (1, N1p - N1), (0, kp_pad - kp)))
    patches2d = patches.reshape(M, kp_pad).astype(ACT_DTYPE)

    neg_b = -params["patch_b"][None, None, :]
    row_cls = params["cls_token"] + params["pos_embed"][:, :1] + neg_b  # cancels bias
    rows_patch = params["pos_embed"][:, 1:]
    rows_pad = jnp.broadcast_to(neg_b, (1, N1p - N1, E))                # pad tokens == 0
    pos_res = jnp.concatenate([row_cls, rows_patch, rows_pad], axis=1)  # (1, N1p, E)
    pos_res = jnp.broadcast_to(pos_res, (B, N1p, E)).reshape(M, E)

    x2d = matmul_tiled(patches2d, params["patch_w"], params["patch_b"],
                       residual=pos_res, out_dtype=ACT_DTYPE)           # (M, E) bf16

    # pos_drop / attn_drop / drop_path are identity (rates = 0); policy is all-ones,
    # so every block is the standard pre-norm ViT Block.
    for blk in params["blocks"]:
        # LN1 fused into the QKV projection; LN cached in VMEM across column tiles.
        qkv = ln_matmul(x2d, blk["ln1_g"], blk["ln1_b"],
                        blk["qkv_w"], blk["qkv_b"])                     # (M, 3E)
        # Attention + output projection + residual in ONE kernel; head split done
        # in-kernel on VMEM-resident data, padded keys masked out of the softmax.
        x3d = attn_proj(qkv.reshape(B, N1p, 3 * E), x2d.reshape(B, N1p, E),
                        blk["proj_w"], blk["proj_b"],
                        num_heads=nh, head_dim=Dh, scale=scale, n_valid=N1)
        x2d = x3d.reshape(M, E)
        # LN2 + fc1 + GELU + fc2 + residual; hidden activation never hits HBM.
        x2d = mlp_fused(x2d, blk["ln2_g"], blk["ln2_b"],
                        blk["fc1_w"], blk["fc1_b"], blk["fc2_w"], blk["fc2_b"])

    # self.norm(x)[:, 0] == norm(x[:, 0]) (row-wise LN): slice the cls rows first,
    # then fuse the final LayerNorm into the (lane-padded) classification head.
    cls_feat = x2d.reshape(B, N1p, E)[:, 0]                             # (B, E)
    # pre_logits = nn.Identity() (representation_size=None)
    logits = ln_matmul(cls_feat, params["norm_g"], params["norm_b"],
                       params["head_w"], params["head_b"],
                       out_dtype=jnp.float32)[:, :num_classes]
    policies = []                                                       # reference: empty list
    return logits, policies


# --------------------------------- main ------------------------------------

if __name__ == "__main__":
    # Small, ViT-consistent configuration (embed_dim kept lane-aligned at 128).
    IMG_SIZE = 16
    PATCH_SIZE = 4
    IN_CHANNELS = 4
    NUM_CLASSES = 10
    EMBED_DIM = 128
    DEPTH = 2
    NUM_HEADS = 4
    MLP_RATIO = 4.0
    BATCH = 2
    NUM_PATCHES = (IMG_SIZE // PATCH_SIZE) ** 2

    key = jax.random.PRNGKey(0)
    k_params, k_x = jax.random.split(key)
    params = init_vit_params(
        k_params,
        patch_size=PATCH_SIZE,
        in_channels=IN_CHANNELS,
        num_classes=NUM_CLASSES,
        embed_dim=EMBED_DIM,
        depth=DEPTH,
        num_heads=NUM_HEADS,
        mlp_ratio=MLP_RATIO,
        num_patches=NUM_PATCHES,
    )
    x = jax.random.normal(k_x, (BATCH, IN_CHANNELS, IMG_SIZE, IMG_SIZE), jnp.float32)

    fwd = jax.jit(functools.partial(
        vit_forward,
        patch_size=PATCH_SIZE,
        embed_dim=EMBED_DIM,
        num_heads=NUM_HEADS,
        num_classes=NUM_CLASSES,
    ))
    logits, policies = fwd(params, x)
    logits = jax.block_until_ready(logits)
    assert logits.shape == (BATCH, NUM_CLASSES)
    assert bool(jnp.all(jnp.isfinite(logits)))
    print("KERNEL_OK")
</pallas_src>

<mosaic_0001>
module attributes {stable_mosaic.version = 11 : i64} {
  func.func @_matmul_kernel(%arg0: i32, %arg1: i32, %arg2: i32, %arg3: memref<48x128xbf16, #tpu.memory_space<vmem>>, %arg4: memref<128x128xbf16, #tpu.memory_space<vmem>>, %arg5: memref<1x128xf32, #tpu.memory_space<vmem>>, %arg6: memref<48x128xf32, #tpu.memory_space<vmem>>, %arg7: memref<48x128xbf16, #tpu.memory_space<vmem>>, %arg8: memref<48x128xf32, #tpu.memory_space<vmem>>) attributes {dimension_semantics = [#tpu.dimension_semantics<parallel>, #tpu.dimension_semantics<parallel>, #tpu.dimension_semantics<arbitrary>], iteration_bounds = array<i64: 1, 1, 1>, scalar_prefetch = 0 : i64, scratch_operands = 1 : i64, tpu.core_type = #tpu.core_type<tc>, window_params = [{transform_indices = @transform_0, window_bounds = array<i64: 48, 128>}, {transform_indices = @transform_1, window_bounds = array<i64: 128, 128>}, {transform_indices = @transform_2, window_bounds = array<i64: 1, 128>}, {transform_indices = @transform_3, window_bounds = array<i64: 48, 128>}, {transform_indices = @transform_4, window_bounds = array<i64: 48, 128>}]} {
    %c0_i32 = arith.constant 0 : i32
    %0 = arith.cmpi eq, %arg2, %c0_i32 : i32
    %1 = arith.extui %0 : i1 to i32
    %c0_i32_0 = arith.constant 0 : i32
    %2 = arith.cmpi ne, %1, %c0_i32_0 : i32
    scf.if %2 {
      %cst_10 = arith.constant 0.000000e+00 : f32
      %12 = vector.broadcast %cst_10 : f32 to vector<48x128xf32>
      %c0_11 = arith.constant 0 : index
      %c0_12 = arith.constant 0 : index
      %13 = vector.load %arg8[%c0_11, %c0_12] : memref<48x128xf32, #tpu.memory_space<vmem>>, vector<48x128xf32>
      tpu.vector_store %arg8[%c0_11, %c0_12], %12 {strides = array<i32>} : memref<48x128xf32, #tpu.memory_space<vmem>>, vector<48x128xf32>,
    } else {
    }
    %c0 = arith.constant 0 : index
    %c0_1 = arith.constant 0 : index
    %3 = vector.load %arg8[%c0, %c0_1] : memref<48x128xf32, #tpu.memory_space<vmem>>, vector<48x128xf32>
    %c0_2 = arith.constant 0 : index
    %c0_3 = arith.constant 0 : index
    %4 = vector.load %arg3[%c0_2, %c0_3] : memref<48x128xbf16, #tpu.memory_space<vmem>>, vector<48x128xbf16>
    %c0_4 = arith.constant 0 : index
    %c0_5 = arith.constant 0 : index
    %5 = vector.load %arg4[%c0_4, %c0_5] : memref<128x128xbf16, #tpu.memory_space<vmem>>, vector<128x128xbf16>
    %cst = arith.constant dense<0.000000e+00> : vector<48x128xf32>
    %6 = tpu.matmul %4, %5, %cst {dimension_numbers = #tpu.dot_dimension_numbers<[1], [0], [0], [1], [0, 0, 1, 1], [], []>} : vector<48x128xbf16>, vector<128x128xbf16>, vector<48x128xf32> -> vector<48x128xf32>
    %7 = arith.addf %3, %6 : vector<48x128xf32>
    %c0_6 = arith.constant 0 : index
    %c0_7 = arith.constant 0 : index
    %8 = vector.load %arg8[%c0_6, %c0_7] : memref<48x128xf32, #tpu.memory_space<vmem>>, vector<48x128xf32>
    tpu.vector_store %arg8[%c0_6, %c0_7], %7 {strides = array<i32>} : memref<48x128xf32, #tpu.memory_space<vmem>>, vector<48x128xf32>,
    %c0_i32_8 = arith.constant 0 : i32
    %9 = arith.cmpi eq, %arg2, %c0_i32_8 : i32
    %10 = arith.extui %9 : i1 to i32
    %c0_i32_9 = arith.constant 0 : i32
    %11 = arith.cmpi ne, %10, %c0_i32_9 : i32
    scf.if %11 {
      %c0_10 = arith.constant 0 : index
      %c0_11 = arith.constant 0 : index
      %12 = vector.load %arg8[%c0_10, %c0_11] : memref<48x128xf32, #tpu.memory_space<vmem>>, vector<48x128xf32>
      %c0_12 = arith.constant 0 : index
      %c0_13 = arith.constant 0 : index
      %13 = vector.load %arg5[%c0_12, %c0_13] : memref<1x128xf32, #tpu.memory_space<vmem>>, vector<1x128xf32>
      %14 = vector.broadcast %13 : vector<1x128xf32> to vector<48x128xf32>
      %15 = arith.addf %12, %14 : vector<48x128xf32>
      %c0_14 = arith.constant 0 : index
      %c0_15 = arith.constant 0 : index
      %16 = vector.load %arg6[%c0_14, %c0_15] : memref<48x128xf32, #tpu.memory_space<vmem>>, vector<48x128xf32>
      %17 = arith.addf %15, %16 : vector<48x128xf32>
      %18 = arith.truncf %17 : vector<48x128xf32> to vector<48x128xbf16>
      %c0_16 = arith.constant 0 : index
      %c0_17 = arith.constant 0 : index
      %19 = vector.load %arg7[%c0_16, %c0_17] : memref<48x128xbf16, #tpu.memory_space<vmem>>, vector<48x128xbf16>
      tpu.vector_store %arg7[%c0_16, %c0_17], %18 {strides = array<i32>} : memref<48x128xbf16, #tpu.memory_space<vmem>>, vector<48x128xbf16>,
    } else {
    }
    return
  }
  func.func @transform_0(%arg0: i32, %arg1: i32, %arg2: i32) -> (i32, i32) {
    %c0_i32 = arith.constant 0 : i32
    return %arg0, %arg2 : i32, i32
  }
  func.func @transform_1(%arg0: i32, %arg1: i32, %arg2: i32) -> (i32, i32) {
    %c0_i32 = arith.constant 0 : i32
    return %arg2, %arg1 : i32, i32
  }
  func.func @transform_2(%arg0: i32, %arg1: i32, %arg2: i32) -> (i32, i32) {
    %c0_i32 = arith.constant 0 : i32
    %c0_i32_0 = arith.constant 0 : i32
    return %c0_i32, %arg1 : i32, i32
  }
  func.func @transform_3(%arg0: i32, %arg1: i32, %arg2: i32) -> (i32, i32) {
    %c0_i32 = arith.constant 0 : i32
    return %arg0, %arg1 : i32, i32
  }
  func.func @transform_4(%arg0: i32, %arg1: i32, %arg2: i32) -> (i32, i32) {
    %c0_i32 = arith.constant 0 : i32
    return %arg0, %arg1 : i32, i32
  }
}

module attributes {stable_mosaic.version = 11 : i64} {
  func.func @_ln_matmul_kernel(%arg0: i32, %arg1: i32, %arg2: memref<48x128xbf16, #tpu.memory_space<vmem>>, %arg3: memref<1x128xf32, #tpu.memory_space<vmem>>, %arg4: memref<1x128xf32, #tpu.memory_space<vmem>>, %arg5: memref<128x128xbf16, #tpu.memory_space<vmem>>, %arg6: memref<1x128xf32, #tpu.memory_space<vmem>>, %arg7: memref<48x128xbf16, #tpu.memory_space<vmem>>, %arg8: memref<48x128xbf16, #tpu.memory_space<vmem>>) attributes {dimension_semantics = [#tpu.dimension_semantics<parallel>, #tpu.dimension_semantics<arbitrary>], iteration_bounds = array<i64: 1, 3>, scalar_prefetch = 0 : i64, scratch_operands = 1 : i64, tpu.core_type = #tpu.core_type<tc>, window_params = [{transform_indices = @transform_0, window_bounds = array<i64: 48, 128>}, {pipeline_mode = #tpu.pipeline_mode<synchronous>, transform_indices = @transform_1, window_bounds = array<i64: 1, 128>}, {pipeline_mode = #tpu.pipeline_mode<synchronous>, transform_indices = @transform_2, window_bounds = array<i64: 1, 128>}, {transform_indices = @transform_3, window_bounds = array<i64: 128, 128>}, {transform_indices = @transform_4, window_bounds = array<i64: 1, 128>}, {transform_indices = @transform_5, window_bounds = array<i64: 48, 128>}]} {
    %c0_i32 = arith.constant 0 : i32
    %0 = arith.cmpi eq, %arg1, %c0_i32 : i32
    %1 = arith.extui %0 : i1 to i32
    %c0_i32_0 = arith.constant 0 : i32
    %2 = arith.cmpi ne, %1, %c0_i32_0 : i32
    scf.if %2 {
      %c0_8 = arith.constant 0 : index
      %c0_9 = arith.constant 0 : index
      %11 = vector.load %arg2[%c0_8, %c0_9] : memref<48x128xbf16, #tpu.memory_space<vmem>>, vector<48x128xbf16>
      %12 = arith.extf %11 : vector<48x128xbf16> to vector<48x128xf32>
      %cst_10 = arith.constant dense<0.000000e+00> : vector<48xf32>
      %13 = vector.multi_reduction <add>, %12, %cst_10 [1] : vector<48x128xf32> to vector<48xf32>
      %14 = vector.shape_cast %13 : vector<48xf32> to vector<48x1xf32>
      %cst_11 = arith.constant 1.280000e+02 : f32
      %15 = vector.broadcast %cst_11 : f32 to vector<48x1xf32>
      %16 = arith.divf %14, %15 : vector<48x1xf32>
      %17 = vector.broadcast %16 : vector<48x1xf32> to vector<48x128xf32>
      %18 = arith.subf %12, %17 : vector<48x128xf32>
      %19 = arith.mulf %18, %18 : vector<48x128xf32>
      %cst_12 = arith.constant dense<0.000000e+00> : vector<48xf32>
      %20 = vector.multi_reduction <add>, %19, %cst_12 [1] : vector<48x128xf32> to vector<48xf32>
      %21 = vector.shape_cast %20 : vector<48xf32> to vector<48x1xf32>
      %cst_13 = arith.constant 1.280000e+02 : f32
      %22 = vector.broadcast %cst_13 : f32 to vector<48x1xf32>
      %23 = arith.divf %21, %22 : vector<48x1xf32>
      %24 = vector.broadcast %16 : vector<48x1xf32> to vector<48x128xf32>
      %25 = arith.subf %12, %24 : vector<48x128xf32>
      %cst_14 = arith.constant 9.99999997E-7 : f32
      %26 = vector.broadcast %cst_14 : f32 to vector<48x1xf32>
      %27 = arith.addf %23, %26 : vector<48x1xf32>
      %28 = math.rsqrt %27 : vector<48x1xf32>
      %29 = vector.broadcast %28 : vector<48x1xf32> to vector<48x128xf32>
      %30 = arith.mulf %25, %29 : vector<48x128xf32>
      %c0_15 = arith.constant 0 : index
      %c0_16 = arith.constant 0 : index
      %31 = vector.load %arg3[%c0_15, %c0_16] : memref<1x128xf32, #tpu.memory_space<vmem>>, vector<1x128xf32>
      %32 = vector.broadcast %31 : vector<1x128xf32> to vector<48x128xf32>
      %33 = arith.mulf %30, %32 : vector<48x128xf32>
      %c0_17 = arith.constant 0 : index
      %c0_18 = arith.constant 0 : index
      %34 = vector.load %arg4[%c0_17, %c0_18] : memref<1x128xf32, #tpu.memory_space<vmem>>, vector<1x128xf32>
      %35 = vector.broadcast %34 : vector<1x128xf32> to vector<48x128xf32>
      %36 = arith.addf %33, %35 : vector<48x128xf32>
      %37 = arith.truncf %36 : vector<48x128xf32> to vector<48x128xbf16>
      %c0_19 = arith.constant 0 : index
      %c0_20 = arith.constant 0 : index
      %38 = vector.load %arg8[%c0_19, %c0_20] : memref<48x128xbf16, #tpu.memory_space<vmem>>, vector<48x128xbf16>
      tpu.vector_store %arg8[%c0_19, %c0_20], %37 {strides = array<i32>} : memref<48x128xbf16, #tpu.memory_space<vmem>>, vector<48x128xbf16>,
    } else {
    }
    %c0 = arith.constant 0 : index
    %c0_1 = arith.constant 0 : index
    %3 = vector.load %arg8[%c0, %c0_1] : memref<48x128xbf16, #tpu.memory_space<vmem>>, vector<48x128xbf16>
    %c0_2 = arith.constant 0 : index
    %c0_3 = arith.constant 0 : index
    %4 = vector.load %arg5[%c0_2, %c0_3] : memref<128x128xbf16, #tpu.memory_space<vmem>>, vector<128x128xbf16>
    %cst = arith.constant dense<0.000000e+00> : vector<48x128xf32>
    %5 = tpu.matmul %3, %4, %cst {dimension_numbers = #tpu.dot_dimension_numbers<[1], [0], [0], [1], [0, 0, 1, 1], [], []>} : vector<48x128xbf16>, vector<128x128xbf16>, vector<48x128xf32> -> vector<48x128xf32>
    %c0_4 = arith.constant 0 : index
    %c0_5 = arith.constant 0 : index
    %6 = vector.load %arg6[%c0_4, %c0_5] : memref<1x128xf32, #tpu.memory_space<vmem>>, vector<1x128xf32>
    %7 = vector.broadcast %6 : vector<1x128xf32> to vector<48x128xf32>
    %8 = arith.addf %5, %7 : vector<48x128xf32>
    %9 = arith.truncf %8 : vector<48x128xf32> to vector<48x128xbf16>
    %c0_6 = arith.constant 0 : index
    %c0_7 = arith.constant 0 : index
    %10 = vector.load %arg7[%c0_6, %c0_7] : memref<48x128xbf16, #tpu.memory_space<vmem>>, vector<48x128xbf16>
    tpu.vector_store %arg7[%c0_6, %c0_7], %9 {strides = array<i32>} : memref<48x128xbf16, #tpu.memory_space<vmem>>, vector<48x128xbf16>,
    return
  }
  func.func @transform_0(%arg0: i32, %arg1: i32) -> (i32, i32) {
    %c0_i32 = arith.constant 0 : i32
    %c0_i32_0 = arith.constant 0 : i32
    return %arg0, %c0_i32 : i32, i32
  }
  func.func @transform_1(%arg0: i32, %arg1: i32) -> (i32, i32) {
    %c0_i32 = arith.constant 0 : i32
    %c0_i32_0 = arith.constant 0 : i32
    %c0_i32_1 = arith.constant 0 : i32
    return %c0_i32, %c0_i32_0 : i32, i32
  }
  func.func @transform_2(%arg0: i32, %arg1: i32) -> (i32, i32) {
    %c0_i32 = arith.constant 0 : i32
    %c0_i32_0 = arith.constant 0 : i32
    %c0_i32_1 = arith.constant 0 : i32
    return %c0_i32, %c0_i32_0 : i32, i32
  }
  func.func @transform_3(%arg0: i32, %arg1: i32) -> (i32, i32) {
    %c0_i32 = arith.constant 0 : i32
    %c0_i32_0 = arith.constant 0 : i32
    return %c0_i32, %arg1 : i32, i32
  }
  func.func @transform_4(%arg0: i32, %arg1: i32) -> (i32, i32) {
    %c0_i32 = arith.constant 0 : i32
    %c0_i32_0 = arith.constant 0 : i32
    return %c0_i32, %arg1 : i32, i32
  }
  func.func @transform_5(%arg0: i32, %arg1: i32) -> (i32, i32) {
    %c0_i32 = arith.constant 0 : i32
    return %arg0, %arg1 : i32, i32
  }
}

module attributes {stable_mosaic.version = 11 : i64} {
  func.func @_attn_proj_kernel(%arg0: i32, %arg1: memref<1x24x384xbf16, #tpu.memory_space<vmem>>, %arg2: memref<1x24x128xbf16, #tpu.memory_space<vmem>>, %arg3: memref<128x128xbf16, #tpu.memory_space<vmem>>, %arg4: memref<1x128xf32, #tpu.memory_space<vmem>>, %arg5: memref<1x24x128xbf16, #tpu.memory_space<vmem>>) attributes {dimension_semantics = [#tpu.dimension_semantics<parallel>], iteration_bounds = array<i64: 2>, scalar_prefetch = 0 : i64, scratch_operands = 0 : i64, tpu.core_type = #tpu.core_type<tc>, window_params = [{transform_indices = @transform_0, window_bounds = array<i64: 1, 24, 384>}, {transform_indices = @transform_1, window_bounds = array<i64: 1, 24, 128>}, {pipeline_mode = #tpu.pipeline_mode<synchronous>, transform_indices = @transform_2, window_bounds = array<i64: 128, 128>}, {pipeline_mode = #tpu.pipeline_mode<synchronous>, transform_indices = @transform_3, window_bounds = array<i64: 1, 128>}, {transform_indices = @transform_4, window_bounds = array<i64: 1, 24, 128>}]} {
    %c0 = arith.constant 0 : index
    %c0_0 = arith.constant 0 : index
    %c0_1 = arith.constant 0 : index
    %0 = vector.load %arg1[%c0, %c0_0, %c0_1] : memref<1x24x384xbf16, #tpu.memory_space<vmem>>, vector<1x24x32xbf16>
    %1 = vector.shape_cast %0 : vector<1x24x32xbf16> to vector<24x32xbf16>
    %c0_2 = arith.constant 0 : index
    %c0_3 = arith.constant 0 : index
    %c128 = arith.constant 128 : index
    %2 = vector.load %arg1[%c0_2, %c0_3, %c128] : memref<1x24x384xbf16, #tpu.memory_space<vmem>>, vector<1x24x32xbf16>
    %3 = vector.shape_cast %2 : vector<1x24x32xbf16> to vector<24x32xbf16>
    %c0_4 = arith.constant 0 : index
    %c0_5 = arith.constant 0 : index
    %c256 = arith.constant 256 : index
    %4 = vector.load %arg1[%c0_4, %c0_5, %c256] : memref<1x24x384xbf16, #tpu.memory_space<vmem>>, vector<1x24x32xbf16>
    %5 = vector.shape_cast %4 : vector<1x24x32xbf16> to vector<24x32xbf16>
    "tpu.trace_start"() <{level = 10 : i32, message = "qd,kd->qk"}> : () -> ()
    %cst = arith.constant dense<0.000000e+00> : vector<24x24xf32>
    %6 = tpu.matmul %1, %3, %cst {dimension_numbers = #tpu.dot_dimension_numbers<[1], [1], [0], [0], [0, 0, 1, 0], [], []>} : vector<24x32xbf16>, vector<24x32xbf16>, vector<24x24xf32> -> vector<24x24xf32>
    "tpu.trace_stop"() : () -> ()
    %cst_6 = arith.constant 0.176776692 : f32
    %7 = vector.broadcast %cst_6 : f32 to vector<24x24xf32>
    %8 = arith.mulf %6, %7 : vector<24x24xf32>
    %9 = tpu.iota {dimensions = array<i32: 1>} : vector<24x24xi32>
    %c17_i32 = arith.constant 17 : i32
    %10 = vector.broadcast %c17_i32 : i32 to vector<24x24xi32>
    %11 = arith.cmpi slt, %9, %10 : vector<24x24xi32>
    %cst_7 = arith.constant -1.000000e+30 : f32
    %12 = vector.broadcast %cst_7 : f32 to vector<24x24xf32>
    %13 = arith.select %11, %8, %12 : vector<24x24xi1>, vector<24x24xf32>
    %cst_8 = arith.constant dense<0xFF800000> : vector<24xf32>
    %14 = vector.multi_reduction <maximumf>, %13, %cst_8 [1] : vector<24x24xf32> to vector<24xf32>
    %15 = vector.shape_cast %14 : vector<24xf32> to vector<24x1xf32>
    %16 = vector.broadcast %15 : vector<24x1xf32> to vector<24x24xf32>
    %17 = arith.subf %13, %16 : vector<24x24xf32>
    %18 = math.exp %17 : vector<24x24xf32>
    %cst_9 = arith.constant dense<0.000000e+00> : vector<24xf32>
    %19 = vector.multi_reduction <add>, %18, %cst_9 [1] : vector<24x24xf32> to vector<24xf32>
    %20 = vector.shape_cast %19 : vector<24xf32> to vector<24x1xf32>
    %21 = tpu.reciprocal %20 {approx = true} : vector<24x1xf32> -> vector<24x1xf32>
    %22 = vector.broadcast %21 : vector<24x1xf32> to vector<24x24xf32>
    %23 = arith.mulf %18, %22 : vector<24x24xf32>
    %24 = arith.truncf %23 : vector<24x24xf32> to vector<24x24xbf16>
    %cst_10 = arith.constant dense<0.000000e+00> : vector<24x32xf32>
    %25 = tpu.matmul %24, %5, %cst_10 {dimension_numbers = #tpu.dot_dimension_numbers<[1], [0], [0], [1], [0, 0, 1, 1], [], []>} : vector<24x24xbf16>, vector<24x32xbf16>, vector<24x32xf32> -> vector<24x32xf32>
    %c0_11 = arith.constant 0 : index
    %c0_12 = arith.constant 0 : index
    %c32 = arith.constant 32 : index
    %26 = vector.load %arg1[%c0_11, %c0_12, %c32] : memref<1x24x384xbf16, #tpu.memory_space<vmem>>, vector<1x24x32xbf16>
    %27 = vector.shape_cast %26 : vector<1x24x32xbf16> to vector<24x32xbf16>
    %c0_13 = arith.constant 0 : index
    %c0_14 = arith.constant 0 : index
    %c160 = arith.constant 160 : index
    %28 = vector.load %arg1[%c0_13, %c0_14, %c160] : memref<1x24x384xbf16, #tpu.memory_space<vmem>>, vector<1x24x32xbf16>
    %29 = vector.shape_cast %28 : vector<1x24x32xbf16> to vector<24x32xbf16>
    %c0_15 = arith.constant 0 : index
    %c0_16 = arith.constant 0 : index
    %c288 = arith.constant 288 : index
    %30 = vector.load %arg1[%c0_15, %c0_16, %c288] : memref<1x24x384xbf16, #tpu.memory_space<vmem>>, vector<1x24x32xbf16>
    %31 = vector.shape_cast %30 : vector<1x24x32xbf16> to vector<24x32xbf16>
    "tpu.trace_start"() <{level = 10 : i32, message = "qd,kd->qk"}> : () -> ()
    %cst_17 = arith.constant dense<0.000000e+00> : vector<24x24xf32>
    %32 = tpu.matmul %27, %29, %cst_17 {dimension_numbers = #tpu.dot_dimension_numbers<[1], [1], [0], [0], [0, 0, 1, 0], [], []>} : vector<24x32xbf16>, vector<24x32xbf16>, vector<24x24xf32> -> vector<24x24xf32>
    "tpu.trace_stop"() : () -> ()
    %cst_18 = arith.constant 0.176776692 : f32
    %33 = vector.broadcast %cst_18 : f32 to vector<24x24xf32>
    %34 = arith.mulf %32, %33 : vector<24x24xf32>
    %35 = tpu.iota {dimensions = array<i32: 1>} : vector<24x24xi32>
    %c17_i32_19 = arith.constant 17 : i32
    %36 = vector.broadcast %c17_i32_19 : i32 to vector<24x24xi32>
    %37 = arith.cmpi slt, %35, %36 : vector<24x24xi32>
    %cst_20 = arith.constant -1.000000e+30 : f32
    %38 = vector.broadcast %cst_20 : f32 to vector<24x24xf32>
    %39 = arith.select %37, %34, %38 : vector<24x24xi1>, vector<24x24xf32>
    %cst_21 = arith.constant dense<0xFF800000> : vector<24xf32>
    %40 = vector.multi_reduction <maximumf>, %39, %cst_21 [1] : vector<24x24xf32> to vector<24xf32>
    %41 = vector.shape_cast %40 : vector<24xf32> to vector<24x1xf32>
    %42 = vector.broadcast %41 : vector<24x1xf32> to vector<24x24xf32>
    %43 = arith.subf %39, %42 : vector<24x24xf32>
    %44 = math.exp %43 : vector<24x24xf32>
    %cst_22 = arith.constant dense<0.000000e+00> : vector<24xf32>
    %45 = vector.multi_reduction <add>, %44, %cst_22 [1] : vector<24x24xf32> to vector<24xf32>
    %46 = vector.shape_cast %45 : vector<24xf32> to vector<24x1xf32>
    %47 = tpu.reciprocal %46 {approx = true} : vector<24x1xf32> -> vector<24x1xf32>
    %48 = vector.broadcast %47 : vector<24x1xf32> to vector<24x24xf32>
    %49 = arith.mulf %44, %48 : vector<24x24xf32>
    %50 = arith.truncf %49 : vector<24x24xf32> to vector<24x24xbf16>
    %cst_23 = arith.constant dense<0.000000e+00> : vector<24x32xf32>
    %51 = tpu.matmul %50, %31, %cst_23 {dimension_numbers = #tpu.dot_dimension_numbers<[1], [0], [0], [1], [0, 0, 1, 1], [], []>} : vector<24x24xbf16>, vector<24x32xbf16>, vector<24x32xf32> -> vector<24x32xf32>
    %c0_24 = arith.constant 0 : index
    %c0_25 = arith.constant 0 : index
    %c64 = arith.constant 64 : index
    %52 = vector.load %arg1[%c0_24, %c0_25, %c64] : memref<1x24x384xbf16, #tpu.memory_space<vmem>>, vector<1x24x32xbf16>
    %53 = vector.shape_cast %52 : vector<1x24x32xbf16> to vector<24x32xbf16>
    %c0_26 = arith.constant 0 : index
    %c0_27 = arith.constant 0 : index
    %c192 = arith.constant 192 : index
    %54 = vector.load %arg1[%c0_26, %c0_27, %c192] : memref<1x24x384xbf16, #tpu.memory_space<vmem>>, vector<1x24x32xbf16>
    %55 = vector.shape_cast %54 : vector<1x24x32xbf16> to vector<24x32xbf16>
    %c0_28 = arith.constant 0 : index
    %c0_29 = arith.constant 0 : index
    %c320 = arith.constant 320 : index
    %56 = vector.load %arg1[%c0_28, %c0_29, %c320] : memref<1x24x384xbf16, #tpu.memory_space<vmem>>, vector<1x24x32xbf16>
    %57 = vector.shape_cast %56 : vector<1x24x32xbf16> to vector<24x32xbf16>
    "tpu.trace_start"() <{level = 10 : i32, message = "qd,kd->qk"}> : () -> ()
    %cst_30 = arith.constant dense<0.000000e+00> : vector<24x24xf32>
    %58 = tpu.matmul %53, %55, %cst_30 {dimension_numbers = #tpu.dot_dimension_numbers<[1], [1], [0], [0], [0, 0, 1, 0], [], []>} : vector<24x32xbf16>, vector<24x32xbf16>, vector<24x24xf32> -> vector<24x24xf32>
    "tpu.trace_stop"() : () -> ()
    %cst_31 = arith.constant 0.176776692 : f32
    %59 = vector.broadcast %cst_31 : f32 to vector<24x24xf32>
    %60 = arith.mulf %58, %59 : vector<24x24xf32>
    %61 = tpu.iota {dimensions = array<i32: 1>} : vector<24x24xi32>
    %c17_i32_32 = arith.constant 17 : i32
    %62 = vector.broadcast %c17_i32_32 : i32 to vector<24x24xi32>
    %63 = arith.cmpi slt, %61, %62 : vector<24x24xi32>
    %cst_33 = arith.constant -1.000000e+30 : f32
    %64 = vector.broadcast %cst_33 : f32 to vector<24x24xf32>
    %65 = arith.select %63, %60, %64 : vector<24x24xi1>, vector<24x24xf32>
    %cst_34 = arith.constant dense<0xFF800000> : vector<24xf32>
    %66 = vector.multi_reduction <maximumf>, %65, %cst_34 [1] : vector<24x24xf32> to vector<24xf32>
    %67 = vector.shape_cast %66 : vector<24xf32> to vector<24x1xf32>
    %68 = vector.broadcast %67 : vector<24x1xf32> to vector<24x24xf32>
    %69 = arith.subf %65, %68 : vector<24x24xf32>
    %70 = math.exp %69 : vector<24x24xf32>
    %cst_35 = arith.constant dense<0.000000e+00> : vector<24xf32>
    %71 = vector.multi_reduction <add>, %70, %cst_35 [1] : vector<24x24xf32> to vector<24xf32>
    %72 = vector.shape_cast %71 : vector<24xf32> to vector<24x1xf32>
    %73 = tpu.reciprocal %72 {approx = true} : vector<24x1xf32> -> vector<24x1xf32>
    %74 = vector.broadcast %73 : vector<24x1xf32> to vector<24x24xf32>
    %75 = arith.mulf %70, %74 : vector<24x24xf32>
    %76 = arith.truncf %75 : vector<24x24xf32> to vector<24x24xbf16>
    %cst_36 = arith.constant dense<0.000000e+00> : vector<24x32xf32>
    %77 = tpu.matmul %76, %57, %cst_36 {dimension_numbers = #tpu.dot_dimension_numbers<[1], [0], [0], [1], [0, 0, 1, 1], [], []>} : vector<24x24xbf16>, vector<24x32xbf16>, vector<24x32xf32> -> vector<24x32xf32>
    %c0_37 = arith.constant 0 : index
    %c0_38 = arith.constant 0 : index
    %c96 = arith.constant 96 : index
    %78 = vector.load %arg1[%c0_37, %c0_38, %c96] : memref<1x24x384xbf16, #tpu.memory_space<vmem>>, vector<1x24x32xbf16>
    %79 = vector.shape_cast %78 : vector<1x24x32xbf16> to vector<24x32xbf16>
    %c0_39 = arith.constant 0 : index
    %c0_40 = arith.constant 0 : index
    %c224 = arith.constant 224 : index
    %80 = vector.load %arg1[%c0_39, %c0_40, %c224] : memref<1x24x384xbf16, #tpu.memory_space<vmem>>, vector<1x24x32xbf16>
    %81 = vector.shape_cast %80 : vector<1x24x32xbf16> to vector<24x32xbf16>
    %c0_41 = arith.constant 0 : index
    %c0_42 = arith.constant 0 : index
    %c352 = arith.constant 352 : index
    %82 = vector.load %arg1[%c0_41, %c0_42, %c352] : memref<1x24x384xbf16, #tpu.memory_space<vmem>>, vector<1x24x32xbf16>
    %83 = vector.shape_cast %82 : vector<1x24x32xbf16> to vector<24x32xbf16>
    "tpu.trace_start"() <{level = 10 : i32, message = "qd,kd->qk"}> : () -> ()
    %cst_43 = arith.constant dense<0.000000e+00> : vector<24x24xf32>
    %84 = tpu.matmul %79, %81, %cst_43 {dimension_numbers = #tpu.dot_dimension_numbers<[1], [1], [0], [0], [0, 0, 1, 0], [], []>} : vector<24x32xbf16>, vector<24x32xbf16>, vector<24x24xf32> -> vector<24x24xf32>
    "tpu.trace_stop"() : () -> ()
    %cst_44 = arith.constant 0.176776692 : f32
    %85 = vector.broadcast %cst_44 : f32 to vector<24x24xf32>
    %86 = arith.mulf %84, %85 : vector<24x24xf32>
    %87 = tpu.iota {dimensions = array<i32: 1>} : vector<24x24xi32>
    %c17_i32_45 = arith.constant 17 : i32
    %88 = vector.broadcast %c17_i32_45 : i32 to vector<24x24xi32>
    %89 = arith.cmpi slt, %87, %88 : vector<24x24xi32>
    %cst_46 = arith.constant -1.000000e+30 : f32
    %90 = vector.broadcast %cst_46 : f32 to vector<24x24xf32>
    %91 = arith.select %89, %86, %90 : vector<24x24xi1>, vector<24x24xf32>
    %cst_47 = arith.constant dense<0xFF800000> : vector<24xf32>
    %92 = vector.multi_reduction <maximumf>, %91, %cst_47 [1] : vector<24x24xf32> to vector<24xf32>
    %93 = vector.shape_cast %92 : vector<24xf32> to vector<24x1xf32>
    %94 = vector.broadcast %93 : vector<24x1xf32> to vector<24x24xf32>
    %95 = arith.subf %91, %94 : vector<24x24xf32>
    %96 = math.exp %95 : vector<24x24xf32>
    %cst_48 = arith.constant dense<0.000000e+00> : vector<24xf32>
    %97 = vector.multi_reduction <add>, %96, %cst_48 [1] : vector<24x24xf32> to vector<24xf32>
    %98 = vector.shape_cast %97 : vector<24xf32> to vector<24x1xf32>
    %99 = tpu.reciprocal %98 {approx = true} : vector<24x1xf32> -> vector<24x1xf32>
    %100 = vector.broadcast %99 : vector<24x1xf32> to vector<24x24xf32>
    %101 = arith.mulf %96, %100 : vector<24x24xf32>
    %102 = arith.truncf %101 : vector<24x24xf32> to vector<24x24xbf16>
    %cst_49 = arith.constant dense<0.000000e+00> : vector<24x32xf32>
    %103 = tpu.matmul %102, %83, %cst_49 {dimension_numbers = #tpu.dot_dimension_numbers<[1], [0], [0], [1], [0, 0, 1, 1], [], []>} : vector<24x24xbf16>, vector<24x32xbf16>, vector<24x32xf32> -> vector<24x32xf32>
    %104 = tpu.concatenate %25, %51, %77, %103 in 1 : vector<24x32xf32>, vector<24x32xf32>, vector<24x32xf32>, vector<24x32xf32> -> vector<24x128xf32>
    %105 = arith.truncf %104 : vector<24x128xf32> to vector<24x128xbf16>
    %c0_50 = arith.constant 0 : index
    %c0_51 = arith.constant 0 : index
    %106 = vector.load %arg3[%c0_50, %c0_51] : memref<128x128xbf16, #tpu.memory_space<vmem>>, vector<128x128xbf16>
    %cst_52 = arith.constant dense<0.000000e+00> : vector<24x128xf32>
    %107 = tpu.matmul %105, %106, %cst_52 {dimension_numbers = #tpu.dot_dimension_numbers<[1], [0], [0], [1], [0, 0, 1, 1], [], []>} : vector<24x128xbf16>, vector<128x128xbf16>, vector<24x128xf32> -> vector<24x128xf32>
    %c0_53 = arith.constant 0 : index
    %c0_54 = arith.constant 0 : index
    %108 = vector.load %arg4[%c0_53, %c0_54] : memref<1x128xf32, #tpu.memory_space<vmem>>, vector<1x128xf32>
    %109 = vector.broadcast %108 : vector<1x128xf32> to vector<24x128xf32>
    %110 = arith.addf %107, %109 : vector<24x128xf32>
    %c0_55 = arith.constant 0 : index
    %c0_56 = arith.constant 0 : index
    %c0_57 = arith.constant 0 : index
    %111 = vector.load %arg2[%c0_55, %c0_56, %c0_57] : memref<1x24x128xbf16, #tpu.memory_space<vmem>>, vector<1x24x128xbf16>
    %112 = vector.shape_cast %111 : vector<1x24x128xbf16> to vector<24x128xbf16>
    %113 = arith.extf %112 : vector<24x128xbf16> to vector<24x128xf32>
    %114 = arith.addf %110, %113 : vector<24x128xf32>
    %115 = arith.truncf %114 : vector<24x128xf32> to vector<24x128xbf16>
    %c0_58 = arith.constant 0 : index
    %c0_59 = arith.constant 0 : index
    %c0_60 = arith.constant 0 : index
    %116 = vector.load %arg5[%c0_58, %c0_59, %c0_60] : memref<1x24x128xbf16, #tpu.memory_space<vmem>>, vector<1x24x128xbf16>
    %117 = vector.shape_cast %116 : vector<1x24x128xbf16> to vector<24x128xbf16>
    %118 = vector.shape_cast %115 : vector<24x128xbf16> to vector<1x24x128xbf16>
    tpu.vector_store %arg5[%c0_58, %c0_59, %c0_60], %118 {strides = array<i32>} : memref<1x24x128xbf16, #tpu.memory_space<vmem>>, vector<1x24x128xbf16>,
    return
  }
  func.func @transform_0(%arg0: i32) -> (i32, i32, i32) {
    %c0_i32 = arith.constant 0 : i32
    %c0_i32_0 = arith.constant 0 : i32
    %c0_i32_1 = arith.constant 0 : i32
    return %arg0, %c0_i32, %c0_i32_0 : i32, i32, i32
  }
  func.func @transform_1(%arg0: i32) -> (i32, i32, i32) {
    %c0_i32 = arith.constant 0 : i32
    %c0_i32_0 = arith.constant 0 : i32
    %c0_i32_1 = arith.constant 0 : i32
    return %arg0, %c0_i32, %c0_i32_0 : i32, i32, i32
  }
  func.func @transform_2(%arg0: i32) -> (i32, i32) {
    %c0_i32 = arith.constant 0 : i32
    %c0_i32_0 = arith.constant 0 : i32
    %c0_i32_1 = arith.constant 0 : i32
    return %c0_i32, %c0_i32_0 : i32, i32
  }
  func.func @transform_3(%arg0: i32) -> (i32, i32) {
    %c0_i32 = arith.constant 0 : i32
    %c0_i32_0 = arith.constant 0 : i32
    %c0_i32_1 = arith.constant 0 : i32
    return %c0_i32, %c0_i32_0 : i32, i32
  }
  func.func @transform_4(%arg0: i32) -> (i32, i32, i32) {
    %c0_i32 = arith.constant 0 : i32
    %c0_i32_0 = arith.constant 0 : i32
    %c0_i32_1 = arith.constant 0 : i32
    return %arg0, %c0_i32, %c0_i32_0 : i32, i32, i32
  }
}

module attributes {stable_mosaic.version = 11 : i64} {
  func.func @_mlp_kernel(%arg0: i32, %arg1: i32, %arg2: memref<48x128xbf16, #tpu.memory_space<vmem>>, %arg3: memref<1x128xf32, #tpu.memory_space<vmem>>, %arg4: memref<1x128xf32, #tpu.memory_space<vmem>>, %arg5: memref<128x512xbf16, #tpu.memory_space<vmem>>, %arg6: memref<1x512xf32, #tpu.memory_space<vmem>>, %arg7: memref<512x128xbf16, #tpu.memory_space<vmem>>, %arg8: memref<1x128xf32, #tpu.memory_space<vmem>>, %arg9: memref<48x128xbf16, #tpu.memory_space<vmem>>, %arg10: memref<48x128xbf16, #tpu.memory_space<vmem>>, %arg11: memref<48x128xf32, #tpu.memory_space<vmem>>) attributes {dimension_semantics = [#tpu.dimension_semantics<parallel>, #tpu.dimension_semantics<arbitrary>], iteration_bounds = array<i64: 1, 1>, scalar_prefetch = 0 : i64, scratch_operands = 2 : i64, tpu.core_type = #tpu.core_type<tc>, window_params = [{transform_indices = @transform_0, window_bounds = array<i64: 48, 128>}, {pipeline_mode = #tpu.pipeline_mode<synchronous>, transform_indices = @transform_1, window_bounds = array<i64: 1, 128>}, {pipeline_mode = #tpu.pipeline_mode<synchronous>, transform_indices = @transform_2, window_bounds = array<i64: 1, 128>}, {transform_indices = @transform_3, window_bounds = array<i64: 128, 512>}, {transform_indices = @transform_4, window_bounds = array<i64: 1, 512>}, {transform_indices = @transform_5, window_bounds = array<i64: 512, 128>}, {pipeline_mode = #tpu.pipeline_mode<synchronous>, transform_indices = @transform_6, window_bounds = array<i64: 1, 128>}, {transform_indices = @transform_7, window_bounds = array<i64: 48, 128>}]} {
    %c0_i32 = arith.constant 0 : i32
    %0 = arith.cmpi eq, %arg1, %c0_i32 : i32
    %1 = arith.extui %0 : i1 to i32
    %c0_i32_0 = arith.constant 0 : i32
    %2 = arith.cmpi ne, %1, %c0_i32_0 : i32
    scf.if %2 {
      %c0_19 = arith.constant 0 : index
      %c0_20 = arith.constant 0 : index
      %31 = vector.load %arg2[%c0_19, %c0_20] : memref<48x128xbf16, #tpu.memory_space<vmem>>, vector<48x128xbf16>
      %32 = arith.extf %31 : vector<48x128xbf16> to vector<48x128xf32>
      %cst_21 = arith.constant dense<0.000000e+00> : vector<48xf32>
      %33 = vector.multi_reduction <add>, %32, %cst_21 [1] : vector<48x128xf32> to vector<48xf32>
      %34 = vector.shape_cast %33 : vector<48xf32> to vector<48x1xf32>
      %cst_22 = arith.constant 1.280000e+02 : f32
      %35 = vector.broadcast %cst_22 : f32 to vector<48x1xf32>
      %36 = arith.divf %34, %35 : vector<48x1xf32>
      %37 = vector.broadcast %36 : vector<48x1xf32> to vector<48x128xf32>
      %38 = arith.subf %32, %37 : vector<48x128xf32>
      %39 = arith.mulf %38, %38 : vector<48x128xf32>
      %cst_23 = arith.constant dense<0.000000e+00> : vector<48xf32>
      %40 = vector.multi_reduction <add>, %39, %cst_23 [1] : vector<48x128xf32> to vector<48xf32>
      %41 = vector.shape_cast %40 : vector<48xf32> to vector<48x1xf32>
      %cst_24 = arith.constant 1.280000e+02 : f32
      %42 = vector.broadcast %cst_24 : f32 to vector<48x1xf32>
      %43 = arith.divf %41, %42 : vector<48x1xf32>
      %44 = vector.broadcast %36 : vector<48x1xf32> to vector<48x128xf32>
      %45 = arith.subf %32, %44 : vector<48x128xf32>
      %cst_25 = arith.constant 9.99999997E-7 : f32
      %46 = vector.broadcast %cst_25 : f32 to vector<48x1xf32>
      %47 = arith.addf %43, %46 : vector<48x1xf32>
      %48 = math.rsqrt %47 : vector<48x1xf32>
      %49 = vector.broadcast %48 : vector<48x1xf32> to vector<48x128xf32>
      %50 = arith.mulf %45, %49 : vector<48x128xf32>
      %c0_26 = arith.constant 0 : index
      %c0_27 = arith.constant 0 : index
      %51 = vector.load %arg3[%c0_26, %c0_27] : memref<1x128xf32, #tpu.memory_space<vmem>>, vector<1x128xf32>
      %52 = vector.broadcast %51 : vector<1x128xf32> to vector<48x128xf32>
      %53 = arith.mulf %50, %52 : vector<48x128xf32>
      %c0_28 = arith.constant 0 : index
      %c0_29 = arith.constant 0 : index
      %54 = vector.load %arg4[%c0_28, %c0_29] : memref<1x128xf32, #tpu.memory_space<vmem>>, vector<1x128xf32>
      %55 = vector.broadcast %54 : vector<1x128xf32> to vector<48x128xf32>
      %56 = arith.addf %53, %55 : vector<48x128xf32>
      %57 = arith.truncf %56 : vector<48x128xf32> to vector<48x128xbf16>
      %c0_30 = arith.constant 0 : index
      %c0_31 = arith.constant 0 : index
      %58 = vector.load %arg10[%c0_30, %c0_31] : memref<48x128xbf16, #tpu.memory_space<vmem>>, vector<48x128xbf16>
      tpu.vector_store %arg10[%c0_30, %c0_31], %57 {strides = array<i32>} : memref<48x128xbf16, #tpu.memory_space<vmem>>, vector<48x128xbf16>,
      %cst_32 = arith.constant 0.000000e+00 : f32
      %59 = vector.broadcast %cst_32 : f32 to vector<48x128xf32>
      %c0_33 = arith.constant 0 : index
      %c0_34 = arith.constant 0 : index
      %60 = vector.load %arg11[%c0_33, %c0_34] : memref<48x128xf32, #tpu.memory_space<vmem>>, vector<48x128xf32>
      tpu.vector_store %arg11[%c0_33, %c0_34], %59 {strides = array<i32>} : memref<48x128xf32, #tpu.memory_space<vmem>>, vector<48x128xf32>,
    } else {
    }
    %c0 = arith.constant 0 : index
    %c0_1 = arith.constant 0 : index
    %3 = vector.load %arg10[%c0, %c0_1] : memref<48x128xbf16, #tpu.memory_space<vmem>>, vector<48x128xbf16>
    %c0_2 = arith.constant 0 : index
    %c0_3 = arith.constant 0 : index
    %4 = vector.load %arg5[%c0_2, %c0_3] : memref<128x512xbf16, #tpu.memory_space<vmem>>, vector<128x512xbf16>
    %cst = arith.constant dense<0.000000e+00> : vector<48x512xf32>
    %5 = tpu.matmul %3, %4, %cst {dimension_numbers = #tpu.dot_dimension_numbers<[1], [0], [0], [1], [0, 0, 1, 1], [], []>} : vector<48x128xbf16>, vector<128x512xbf16>, vector<48x512xf32> -> vector<48x512xf32>
    %c0_4 = arith.constant 0 : index
    %c0_5 = arith.constant 0 : index
    %6 = vector.load %arg6[%c0_4, %c0_5] : memref<1x512xf32, #tpu.memory_space<vmem>>, vector<1x512xf32>
    %7 = vector.broadcast %6 : vector<1x512xf32> to vector<48x512xf32>
    %8 = arith.addf %5, %7 : vector<48x512xf32>
    %9 = arith.mulf %8, %8 : vector<48x512xf32>
    %10 = arith.mulf %8, %9 : vector<48x512xf32>
    %cst_6 = arith.constant 4.471500e-02 : f32
    %11 = vector.broadcast %cst_6 : f32 to vector<48x512xf32>
    %12 = arith.mulf %11, %10 : vector<48x512xf32>
    %13 = arith.addf %8, %12 : vector<48x512xf32>
    %cst_7 = arith.constant 0.797884583 : f32
    %14 = vector.broadcast %cst_7 : f32 to vector<48x512xf32>
    %15 = arith.mulf %14, %13 : vector<48x512xf32>
    %16 = math.tanh %15 : vector<48x512xf32>
    %cst_8 = arith.constant 1.000000e+00 : f32
    %17 = vector.broadcast %cst_8 : f32 to vector<48x512xf32>
    %18 = arith.addf %17, %16 : vector<48x512xf32>
    %cst_9 = arith.constant 5.000000e-01 : f32
    %19 = vector.broadcast %cst_9 : f32 to vector<48x512xf32>
    %20 = arith.mulf %19, %18 : vector<48x512xf32>
    %21 = arith.mulf %8, %20 : vector<48x512xf32>
    %c0_10 = arith.constant 0 : index
    %c0_11 = arith.constant 0 : index
    %22 = vector.load %arg11[%c0_10, %c0_11] : memref<48x128xf32, #tpu.memory_space<vmem>>, vector<48x128xf32>
    %23 = arith.truncf %21 : vector<48x512xf32> to vector<48x512xbf16>
    %c0_12 = arith.constant 0 : index
    %c0_13 = arith.constant 0 : index
    %24 = vector.load %arg7[%c0_12, %c0_13] : memref<512x128xbf16, #tpu.memory_space<vmem>>, vector<512x128xbf16>
    %cst_14 = arith.constant dense<0.000000e+00> : vector<48x128xf32>
    %25 = tpu.matmul %23, %24, %cst_14 {dimension_numbers = #tpu.dot_dimension_numbers<[1], [0], [0], [1], [0, 0, 1, 1], [], []>} : vector<48x512xbf16>, vector<512x128xbf16>, vector<48x128xf32> -> vector<48x128xf32>
    %26 = arith.addf %22, %25 : vector<48x128xf32>
    %c0_15 = arith.constant 0 : index
    %c0_16 = arith.constant 0 : index
    %27 = vector.load %arg11[%c0_15, %c0_16] : memref<48x128xf32, #tpu.memory_space<vmem>>, vector<48x128xf32>
    tpu.vector_store %arg11[%c0_15, %c0_16], %26 {strides = array<i32>} : memref<48x128xf32, #tpu.memory_space<vmem>>, vector<48x128xf32>,
    %c0_i32_17 = arith.constant 0 : i32
    %28 = arith.cmpi eq, %arg1, %c0_i32_17 : i32
    %29 = arith.extui %28 : i1 to i32
    %c0_i32_18 = arith.constant 0 : i32
    %30 = arith.cmpi ne, %29, %c0_i32_18 : i32
    scf.if %30 {
      %c0_19 = arith.constant 0 : index
      %c0_20 = arith.constant 0 : index
      %31 = vector.load %arg11[%c0_19, %c0_20] : memref<48x128xf32, #tpu.memory_space<vmem>>, vector<48x128xf32>
      %c0_21 = arith.constant 0 : index
      %c0_22 = arith.constant 0 : index
      %32 = vector.load %arg8[%c0_21, %c0_22] : memref<1x128xf32, #tpu.memory_space<vmem>>, vector<1x128xf32>
      %33 = vector.broadcast %32 : vector<1x128xf32> to vector<48x128xf32>
      %34 = arith.addf %31, %33 : vector<48x128xf32>
      %c0_23 = arith.constant 0 : index
      %c0_24 = arith.constant 0 : index
      %35 = vector.load %arg2[%c0_23, %c0_24] : memref<48x128xbf16, #tpu.memory_space<vmem>>, vector<48x128xbf16>
      %36 = arith.extf %35 : vector<48x128xbf16> to vector<48x128xf32>
      %37 = arith.addf %34, %36 : vector<48x128xf32>
      %38 = arith.truncf %37 : vector<48x128xf32> to vector<48x128xbf16>
      %c0_25 = arith.constant 0 : index
      %c0_26 = arith.constant 0 : index
      %39 = vector.load %arg9[%c0_25, %c0_26] : memref<48x128xbf16, #tpu.memory_space<vmem>>, vector<48x128xbf16>
      tpu.vector_store %arg9[%c0_25, %c0_26], %38 {strides = array<i32>} : memref<48x128xbf16, #tpu.memory_space<vmem>>, vector<48x128xbf16>,
    } else {
    }
    return
  }
  func.func @transform_0(%arg0: i32, %arg1: i32) -> (i32, i32) {
    %c0_i32 = arith.constant 0 : i32
    %c0_i32_0 = arith.constant 0 : i32
    return %arg0, %c0_i32 : i32, i32
  }
  func.func @transform_1(%arg0: i32, %arg1: i32) -> (i32, i32) {
    %c0_i32 = arith.constant 0 : i32
    %c0_i32_0 = arith.constant 0 : i32
    %c0_i32_1 = arith.constant 0 : i32
    return %c0_i32, %c0_i32_0 : i32, i32
  }
  func.func @transform_2(%arg0: i32, %arg1: i32) -> (i32, i32) {
    %c0_i32 = arith.constant 0 : i32
    %c0_i32_0 = arith.constant 0 : i32
    %c0_i32_1 = arith.constant 0 : i32
    return %c0_i32, %c0_i32_0 : i32, i32
  }
  func.func @transform_3(%arg0: i32, %arg1: i32) -> (i32, i32) {
    %c0_i32 = arith.constant 0 : i32
    %c0_i32_0 = arith.constant 0 : i32
    return %c0_i32, %arg1 : i32, i32
  }
  func.func @transform_4(%arg0: i32, %arg1: i32) -> (i32, i32) {
    %c0_i32 = arith.constant 0 : i32
    %c0_i32_0 = arith.constant 0 : i32
    return %c0_i32, %arg1 : i32, i32
  }
  func.func @transform_5(%arg0: i32, %arg1: i32) -> (i32, i32) {
    %c0_i32 = arith.constant 0 : i32
    %c0_i32_0 = arith.constant 0 : i32
    return %arg1, %c0_i32 : i32, i32
  }
  func.func @transform_6(%arg0: i32, %arg1: i32) -> (i32, i32) {
    %c0_i32 = arith.constant 0 : i32
    %c0_i32_0 = arith.constant 0 : i32
    %c0_i32_1 = arith.constant 0 : i32
    return %c0_i32, %c0_i32_0 : i32, i32
  }
  func.func @transform_7(%arg0: i32, %arg1: i32) -> (i32, i32) {
    %c0_i32 = arith.constant 0 : i32
    %c0_i32_0 = arith.constant 0 : i32
    return %arg0, %c0_i32 : i32, i32
  }
}

module attributes {stable_mosaic.version = 11 : i64} {
  func.func @_ln_matmul_kernel(%arg0: i32, %arg1: i32, %arg2: memref<2x128xbf16, #tpu.memory_space<vmem>>, %arg3: memref<1x128xf32, #tpu.memory_space<vmem>>, %arg4: memref<1x128xf32, #tpu.memory_space<vmem>>, %arg5: memref<128x128xbf16, #tpu.memory_space<vmem>>, %arg6: memref<1x128xf32, #tpu.memory_space<vmem>>, %arg7: memref<2x128xf32, #tpu.memory_space<vmem>>, %arg8: memref<2x128xbf16, #tpu.memory_space<vmem>>) attributes {dimension_semantics = [#tpu.dimension_semantics<parallel>, #tpu.dimension_semantics<arbitrary>], iteration_bounds = array<i64: 1, 1>, scalar_prefetch = 0 : i64, scratch_operands = 1 : i64, tpu.core_type = #tpu.core_type<tc>, window_params = [{transform_indices = @transform_0, window_bounds = array<i64: 2, 128>}, {pipeline_mode = #tpu.pipeline_mode<synchronous>, transform_indices = @transform_1, window_bounds = array<i64: 1, 128>}, {pipeline_mode = #tpu.pipeline_mode<synchronous>, transform_indices = @transform_2, window_bounds = array<i64: 1, 128>}, {transform_indices = @transform_3, window_bounds = array<i64: 128, 128>}, {transform_indices = @transform_4, window_bounds = array<i64: 1, 128>}, {transform_indices = @transform_5, window_bounds = array<i64: 2, 128>}]} {
    %c0_i32 = arith.constant 0 : i32
    %0 = arith.cmpi eq, %arg1, %c0_i32 : i32
    %1 = arith.extui %0 : i1 to i32
    %c0_i32_0 = arith.constant 0 : i32
    %2 = arith.cmpi ne, %1, %c0_i32_0 : i32
    scf.if %2 {
      %c0_8 = arith.constant 0 : index
      %c0_9 = arith.constant 0 : index
      %10 = vector.load %arg2[%c0_8, %c0_9] : memref<2x128xbf16, #tpu.memory_space<vmem>>, vector<2x128xbf16>
      %11 = arith.extf %10 : vector<2x128xbf16> to vector<2x128xf32>
      %cst_10 = arith.constant dense<0.000000e+00> : vector<2xf32>
      %12 = vector.multi_reduction <add>, %11, %cst_10 [1] : vector<2x128xf32> to vector<2xf32>
      %13 = vector.shape_cast %12 : vector<2xf32> to vector<2x1xf32>
      %cst_11 = arith.constant 1.280000e+02 : f32
      %14 = vector.broadcast %cst_11 : f32 to vector<2x1xf32>
      %15 = arith.divf %13, %14 : vector<2x1xf32>
      %16 = vector.broadcast %15 : vector<2x1xf32> to vector<2x128xf32>
      %17 = arith.subf %11, %16 : vector<2x128xf32>
      %18 = arith.mulf %17, %17 : vector<2x128xf32>
      %cst_12 = arith.constant dense<0.000000e+00> : vector<2xf32>
      %19 = vector.multi_reduction <add>, %18, %cst_12 [1] : vector<2x128xf32> to vector<2xf32>
      %20 = vector.shape_cast %19 : vector<2xf32> to vector<2x1xf32>
      %cst_13 = arith.constant 1.280000e+02 : f32
      %21 = vector.broadcast %cst_13 : f32 to vector<2x1xf32>
      %22 = arith.divf %20, %21 : vector<2x1xf32>
      %23 = vector.broadcast %15 : vector<2x1xf32> to vector<2x128xf32>
      %24 = arith.subf %11, %23 : vector<2x128xf32>
      %cst_14 = arith.constant 9.99999997E-7 : f32
      %25 = vector.broadcast %cst_14 : f32 to vector<2x1xf32>
      %26 = arith.addf %22, %25 : vector<2x1xf32>
      %27 = math.rsqrt %26 : vector<2x1xf32>
      %28 = vector.broadcast %27 : vector<2x1xf32> to vector<2x128xf32>
      %29 = arith.mulf %24, %28 : vector<2x128xf32>
      %c0_15 = arith.constant 0 : index
      %c0_16 = arith.constant 0 : index
      %30 = vector.load %arg3[%c0_15, %c0_16] : memref<1x128xf32, #tpu.memory_space<vmem>>, vector<1x128xf32>
      %31 = vector.broadcast %30 : vector<1x128xf32> to vector<2x128xf32>
      %32 = arith.mulf %29, %31 : vector<2x128xf32>
      %c0_17 = arith.constant 0 : index
      %c0_18 = arith.constant 0 : index
      %33 = vector.load %arg4[%c0_17, %c0_18] : memref<1x128xf32, #tpu.memory_space<vmem>>, vector<1x128xf32>
      %34 = vector.broadcast %33 : vector<1x128xf32> to vector<2x128xf32>
      %35 = arith.addf %32, %34 : vector<2x128xf32>
      %36 = arith.truncf %35 : vector<2x128xf32> to vector<2x128xbf16>
      %c0_19 = arith.constant 0 : index
      %c0_20 = arith.constant 0 : index
      %37 = vector.load %arg8[%c0_19, %c0_20] : memref<2x128xbf16, #tpu.memory_space<vmem>>, vector<2x128xbf16>
      tpu.vector_store %arg8[%c0_19, %c0_20], %36 {strides = array<i32>} : memref<2x128xbf16, #tpu.memory_space<vmem>>, vector<2x128xbf16>,
    } else {
    }
    %c0 = arith.constant 0 : index
    %c0_1 = arith.constant 0 : index
    %3 = vector.load %arg8[%c0, %c0_1] : memref<2x128xbf16, #tpu.memory_space<vmem>>, vector<2x128xbf16>
    %c0_2 = arith.constant 0 : index
    %c0_3 = arith.constant 0 : index
    %4 = vector.load %arg5[%c0_2, %c0_3] : memref<128x128xbf16, #tpu.memory_space<vmem>>, vector<128x128xbf16>
    %cst = arith.constant dense<0.000000e+00> : vector<2x128xf32>
    %5 = tpu.matmul %3, %4, %cst {dimension_numbers = #tpu.dot_dimension_numbers<[1], [0], [0], [1], [0, 0, 1, 1], [], []>} : vector<2x128xbf16>, vector<128x128xbf16>, vector<2x128xf32> -> vector<2x128xf32>
    %c0_4 = arith.constant 0 : index
    %c0_5 = arith.constant 0 : index
    %6 = vector.load %arg6[%c0_4, %c0_5] : memref<1x128xf32, #tpu.memory_space<vmem>>, vector<1x128xf32>
    %7 = vector.broadcast %6 : vector<1x128xf32> to vector<2x128xf32>
    %8 = arith.addf %5, %7 : vector<2x128xf32>
    %c0_6 = arith.constant 0 : index
    %c0_7 = arith.constant 0 : index
    %9 = vector.load %arg7[%c0_6, %c0_7] : memref<2x128xf32, #tpu.memory_space<vmem>>, vector<2x128xf32>
    tpu.vector_store %arg7[%c0_6, %c0_7], %8 {strides = array<i32>} : memref<2x128xf32, #tpu.memory_space<vmem>>, vector<2x128xf32>,
    return
  }
  func.func @transform_0(%arg0: i32, %arg1: i32) -> (i32, i32) {
    %c0_i32 = arith.constant 0 : i32
    %c0_i32_0 = arith.constant 0 : i32
    return %arg0, %c0_i32 : i32, i32
  }
  func.func @transform_1(%arg0: i32, %arg1: i32) -> (i32, i32) {
    %c0_i32 = arith.constant 0 : i32
    %c0_i32_0 = arith.constant 0 : i32
    %c0_i32_1 = arith.constant 0 : i32
    return %c0_i32, %c0_i32_0 : i32, i32
  }
  func.func @transform_2(%arg0: i32, %arg1: i32) -> (i32, i32) {
    %c0_i32 = arith.constant 0 : i32
    %c0_i32_0 = arith.constant 0 : i32
    %c0_i32_1 = arith.constant 0 : i32
    return %c0_i32, %c0_i32_0 : i32, i32
  }
  func.func @transform_3(%arg0: i32, %arg1: i32) -> (i32, i32) {
    %c0_i32 = arith.constant 0 : i32
    %c0_i32_0 = arith.constant 0 : i32
    return %c0_i32, %arg1 : i32, i32
  }
  func.func @transform_4(%arg0: i32, %arg1: i32) -> (i32, i32) {
    %c0_i32 = arith.constant 0 : i32
    %c0_i32_0 = arith.constant 0 : i32
    return %c0_i32, %arg1 : i32, i32
  }
  func.func @transform_5(%arg0: i32, %arg1: i32) -> (i32, i32) {
    %c0_i32 = arith.constant 0 : i32
    return %arg0, %arg1 : i32, i32
  }
}

</mosaic_0001>

<llo_original>
// kernel: neg.0
$region0: #{neg.0}
  #allocation0 [shape = 's32[1]{0}', space=sflag, size = 0x4, scoped, tag = 'scoped memory for neg.0']
  %s0 = inlined_call_operand.vmem [shape: f32[128], index: 0, kind: input, shape index: {}]
  %s1 = inlined_call_operand.vmem [shape: f32[128], index: 1, kind: output, shape index: {}]
  %v2 = vld [vmem:[%s0] sm:$0x1]
  %3 = xla_tuple %v2
  %4 = xla_tuple %3
  %v5 = vxor.u32 %v2, 2147483648
  %6 = xla_tuple %v5
  %7 = vst [vmem:[%s1] sm:$0x1] %v5

// kernel: vit_forward.8
$region0: #{vit_forward.8}
  #allocation0 [shape = 'u32[]', space=smem, size = 0x4, offset = 0x4, fixed_abs, tag = 'smem constant byte address 0x4 - core index']
  #allocation1 [shape = 'u32[144,128]{1,0:T(1,128)}', space=vmem, size = 0x12000, scoped, tag = 'internal scratch']
  #allocation2 [shape = 'f32[48,128]{1,0:T(8,128)}', space=vmem, size = 0x6000, scoped, tag = 'scratch operand']
  %s0 = inlined_call_operand.vmem [shape: bf16[48,128], index: 0, kind: input, shape index: {}]
  %s1 = inlined_call_operand.vmem [shape: bf16[128,128], index: 1, kind: input, shape index: {}]
  %s2 = inlined_call_operand.vmem [shape: f32[1,128], index: 2, kind: input, shape index: {}]
  %s3 = inlined_call_operand.vmem [shape: f32[48,128], index: 3, kind: input, shape index: {}]
  %s4 = inlined_call_operand.vmem [shape: bf16[48,128], index: 4, kind: output, shape index: {}]
  %s5 = sld [smem:[#allocation0]]
  $region34: #{vit_forward.8} parent=0
    _
  %s7 = ssub.s32 1, %s5
  %s8 = scalar_select 0, %s7, %s5
  // Predicated region
  $region2: #{vit_forward.8} parent=0 // pred_check
    _
  $region3: #{vit_forward.8} parent=0 // pred_check_branch
    %10 = sbr.rel (0) target = $region5
  $region4: #{vit_forward.8} parent=0 // pred_region
    _
  $region5: #{vit_forward.8} parent=0 // pred_fallthru
    _
  // Predicated region
  $region6: #{vit_forward.8} parent=0 // pred_check
    _
  $region7: #{vit_forward.8} parent=0 // pred_check_branch
    %12 = sbr.rel (0) target = $region9
  $region8: #{vit_forward.8} parent=0 // pred_region
    _
  $region9: #{vit_forward.8} parent=0 // pred_fallthru
    _
  // Predicated region
  $region10: #{vit_forward.8} parent=0 // pred_check
    _
  $region11: #{vit_forward.8} parent=0 // pred_check_branch
    %14 = sbr.rel (0) target = $region13
  $region12: #{vit_forward.8} parent=0 // pred_region
    _
  $region13: #{vit_forward.8} parent=0 // pred_fallthru
    _
  // Predicated region
  $region14: #{vit_forward.8} parent=0 // pred_check
    _
  $region15: #{vit_forward.8} parent=0 // pred_check_branch
    %16 = sbr.rel (0) target = $region17
  $region16: #{vit_forward.8} parent=0 // pred_region
    _
  $region17: #{vit_forward.8} parent=0 // pred_fallthru
    _
  %p18 = scmp.eq.s32.totalorder 0, 0
  // Predicated region
  $region18: #{vit_forward.8} parent=0 // pred_check
    %p19 = pneg %p18
  $region19: #{vit_forward.8} parent=0 // pred_check_branch
    %21 = sbr.rel (%p19) target = $region21
  $region20: #{vit_forward.8} parent=0 // pred_region
    %22 = vst [vmem:[#allocation2] sm:$0xff] 0.0
    %23 = vst [vmem:[#allocation2 + $0x8] sm:$0xff] 0.0
    %24 = vst [vmem:[#allocation2 + $0x10] sm:$0xff] 0.0
    %25 = vst [vmem:[#allocation2 + $0x18] sm:$0xff] 0.0
    %26 = vst [vmem:[#allocation2 + $0x20] sm:$0xff] 0.0
    %27 = vst [vmem:[#allocation2 + $0x28] sm:$0xff] 0.0
  $region21: #{vit_forward.8} parent=0 // pred_fallthru
    _
  %v28 = vld [vmem:[#allocation2] sm:$0xff]
  %v29 = vld [vmem:[#allocation2 + $0x8] sm:$0xff]
  %v30 = vld [vmem:[#allocation2 + $0x10] sm:$0xff]
  %v31 = vld [vmem:[#allocation2 + $0x18] sm:$0xff]
  %v32 = vld [vmem:[#allocation2 + $0x20] sm:$0xff]
  %v33 = vld [vmem:[#allocation2 + $0x28] sm:$0xff]
  %v34 = vld [vmem:[%s0] sm:$0xf]
  %v35 = vld [vmem:[%s0 + $0x4] sm:$0xf]
  %v36 = vld [vmem:[%s0 + $0x8] sm:$0xf]
  %v37 = vld [vmem:[%s0 + $0xc] sm:$0xf]
  %v38 = vld [vmem:[%s0 + $0x10] sm:$0xf]
  %v39 = vld [vmem:[%s0 + $0x14] sm:$0xf]
  %v40 = vld [vmem:[%s1] sm:$0xf]
  %v41 = vld [vmem:[%s1 + $0x4] sm:$0xf]
  %v42 = vld [vmem:[%s1 + $0x8] sm:$0xf]
  %v43 = vld [vmem:[%s1 + $0xc] sm:$0xf]
  %v44 = vld [vmem:[%s1 + $0x10] sm:$0xf]
  %v45 = vld [vmem:[%s1 + $0x14] sm:$0xf]
  %v46 = vld [vmem:[%s1 + $0x18] sm:$0xf]
  %v47 = vld [vmem:[%s1 + $0x1c] sm:$0xf]
  %v48 = vld [vmem:[%s1 + $0x20] sm:$0xf]
  %v49 = vld [vmem:[%s1 + $0x24] sm:$0xf]
  %v50 = vld [vmem:[%s1 + $0x28] sm:$0xf]
  %v51 = vld [vmem:[%s1 + $0x2c] sm:$0xf]
  %v52 = vld [vmem:[%s1 + $0x30] sm:$0xf]
  %v53 = vld [vmem:[%s1 + $0x34] sm:$0xf]
  %v54 = vld [vmem:[%s1 + $0x38] sm:$0xf]
  %v55 = vld [vmem:[%s1 + $0x3c] sm:$0xf]
  %v62 = vunpack.c.l.b16 %v34
  %v63 = vunpack.c.l.b16 %v35
  %v64 = vunpack.c.l.b16 %v36
  %v65 = vunpack.c.l.b16 %v37
  %v66 = vunpack.c.l.b16 %v38
  %v67 = vunpack.c.l.b16 %v39
  %v68 = vpack.c.b16 %v63, %v62
  %v69 = vpack.c.b16 %v65, %v64
  %v70 = vpack.c.b16 %v67, %v66
  %v90 = vunpack.c.l.b16 %v40
  %v91 = vunpack.c.l.b16 %v41
  %v92 = vunpack.c.l.b16 %v42
  %v93 = vunpack.c.l.b16 %v43
  %v94 = vunpack.c.l.b16 %v44
  %v95 = vunpack.c.l.b16 %v45
  %v96 = vunpack.c.l.b16 %v46
  %v97 = vunpack.c.l.b16 %v47
  %v98 = vunpack.c.l.b16 %v48
  %v99 = vunpack.c.l.b16 %v49
  %v100 = vunpack.c.l.b16 %v50
  %v101 = vunpack.c.l.b16 %v51
  %v102 = vunpack.c.l.b16 %v52
  %v103 = vunpack.c.l.b16 %v53
  %v104 = vunpack.c.l.b16 %v54
  %v105 = vunpack.c.l.b16 %v55
  %v106 = vpack.c.b16 %v91, %v90
  %v107 = vpack.c.b16 %v93, %v92
  %v108 = vpack.c.b16 %v95, %v94
  %v109 = vpack.c.b16 %v97, %v96
  %v110 = vpack.c.b16 %v99, %v98
  %v111 = vpack.c.b16 %v101, %v100
  %v112 = vpack.c.b16 %v103, %v102
  %v113 = vpack.c.b16 %v105, %v104
  %122 = vmatprep.subr.bf16.mxu0 0
  %123 = vmatpush1.bf16.msra.mxu0 %v106
  %124 = vmatprep.subr.bf16.mxu0 0
  %125 = vmatpush1.bf16.msra.mxu0 %v107
  %126 = vmatprep.subr.bf16.mxu0 0
  %127 = vmatpush1.bf16.msra.mxu0 %v108
  %128 = vmatprep.subr.bf16.mxu0 0
  %129 = vmatpush1.bf16.msra.mxu0 %v109
  %130 = vmatprep.subr.bf16.mxu0 0
  %131 = vmatpush1.bf16.msra.mxu0 %v110
  %132 = vmatprep.subr.bf16.mxu0 0
  %133 = vmatpush1.bf16.msra.mxu0 %v111
  %134 = vmatprep.subr.bf16.mxu0 0
  %135 = vmatpush1.bf16.msra.mxu0 %v112
  %136 = vmatprep.subr.bf16.mxu0 0
  %137 = vmatpush1.bf16.msra.mxu0 %v113
  %138 = vmatprep.subr.bf16.mxu0 0
  %139 = vmatpush1.bf16.msra.mxu0 0
  %140 = vmatprep.subr.bf16.mxu0 0
  %141 = vmatpush1.bf16.msra.mxu0 0
  %142 = vmatprep.subr.bf16.mxu0 0
  %143 = vmatpush1.bf16.msra.mxu0 0
  %144 = vmatprep.subr.bf16.mxu0 0
  %145 = vmatpush1.bf16.msra.mxu0 0
  %146 = vmatprep.subr.bf16.mxu0 0
  %147 = vmatpush1.bf16.msra.mxu0 0
  %148 = vmatprep.subr.bf16.mxu0 0
  %149 = vmatpush1.bf16.msra.mxu0 0
  %150 = vmatprep.subr.bf16.mxu0 0
  %151 = vmatpush1.bf16.msra.mxu0 0
  %152 = vmatprep.subr.bf16.mxu0 0
  %153 = vmatpush1.bf16.msra.mxu0 0
  %154 = vmatprep.mubr.bf16.mxu0 0
  %155 = vmatmul.mubr.bf16.gmra.mrb[0].mxu0 %v68
  %v156 = vpop.f32.mrb[0].mxu0
  %v157 = vadd.f32 0.0, %v156
  %v158 = vpop.f32.mrb[0].mxu0
  %v159 = vpop.f32.mrb[0].mxu0
  %v160 = vadd.f32 0.0, %v159
  %v161 = vpop.f32.mrb[0].mxu0
  %162 = vmatprep.mubr.bf16.mxu0 0
  %163 = vmatmul.mubr.bf16.gmra.mrb[0].mxu0 %v69
  %v164 = vpop.f32.mrb[0].mxu0
  %v165 = vadd.f32 0.0, %v164
  %v166 = vpop.f32.mrb[0].mxu0
  %v167 = vpop.f32.mrb[0].mxu0
  %v168 = vadd.f32 0.0, %v167
  %v169 = vpop.f32.mrb[0].mxu0
  %170 = vmatprep.mubr.bf16.mxu0 0
  %171 = vmatmul.mubr.bf16.gmra.mrb[0].mxu0 %v70
  %v172 = vpop.f32.mrb[0].mxu0
  %v173 = vadd.f32 0.0, %v172
  %v174 = vpop.f32.mrb[0].mxu0
  %v175 = vpop.f32.mrb[0].mxu0
  %v176 = vadd.f32 0.0, %v175
  %v177 = vpop.f32.mrb[0].mxu0
  %178 = vdwg.mxu0
  %v179 = vadd.f32 %v28, %v157
  %v180 = vadd.f32 %v29, %v160
  %v181 = vadd.f32 %v30, %v165
  %v182 = vadd.f32 %v31, %v168
  %v183 = vadd.f32 %v32, %v173
  %v184 = vadd.f32 %v33, %v176
  %185 = vst [vmem:[#allocation2] sm:$0xff] %v179
  %186 = vst [vmem:[#allocation2 + $0x8] sm:$0xff] %v180
  %187 = vst [vmem:[#allocation2 + $0x10] sm:$0xff] %v181
  %188 = vst [vmem:[#allocation2 + $0x18] sm:$0xff] %v182
  %189 = vst [vmem:[#allocation2 + $0x20] sm:$0xff] %v183
  %190 = vst [vmem:[#allocation2 + $0x28] sm:$0xff] %v184
  // Predicated region
  $region22: #{vit_forward.8} parent=0 // pred_check
    %p191 = pneg %p18
  $region23: #{vit_forward.8} parent=0 // pred_check_branch
    %193 = sbr.rel (%p191) target = $region25
  $region24: #{vit_forward.8} parent=0 // pred_region
    %v194 = vld [vmem:[#allocation2] sm:$0xff]
    %v195 = vld [vmem:[#allocation2 + $0x8] sm:$0xff]
    %v196 = vld [vmem:[#allocation2 + $0x10] sm:$0xff]
    %v197 = vld [vmem:[#allocation2 + $0x18] sm:$0xff]
    %v198 = vld [vmem:[#allocation2 + $0x20] sm:$0xff]
    %v199 = vld [vmem:[#allocation2 + $0x28] sm:$0xff]
    %v200 = vld [vmem:[%s2] sm:$0x1]
    %v202 = vlaneseq
    %v203 = vshrl.u32 %v202, 7
    %v204 = vsub.s32 0, %v203
    %v205 = vrot.slane %v200, %v204
    %v207 = vadd.f32 %v194, %v205
    %v208 = vadd.f32 %v195, %v205
    %v209 = vadd.f32 %v196, %v205
    %v210 = vadd.f32 %v197, %v205
    %v211 = vadd.f32 %v198, %v205
    %v212 = vadd.f32 %v199, %v205
    %v213 = vld [vmem:[%s3] sm:$0xff]
    %v214 = vld [vmem:[%s3 + $0x8] sm:$0xff]
    %v215 = vld [vmem:[%s3 + $0x10] sm:$0xff]
    %v216 = vld [vmem:[%s3 + $0x18] sm:$0xff]
    %v217 = vld [vmem:[%s3 + $0x20] sm:$0xff]
    %v218 = vld [vmem:[%s3 + $0x28] sm:$0xff]
    %v219 = vadd.f32 %v207, %v213
    %v220 = vadd.f32 %v208, %v214
    %v221 = vadd.f32 %v209, %v215
    %v222 = vadd.f32 %v210, %v216
    %v223 = vadd.f32 %v211, %v217
    %v224 = vadd.f32 %v212, %v218
    %v225 = vpack.c.bf16 %v220, %v219
    %v226 = vpack.c.bf16 %v222, %v221
    %v227 = vpack.c.bf16 %v224, %v223
    %v231 = vunpack.c.l.b16 %v225
    %v232 = vunpack.c.h.b16 %v225
    %v233 = vunpack.c.l.b16 %v226
    %v234 = vunpack.c.h.b16 %v226
    %v235 = vunpack.c.l.b16 %v227
    %v236 = vunpack.c.h.b16 %v227
    %v237 = vpack.c.b16 %v231, %v231
    %v238 = vpack.c.b16 %v232, %v232
    %v239 = vpack.c.b16 %v233, %v233
    %v240 = vpack.c.b16 %v234, %v234
    %v241 = vpack.c.b16 %v235, %v235
    %v242 = vpack.c.b16 %v236, %v236
    %249 = vst [vmem:[%s4] sm:$0xf] %v237
    %250 = vst [vmem:[%s4 + $0x4] sm:$0xf] %v238
    %251 = vst [vmem:[%s4 + $0x8] sm:$0xf] %v239
    %252 = vst [vmem:[%s4 + $0xc] sm:$0xf] %v240
    %253 = vst [vmem:[%s4 + $0x10] sm:$0xf] %v241
    %254 = vst [vmem:[%s4 + $0x14] sm:$0xf] %v242
  $region25: #{vit_forward.8} parent=0 // pred_fallthru
    _
  // Predicated region
  $region26: #{vit_forward.8} parent=0 // pred_check
    _
  $region27: #{vit_forward.8} parent=0 // pred_check_branch
    %256 = sbr.rel (0) target = $region29
  $region28: #{vit_forward.8} parent=0 // pred_region
    _
  $region29: #{vit_forward.8} parent=0 // pred_fallthru
    _
  // Predicated region
  $region30: #{vit_forward.8} parent=0 // pred_check
    _
  $region31: #{vit_forward.8} parent=0 // pred_check_branch
    %258 = sbr.rel (0) target = $region33
  $region32: #{vit_forward.8} parent=0 // pred_region
    _
  $region33: #{vit_forward.8} parent=0 // pred_fallthru
    _

// kernel: vit_forward.9
$region0: #{vit_forward.9}
  #allocation0 [shape = 'u32[]', space=smem, size = 0x4, offset = 0x4, fixed_abs, tag = 'smem constant byte address 0x4 - core index']
  #allocation1 [shape = 'u32[144,128]{1,0:T(1,128)}', space=vmem, size = 0x12000, scoped, tag = 'internal scratch']
  #allocation2 [shape = 'bf16[48,128]{1,0:T(16,128)(2,1)}', space=vmem, size = 0x3000, scoped, tag = 'scratch operand']
  %s0 = inlined_call_operand.vmem [shape: bf16[48,128], index: 0, kind: input, shape index: {}]
  %s1 = inlined_call_operand.vmem [shape: f32[1,128], index: 1, kind: input, shape index: {}]
  %s2 = inlined_call_operand.vmem [shape: f32[1,128], index: 2, kind: input, shape index: {}]
  %s3 = inlined_call_operand.vmem [shape: bf16[128,384], index: 3, kind: input, shape index: {}]
  %s4 = inlined_call_operand.vmem [shape: f32[1,384], index: 4, kind: input, shape index: {}]
  %s5 = inlined_call_operand.vmem [shape: bf16[48,384], index: 5, kind: output, shape index: {}]
  %s6 = sld [smem:[#allocation0]]
  $region135: #{vit_forward.9} parent=0
    _
  %s8 = ssub.s32 1, %s6
  %s9 = scalar_select 0, %s8, %s6
  $region1: #{vit_forward.9} parent=0
    #allocation3 [shape = 'u8[65536]{0}', space=vmem, size = 0x10000, scoped, tag = 'input window, operand 3']
    #allocation4 [shape = 'u8[24576]{0}', space=vmem, size = 0x6000, scoped, tag = 'output window, operand 0']
    loop: start=0, step=1, limit=5
    $region2: #{vit_forward.9} parent=1 // loop_pre_header
      _
    $region3: #{vit_forward.9} parent=1 // loop_header
      %s11 = sphi 0, %s15
      %p12 = scmp.ge.s32.totalorder %s11, 5
      %s18 = sphi 0, %s30
      %s19 = sphi 0, %s26
      %s20 = sphi 0, %s18
      %s21 = sphi 0, %s19
      %s22 = sphi 0, %s20
      %s23 = sphi 0, %s21
      %s33 = sphi 0, %s35
      %s36 = sphi 0, %s33
      %s37 = sphi 0, %s36
      %s53 = sphi 0, %s37
      %s57 = sphi 0, %s57
      %s59 = sphi 0, %s57
      %s60 = sphi 0, %s59
      %s74 = sphi 0, %s60
      %s78 = sphi 0, %s78
      %s80 = sphi 0, %s78
      %s81 = sphi 0, %s80
      %s95 = sphi 0, %s81
      %s101 = sphi 0, %s103
      %s104 = sphi 0, %s101
      %s105 = sphi 0, %s104
      %s121 = sphi 0, %s105
      %s127 = sphi 0, %s129
      %s130 = sphi 0, %s127
      %s131 = sphi 0, %s130
      %s147 = sphi 0, %s131
      %s155 = sphi 0, %s157
      %s158 = sphi 0, %s155
      %s159 = sphi 0, %s158
      %s175 = sphi 0, %s159
    $region4: #{vit_forward.9} parent=1 // loop_header_branch
      %14 = sbr.rel (%p12) target = $region8
    $region5: #{vit_forward.9} parent=1 // loop_body
      %s16 = ssub.s32 %s11, 1
      %s17 = ssub.s32 %s11, 2
      %s24 = sadd.s32 1, %s19
      %p25 = scmp.ge.s32.totalorder %s24, 3
      %s26 = scalar_select %p25, 0, %s24
      %s27 = sadd.s32 1, %s18
      %s28 = scalar_select %p25, %s27, %s18
      %p29 = scmp.ge.s32.totalorder %s28, 1
      %s30 = scalar_select %p29, 0, %s28
      %s31 = ssub.s32 %s18, %s30
      %p32 = scmp.eq.s32.totalorder %s31, 0
      %s34 = sadd.s32 %s33, 1
      %s35 = scalar_select %p32, %s33, %s34
      %p38 = pneg %p32
      %p39 = scmp.eq.s32.totalorder %s11, 2
      %p40 = por %p38, %p39
      %p41 = scmp.ne.s32.totalorder %s33, %s36
      %p42 = scmp.eq.s32.totalorder %s11, 0
      %p43 = por %p41, %p42
      %p44 = scmp.ne.s32.totalorder %s33, %s36
      %p45 = scmp.eq.s32.totalorder %s16, 2
      %p46 = por %p44, %p45
      %p47 = scmp.ne.s32.totalorder %s36, %s37
      %p48 = scmp.eq.s32.totalorder %s16, 0
      %p49 = por %p47, %p48
      %p50 = scmp.ne.s32.totalorder %s36, %s37
      %p51 = scmp.eq.s32.totalorder %s17, 2
      %p52 = por %p50, %p51
      %p54 = scmp.ne.s32.totalorder %s37, %s53
      %p55 = scmp.eq.s32.totalorder %s17, 0
      %p56 = por %p54, %p55
      %s58 = sadd.s32 %s57, 1
      %p61 = scmp.eq.s32.totalorder %s11, 2
      %p62 = scmp.ne.s32.totalorder %s57, %s59
      %p63 = scmp.eq.s32.totalorder %s11, 0
      %p64 = por %p62, %p63
      %p65 = scmp.ne.s32.totalorder %s57, %s59
      %p66 = scmp.eq.s32.totalorder %s16, 2
      %p67 = por %p65, %p66
      %p68 = scmp.ne.s32.totalorder %s59, %s60
      %p69 = scmp.eq.s32.totalorder %s16, 0
      %p70 = por %p68, %p69
      %p71 = scmp.ne.s32.totalorder %s59, %s60
      %p72 = scmp.eq.s32.totalorder %s17, 2
      %p73 = por %p71, %p72
      %p75 = scmp.ne.s32.totalorder %s60, %s74
      %p76 = scmp.eq.s32.totalorder %s17, 0
      %p77 = por %p75, %p76
      %s79 = sadd.s32 %s78, 1
      %p82 = scmp.eq.s32.totalorder %s11, 2
      %p83 = scmp.ne.s32.totalorder %s78, %s80
      %p84 = scmp.eq.s32.totalorder %s11, 0
      %p85 = por %p83, %p84
      %p86 = scmp.ne.s32.totalorder %s78, %s80
      %p87 = scmp.eq.s32.totalorder %s16, 2
      %p88 = por %p86, %p87
      %p89 = scmp.ne.s32.totalorder %s80, %s81
      %p90 = scmp.eq.s32.totalorder %s16, 0
      %p91 = por %p89, %p90
      %p92 = scmp.ne.s32.totalorder %s80, %s81
      %p93 = scmp.eq.s32.totalorder %s17, 2
      %p94 = por %p92, %p93
      %p96 = scmp.ne.s32.totalorder %s81, %s95
      %p97 = scmp.eq.s32.totalorder %s17, 0
      %p98 = por %p96, %p97
      %s99 = ssub.s32 %s19, %s26
      %p100 = scmp.eq.s32.totalorder %s99, 0
      %s102 = sadd.s32 %s101, 1
      %s103 = scalar_select %p100, %s101, %s102
      %p106 = pneg %p100
      %p107 = scmp.eq.s32.totalorder %s11, 2
      %p108 = por %p106, %p107
      %p109 = scmp.ne.s32.totalorder %s101, %s104
      %p110 = scmp.eq.s32.totalorder %s11, 0
      %p111 = por %p109, %p110
      %p112 = scmp.ne.s32.totalorder %s101, %s104
      %p113 = scmp.eq.s32.totalorder %s16, 2
      %p114 = por %p112, %p113
      %p115 = scmp.ne.s32.totalorder %s104, %s105
      %p116 = scmp.eq.s32.totalorder %s16, 0
      %p117 = por %p115, %p116
      %p118 = scmp.ne.s32.totalorder %s104, %s105
      %p119 = scmp.eq.s32.totalorder %s17, 2
      %p120 = por %p118, %p119
      %p122 = scmp.ne.s32.totalorder %s105, %s121
      %p123 = scmp.eq.s32.totalorder %s17, 0
      %p124 = por %p122, %p123
      %s125 = ssub.s32 %s19, %s26
      %p126 = scmp.eq.s32.totalorder %s125, 0
      %s128 = sadd.s32 %s127, 1
      %s129 = scalar_select %p126, %s127, %s128
      %p132 = pneg %p126
      %p133 = scmp.eq.s32.totalorder %s11, 2
      %p134 = por %p132, %p133
      %p135 = scmp.ne.s32.totalorder %s127, %s130
      %p136 = scmp.eq.s32.totalorder %s11, 0
      %p137 = por %p135, %p136
      %p138 = scmp.ne.s32.totalorder %s127, %s130
      %p139 = scmp.eq.s32.totalorder %s16, 2
      %p140 = por %p138, %p139
      %p141 = scmp.ne.s32.totalorder %s130, %s131
      %p142 = scmp.eq.s32.totalorder %s16, 0
      %p143 = por %p141, %p142
      %p144 = scmp.ne.s32.totalorder %s130, %s131
      %p145 = scmp.eq.s32.totalorder %s17, 2
      %p146 = por %p144, %p145
      %p148 = scmp.ne.s32.totalorder %s131, %s147
      %p149 = scmp.eq.s32.totalorder %s17, 0
      %p150 = por %p148, %p149
      %s151 = ssub.s32 %s18, %s30
      %s152 = ssub.s32 %s19, %s26
      %s153 = sor.u32 %s151, %s152
      %p154 = scmp.eq.s32.totalorder %s153, 0
      %s156 = sadd.s32 %s155, 1
      %s157 = scalar_select %p154, %s155, %s156
      %p160 = pneg %p154
      %p161 = scmp.eq.s32.totalorder %s11, 2
      %p162 = por %p160, %p161
      %p163 = scmp.ne.s32.totalorder %s155, %s158
      %p164 = scmp.eq.s32.totalorder %s11, 0
      %p165 = por %p163, %p164
      %p166 = scmp.ne.s32.totalorder %s155, %s158
      %p167 = scmp.eq.s32.totalorder %s16, 2
      %p168 = por %p166, %p167
      %p169 = scmp.ne.s32.totalorder %s158, %s159
      %p170 = scmp.eq.s32.totalorder %s16, 0
      %p171 = por %p169, %p170
      %p172 = scmp.ne.s32.totalorder %s158, %s159
      %p173 = scmp.eq.s32.totalorder %s17, 2
      %p174 = por %p172, %p173
      %p176 = scmp.ne.s32.totalorder %s159, %s175
      %p177 = scmp.eq.s32.totalorder %s17, 0
      %p178 = por %p176, %p177
      %p179 = scmp.le.s32.totalorder 1, %s11
      %p180 = scmp.lt.s32.totalorder %s11, 4
      %p181 = pnand %p179, %p180
      %p182 = pneg %p181
      // Predicated region
      $region9: #{vit_forward.9} parent=5 // pred_check
        _
      $region10: #{vit_forward.9} parent=5 // pred_check_branch
        %184 = sbr.rel (%p181) target = $region12
      $region11: #{vit_forward.9} parent=5 // pred_region
        %s185 = ssub.s32 %s11, 1
        // Predicated region
        $region13: #{vit_forward.9} parent=11 // pred_check
          %p186 = pneg %p49
        $region14: #{vit_forward.9} parent=11 // pred_check_branch
          %188 = sbr.rel (%p186) target = $region16
        $region15: #{vit_forward.9} parent=11 // pred_region
          %s189 = smul.u32 6, %s20
          %p190 = scmp.lt.s32.totalorder %s189, 5
          %s191 = scalar_select %p190, %s189, 5
          %s192 = smul.addr %s191, 4
          %s193 = scalar_lea.vmem %s0, %s192
          %s194 = smul.u32 6, %s20
        $region16: #{vit_forward.9} parent=11 // pred_fallthru
          _
        // Predicated region
        $region17: #{vit_forward.9} parent=11 // pred_check
          %p195 = pneg %p70
        $region18: #{vit_forward.9} parent=11 // pred_check_branch
          %197 = sbr.rel (%p195) target = $region20
        $region19: #{vit_forward.9} parent=11 // pred_region
          _
        $region20: #{vit_forward.9} parent=11 // pred_fallthru
          _
        // Predicated region
        $region21: #{vit_forward.9} parent=11 // pred_check
          %p198 = pneg %p91
        $region22: #{vit_forward.9} parent=11 // pred_check_branch
          %200 = sbr.rel (%p198) target = $region24
        $region23: #{vit_forward.9} parent=11 // pred_region
          _
        $region24: #{vit_forward.9} parent=11 // pred_fallthru
          _
      $region12: #{vit_forward.9} parent=5 // pred_fallthru
        _
      %p201 = scmp.lt.s32.totalorder %s11, 3
      // Predicated region
      $region25: #{vit_forward.9} parent=5 // pred_check
        %p202 = pneg %p201
      $region26: #{vit_forward.9} parent=5 // pred_check_branch
        %204 = sbr.rel (%p202) target = $region28
      $region27: #{vit_forward.9} parent=5 // pred_region
        // Predicated region
        $region29: #{vit_forward.9} parent=27 // pred_check
          %p205 = pneg %p111
        $region30: #{vit_forward.9} parent=27 // pred_check_branch
          %207 = sbr.rel (%p205) target = $region32
        $region31: #{vit_forward.9} parent=27 // pred_region
          %s208 = sand.u32 %s101, 1
          %s209 = sand.u32 %s101, 1
          %s210 = smul.addr %s209, 64
          %s211 = scalar_lea.vmem [#allocation3], %s210
          %s212 = smul.addr %s19, 4
          %s213 = scalar_lea.vmem %s3, %s212
          // Predicated region
          $region33: #{vit_forward.9} parent=31 // pred_check
            _
          $region34: #{vit_forward.9} parent=31 // pred_check_branch
            %215 = sbr.rel (0) target = $region36
          $region35: #{vit_forward.9} parent=31 // pred_region
            // Predicated region
            $region37: #{vit_forward.9} parent=35 // pred_check
              _
            $region38: #{vit_forward.9} parent=35 // pred_check_branch
              %217 = sbr.rel target = $region40
            $region39: #{vit_forward.9} parent=35 // pred_region
              // Predicated region
              $region52: #{vit_forward.9} parent=39 // pred_check
                _
              $region53: #{vit_forward.9} parent=39 // pred_check_branch
                %262 = sbr.rel (0) target = $region55
              $region54: #{vit_forward.9} parent=39 // pred_region
                loop: start=0, step=1, limit=1
                $region56: #{vit_forward.9} parent=54 // loop_pre_header
                  _
                $region57: #{vit_forward.9} parent=54 // loop_header
                  %s264 = sphi 0, %s268
                  %p265 = scmp.ge.s32.totalorder %s264, 1
                  %s269 = sphi %s213, %s213
                  %s270 = sphi %s211, %s211
                $region58: #{vit_forward.9} parent=54 // loop_header_branch
                  %267 = sbr.rel (%p265) target = $region62
                $region59: #{vit_forward.9} parent=54 // loop_body
                  _
                $region60: #{vit_forward.9} parent=54 // loop_footer
                  %s268 = sadd.s32 1, %s264
                $region61: #{vit_forward.9} parent=54 // loop_footer_branch
                  %263 = sbr.rel target = $region57
                $region62: #{vit_forward.9} parent=54 // loop_exit
                  _
                loop: start=0, step=1, limit=1
                $region63: #{vit_forward.9} parent=54 // loop_pre_header
                  _
                $region64: #{vit_forward.9} parent=54 // loop_header
                  %s273 = sphi 0, %s277
                  %p274 = scmp.ge.s32.totalorder %s273, 1
                  %s278 = sphi %s213, %s213
                  %s279 = sphi %s211, %s211
                $region65: #{vit_forward.9} parent=54 // loop_header_branch
                  %276 = sbr.rel (%p274) target = $region69
                $region66: #{vit_forward.9} parent=54 // loop_body
                  %v280 = vld [vmem:[%s278] sm:$0xf]
                  %281 = vst [vmem:[%s279] sm:$0xf] %v280
                  %v282 = vld [vmem:[%s278 + $0xc] sm:$0xf]
                  %283 = vst [vmem:[%s279 + $0x4] sm:$0xf] %v282
                  %v284 = vld [vmem:[%s278 + $0x18] sm:$0xf]
                  %285 = vst [vmem:[%s279 + $0x8] sm:$0xf] %v284
                  %v286 = vld [vmem:[%s278 + $0x24] sm:$0xf]
                  %287 = vst [vmem:[%s279 + $0xc] sm:$0xf] %v286
                  %v288 = vld [vmem:[%s278 + $0x30] sm:$0xf]
                  %289 = vst [vmem:[%s279 + $0x10] sm:$0xf] %v288
                  %v290 = vld [vmem:[%s278 + $0x3c] sm:$0xf]
                  %291 = vst [vmem:[%s279 + $0x14] sm:$0xf] %v290
                  %v292 = vld [vmem:[%s278 + $0x48] sm:$0xf]
                  %293 = vst [vmem:[%s279 + $0x18] sm:$0xf] %v292
                  %v294 = vld [vmem:[%s278 + $0x54] sm:$0xf]
                  %295 = vst [vmem:[%s279 + $0x1c] sm:$0xf] %v294
                  %v296 = vld [vmem:[%s278 + $0x60] sm:$0xf]
                  %297 = vst [vmem:[%s279 + $0x20] sm:$0xf] %v296
                  %v298 = vld [vmem:[%s278 + $0x6c] sm:$0xf]
                  %299 = vst [vmem:[%s279 + $0x24] sm:$0xf] %v298
                  %v300 = vld [vmem:[%s278 + $0x78] sm:$0xf]
                  %301 = vst [vmem:[%s279 + $0x28] sm:$0xf] %v300
                  %v302 = vld [vmem:[%s278 + $0x84] sm:$0xf]
                  %303 = vst [vmem:[%s279 + $0x2c] sm:$0xf] %v302
                  %v304 = vld [vmem:[%s278 + $0x90] sm:$0xf]
                  %305 = vst [vmem:[%s279 + $0x30] sm:$0xf] %v304
                  %v306 = vld [vmem:[%s278 + $0x9c] sm:$0xf]
                  %307 = vst [vmem:[%s279 + $0x34] sm:$0xf] %v306
                  %v308 = vld [vmem:[%s278 + $0xa8] sm:$0xf]
                  %309 = vst [vmem:[%s279 + $0x38] sm:$0xf] %v308
                  %v310 = vld [vmem:[%s278 + $0xb4] sm:$0xf]
                  %311 = vst [vmem:[%s279 + $0x3c] sm:$0xf] %v310
                $region67: #{vit_forward.9} parent=54 // loop_footer
                  %s277 = sadd.s32 1, %s273
                $region68: #{vit_forward.9} parent=54 // loop_footer_branch
                  %272 = sbr.rel target = $region64
                $region69: #{vit_forward.9} parent=54 // loop_exit
                  _
              $region55: #{vit_forward.9} parent=39 // pred_fallthru
                _
            $region40: #{vit_forward.9} parent=35 // pred_fallthru
              _
            // Predicated region
            $region41: #{vit_forward.9} parent=35 // pred_check
              _
            $region42: #{vit_forward.9} parent=35 // pred_check_branch
              %219 = sbr.rel (0) target = $region44
            $region43: #{vit_forward.9} parent=35 // pred_region
              loop: start=0, step=1, limit=1
              $region45: #{vit_forward.9} parent=43 // loop_pre_header
                _
              $region46: #{vit_forward.9} parent=43 // loop_header
                %s222 = sphi 0, %s226
                %p223 = scmp.ge.s32.totalorder %s222, 1
                %s227 = sphi %s213, %s213
                %s228 = sphi %s211, %s211
              $region47: #{vit_forward.9} parent=43 // loop_header_branch
                %225 = sbr.rel (%p223) target = $region51
              $region48: #{vit_forward.9} parent=43 // loop_body
                %v229 = vld [vmem:[%s227] sm:$0xf]
                %230 = vst [vmem:[%s228] sm:$0xf] %v229
                %v231 = vld [vmem:[%s227 + $0xc] sm:$0xf]
                %232 = vst [vmem:[%s228 + $0x4] sm:$0xf] %v231
                %v233 = vld [vmem:[%s227 + $0x18] sm:$0xf]
                %234 = vst [vmem:[%s228 + $0x8] sm:$0xf] %v233
                %v235 = vld [vmem:[%s227 + $0x24] sm:$0xf]
                %236 = vst [vmem:[%s228 + $0xc] sm:$0xf] %v235
                %v237 = vld [vmem:[%s227 + $0x30] sm:$0xf]
                %238 = vst [vmem:[%s228 + $0x10] sm:$0xf] %v237
                %v239 = vld [vmem:[%s227 + $0x3c] sm:$0xf]
                %240 = vst [vmem:[%s228 + $0x14] sm:$0xf] %v239
                %v241 = vld [vmem:[%s227 + $0x48] sm:$0xf]
                %242 = vst [vmem:[%s228 + $0x18] sm:$0xf] %v241
                %v243 = vld [vmem:[%s227 + $0x54] sm:$0xf]
                %244 = vst [vmem:[%s228 + $0x1c] sm:$0xf] %v243
                %v245 = vld [vmem:[%s227 + $0x60] sm:$0xf]
                %246 = vst [vmem:[%s228 + $0x20] sm:$0xf] %v245
                %v247 = vld [vmem:[%s227 + $0x6c] sm:$0xf]
                %248 = vst [vmem:[%s228 + $0x24] sm:$0xf] %v247
                %v249 = vld [vmem:[%s227 + $0x78] sm:$0xf]
                %250 = vst [vmem:[%s228 + $0x28] sm:$0xf] %v249
                %v251 = vld [vmem:[%s227 + $0x84] sm:$0xf]
                %252 = vst [vmem:[%s228 + $0x2c] sm:$0xf] %v251
                %v253 = vld [vmem:[%s227 + $0x90] sm:$0xf]
                %254 = vst [vmem:[%s228 + $0x30] sm:$0xf] %v253
                %v255 = vld [vmem:[%s227 + $0x9c] sm:$0xf]
                %256 = vst [vmem:[%s228 + $0x34] sm:$0xf] %v255
                %v257 = vld [vmem:[%s227 + $0xa8] sm:$0xf]
                %258 = vst [vmem:[%s228 + $0x38] sm:$0xf] %v257
                %v259 = vld [vmem:[%s227 + $0xb4] sm:$0xf]
                %260 = vst [vmem:[%s228 + $0x3c] sm:$0xf] %v259
              $region49: #{vit_forward.9} parent=43 // loop_footer
                %s226 = sadd.s32 1, %s222
              $region50: #{vit_forward.9} parent=43 // loop_footer_branch
                %221 = sbr.rel target = $region46
              $region51: #{vit_forward.9} parent=43 // loop_exit
                _
            $region44: #{vit_forward.9} parent=35 // pred_fallthru
              _
          $region36: #{vit_forward.9} parent=31 // pred_fallthru
            _
          %312 = vnop
        $region32: #{vit_forward.9} parent=27 // pred_fallthru
          _
        // Predicated region
        $region70: #{vit_forward.9} parent=27 // pred_check
          %p313 = pneg %p137
        $region71: #{vit_forward.9} parent=27 // pred_check_branch
          %315 = sbr.rel (%p313) target = $region73
        $region72: #{vit_forward.9} parent=27 // pred_region
          %p316 = scmp.lt.s32.totalorder %s19, 2
          %s317 = scalar_select %p316, %s19, 2
          %s318 = scalar_lea.vmem %s4, %s317
        $region73: #{vit_forward.9} parent=27 // pred_fallthru
          _
      $region28: #{vit_forward.9} parent=5 // pred_fallthru
        _
      %p319 = scmp.le.s32.totalorder 1, %s11
      %p320 = scmp.lt.s32.totalorder %s11, 4
      %p321 = pnand %p319, %p320
      %p322 = pneg %p321
      // Predicated region
      $region74: #{vit_forward.9} parent=5 // pred_check
        _
      $region75: #{vit_forward.9} parent=5 // pred_check_branch
        %324 = sbr.rel (%p321) target = $region77
      $region76: #{vit_forward.9} parent=5 // pred_region
        %s325 = ssub.s32 %s11, 1
        %s326 = sand.u32 %s104, 1
        %s327 = sand.u32 %s104, 1
        %s328 = smul.addr %s327, 64
        %s329 = scalar_lea.vmem [#allocation3], %s328
        // Predicated region
        $region78: #{vit_forward.9} parent=76 // pred_check
          %p330 = pneg %p117
        $region79: #{vit_forward.9} parent=76 // pred_check_branch
          %332 = sbr.rel (%p330) target = $region81
        $region80: #{vit_forward.9} parent=76 // pred_region
          _
        $region81: #{vit_forward.9} parent=76 // pred_fallthru
          _
        %s333 = smul.u32 6, %s20
        %p334 = scmp.lt.s32.totalorder %s333, 5
        %s335 = scalar_select %p334, %s333, 5
        %s336 = smul.addr %s335, 4
        %s337 = scalar_lea.vmem %s0, %s336
        %p338 = pneg %p49
        %p339 = pneg %p46
        %p340 = pneg %p70
        %p341 = pneg %p67
        %p342 = pneg %p91
        %p343 = pneg %p88
        %s344 = sand.u32 %s104, 1
        %s345 = sand.u32 %s104, 1
        %s346 = smul.addr %s345, 64
        %s347 = scalar_lea.vmem [#allocation3], %s346
        %p348 = pneg %p117
        %p349 = pneg %p114
        %p350 = scmp.lt.s32.totalorder %s21, 2
        %s351 = scalar_select %p350, %s21, 2
        %s352 = scalar_lea.vmem %s4, %s351
        %p353 = pneg %p143
        %p354 = pneg %p140
        %p355 = pneg %p171
        %p356 = pneg %p168
        %s357 = sand.u32 %s158, 1
        %s358 = sand.u32 %s158, 1
        %s359 = smul.addr %s358, 24
        %s360 = scalar_lea.vmem [#allocation4], %s359
        %s361 = smul.u32 6, %s20
        %p362 = scmp.lt.s32.totalorder %s361, 5
        %s363 = scalar_select %p362, %s361, 5
        %s364 = smul.addr %s363, 4
        %s365 = scalar_lea.vmem %s0, %s364
        %s366 = smul.u32 6, %s20
        %p367 = scmp.lt.s32.totalorder %s21, 2
        %s368 = scalar_select %p367, %s21, 2
        %s369 = scalar_lea.vmem %s4, %s368
        %s370 = smul.u32 6, %s20
        %p372 = scmp.eq.s32.totalorder %s21, 0
        // Predicated region
        $region82: #{vit_forward.9} parent=76 // pred_check
          %p373 = pneg %p372
        $region83: #{vit_forward.9} parent=76 // pred_check_branch
          %375 = sbr.rel (%p373) target = $region85
        $region84: #{vit_forward.9} parent=76 // pred_region
          %v376 = vld [vmem:[%s365] sm:$0xf]
          %v377 = vld [vmem:[%s365 + $0x4] sm:$0xf]
          %v378 = vld [vmem:[%s365 + $0x8] sm:$0xf]
          %v379 = vld [vmem:[%s365 + $0xc] sm:$0xf]
          %v380 = vld [vmem:[%s365 + $0x10] sm:$0xf]
          %v381 = vld [vmem:[%s365 + $0x14] sm:$0xf]
          %v382 = vunpack.c.l.bf16 %v376
          %v383 = vunpack.c.l.bf16 %v377
          %v384 = vunpack.c.l.bf16 %v378
          %v385 = vunpack.c.l.bf16 %v379
          %v386 = vunpack.c.l.bf16 %v380
          %v387 = vunpack.c.l.bf16 %v381
          %388 = vadd.xlane.f32.xlu0 %v382
          %v389 = vpop.xlane.xlu0 %388
          %390 = vadd.xlane.f32.xlu0 %v383
          %v391 = vpop.xlane.xlu0 %390
          %392 = vadd.xlane.f32.xlu0 %v384
          %v393 = vpop.xlane.xlu0 %392
          %394 = vadd.xlane.f32.xlu0 %v385
          %v395 = vpop.xlane.xlu0 %394
          %396 = vadd.xlane.f32.xlu0 %v386
          %v397 = vpop.xlane.xlu0 %396
          %398 = vadd.xlane.f32.xlu0 %v387
          %v399 = vpop.xlane.xlu0 %398
          %v400 = vrcp.pop 128.0
          %v401 = vmul.f32 %v389, %v400
          %v402 = vmul.f32 %v391, %v400
          %v403 = vmul.f32 %v393, %v400
          %v404 = vmul.f32 %v395, %v400
          %v405 = vmul.f32 %v397, %v400
          %v406 = vmul.f32 %v399, %v400
          %v407 = vsub.f32 %v382, %v401
          %v408 = vsub.f32 %v383, %v402
          %v409 = vsub.f32 %v384, %v403
          %v410 = vsub.f32 %v385, %v404
          %v411 = vsub.f32 %v386, %v405
          %v412 = vsub.f32 %v387, %v406
          %v413 = vmul.f32 %v407, %v407
          %v414 = vmul.f32 %v408, %v408
          %v415 = vmul.f32 %v409, %v409
          %v416 = vmul.f32 %v410, %v410
          %v417 = vmul.f32 %v411, %v411
          %v418 = vmul.f32 %v412, %v412
          %419 = vadd.xlane.f32.xlu0 %v413
          %v420 = vpop.xlane.xlu0 %419
          %421 = vadd.xlane.f32.xlu0 %v414
          %v422 = vpop.xlane.xlu0 %421
          %423 = vadd.xlane.f32.xlu0 %v415
          %v424 = vpop.xlane.xlu0 %423
          %425 = vadd.xlane.f32.xlu0 %v416
          %v426 = vpop.xlane.xlu0 %425
          %427 = vadd.xlane.f32.xlu0 %v417
          %v428 = vpop.xlane.xlu0 %427
          %429 = vadd.xlane.f32.xlu0 %v418
          %v430 = vpop.xlane.xlu0 %429
          %v431 = vmul.f32 %v420, %v400
          %v432 = vmul.f32 %v422, %v400
          %v433 = vmul.f32 %v424, %v400
          %v434 = vmul.f32 %v426, %v400
          %v435 = vmul.f32 %v428, %v400
          %v436 = vmul.f32 %v430, %v400
          %v437 = vadd.f32 %v431, 1e-06
          %v438 = vadd.f32 %v432, 1e-06
          %v439 = vadd.f32 %v433, 1e-06
          %v440 = vadd.f32 %v434, 1e-06
          %v441 = vadd.f32 %v435, 1e-06
          %v442 = vadd.f32 %v436, 1e-06
          %v443 = vrsqrt.pop %v437
          %v444 = vrsqrt.pop %v438
          %v445 = vrsqrt.pop %v439
          %v446 = vrsqrt.pop %v440
          %v447 = vrsqrt.pop %v441
          %v448 = vrsqrt.pop %v442
          %v449 = vmul.f32 %v407, %v443
          %v450 = vmul.f32 %v408, %v444
          %v451 = vmul.f32 %v409, %v445
          %v452 = vmul.f32 %v410, %v446
          %v453 = vmul.f32 %v411, %v447
          %v454 = vmul.f32 %v412, %v448
          %v455 = vld [vmem:[%s1] sm:$0x1]
          %v457 = vlaneseq
          %v458 = vshrl.u32 %v457, 7
          %v459 = vsub.s32 0, %v458
          %v460 = vrot.slane %v455, %v459
          %v462 = vmul.f32 %v449, %v460
          %v463 = vmul.f32 %v450, %v460
          %v464 = vmul.f32 %v451, %v460
          %v465 = vmul.f32 %v452, %v460
          %v466 = vmul.f32 %v453, %v460
          %v467 = vmul.f32 %v454, %v460
          %v468 = vld [vmem:[%s2] sm:$0x1]
          %v470 = vlaneseq
          %v471 = vshrl.u32 %v470, 7
          %v472 = vsub.s32 0, %v471
          %v473 = vrot.slane %v468, %v472
          %v475 = vadd.f32 %v462, %v473
          %v476 = vadd.f32 %v463, %v473
          %v477 = vadd.f32 %v464, %v473
          %v478 = vadd.f32 %v465, %v473
          %v479 = vadd.f32 %v466, %v473
          %v480 = vadd.f32 %v467, %v473
          %v481 = vpack.c.bf16 %v476, %v475
          %v482 = vpack.c.bf16 %v478, %v477
          %v483 = vpack.c.bf16 %v480, %v479
          %484 = vst [vmem:[#allocation2] sm:$0xff] %v481
          %485 = vst [vmem:[#allocation2 + $0x8] sm:$0xff] %v482
          %486 = vst [vmem:[#allocation2 + $0x10] sm:$0xff] %v483
        $region85: #{vit_forward.9} parent=76 // pred_fallthru
          _
        %v487 = vld [vmem:[#allocation2] sm:$0xff]
        %v488 = vld [vmem:[#allocation2 + $0x8] sm:$0xff]
        %v489 = vld [vmem:[#allocation2 + $0x10] sm:$0xff]
        %v490 = vld [vmem:[%s329] sm:$0xf]
        %v491 = vld [vmem:[%s329 + $0x4] sm:$0xf]
        %v492 = vld [vmem:[%s329 + $0x8] sm:$0xf]
        %v493 = vld [vmem:[%s329 + $0xc] sm:$0xf]
        %v494 = vld [vmem:[%s329 + $0x10] sm:$0xf]
        %v495 = vld [vmem:[%s329 + $0x14] sm:$0xf]
        %v496 = vld [vmem:[%s329 + $0x18] sm:$0xf]
        %v497 = vld [vmem:[%s329 + $0x1c] sm:$0xf]
        %v498 = vld [vmem:[%s329 + $0x20] sm:$0xf]
        %v499 = vld [vmem:[%s329 + $0x24] sm:$0xf]
        %v500 = vld [vmem:[%s329 + $0x28] sm:$0xf]
        %v501 = vld [vmem:[%s329 + $0x2c] sm:$0xf]
        %v502 = vld [vmem:[%s329 + $0x30] sm:$0xf]
        %v503 = vld [vmem:[%s329 + $0x34] sm:$0xf]
        %v504 = vld [vmem:[%s329 + $0x38] sm:$0xf]
        %v505 = vld [vmem:[%s329 + $0x3c] sm:$0xf]
        %v506 = vld [vmem:[%s369] sm:$0x1]
        %v508 = vlaneseq
        %v509 = vshrl.u32 %v508, 7
        %v510 = vsub.s32 0, %v509
        %v511 = vrot.slane %v506, %v510
        %v529 = vunpack.c.l.b16 %v490
        %v530 = vunpack.c.l.b16 %v491
        %v531 = vunpack.c.l.b16 %v492
        %v532 = vunpack.c.l.b16 %v493
        %v533 = vunpack.c.l.b16 %v494
        %v534 = vunpack.c.l.b16 %v495
        %v535 = vunpack.c.l.b16 %v496
        %v536 = vunpack.c.l.b16 %v497
        %v537 = vunpack.c.l.b16 %v498
        %v538 = vunpack.c.l.b16 %v499
        %v539 = vunpack.c.l.b16 %v500
        %v540 = vunpack.c.l.b16 %v501
        %v541 = vunpack.c.l.b16 %v502
        %v542 = vunpack.c.l.b16 %v503
        %v543 = vunpack.c.l.b16 %v504
        %v544 = vunpack.c.l.b16 %v505
        %v545 = vpack.c.b16 %v530, %v529
        %v546 = vpack.c.b16 %v532, %v531
        %v547 = vpack.c.b16 %v534, %v533
        %v548 = vpack.c.b16 %v536, %v535
        %v549 = vpack.c.b16 %v538, %v537
        %v550 = vpack.c.b16 %v540, %v539
        %v551 = vpack.c.b16 %v542, %v541
        %v552 = vpack.c.b16 %v544, %v543
        %561 = vmatprep.subr.bf16.mxu0 0
        %562 = vmatpush1.bf16.msra.mxu0 %v545
        %563 = vmatprep.subr.bf16.mxu0 0
        %564 = vmatpush1.bf16.msra.mxu0 %v546
        %565 = vmatprep.subr.bf16.mxu0 0
        %566 = vmatpush1.bf16.msra.mxu0 %v547
        %567 = vmatprep.subr.bf16.mxu0 0
        %568 = vmatpush1.bf16.msra.mxu0 %v548
        %569 = vmatprep.subr.bf16.mxu0 0
        %570 = vmatpush1.bf16.msra.mxu0 %v549
        %571 = vmatprep.subr.bf16.mxu0 0
        %572 = vmatpush1.bf16.msra.mxu0 %v550
        %573 = vmatprep.subr.bf16.mxu0 0
        %574 = vmatpush1.bf16.msra.mxu0 %v551
        %575 = vmatprep.subr.bf16.mxu0 0
        %576 = vmatpush1.bf16.msra.mxu0 %v552
        %577 = vmatprep.subr.bf16.mxu0 0
        %578 = vmatpush1.bf16.msra.mxu0 0
        %579 = vmatprep.subr.bf16.mxu0 0
        %580 = vmatpush1.bf16.msra.mxu0 0
        %581 = vmatprep.subr.bf16.mxu0 0
        %582 = vmatpush1.bf16.msra.mxu0 0
        %583 = vmatprep.subr.bf16.mxu0 0
        %584 = vmatpush1.bf16.msra.mxu0 0
        %585 = vmatprep.subr.bf16.mxu0 0
        %586 = vmatpush1.bf16.msra.mxu0 0
        %587 = vmatprep.subr.bf16.mxu0 0
        %588 = vmatpush1.bf16.msra.mxu0 0
        %589 = vmatprep.subr.bf16.mxu0 0
        %590 = vmatpush1.bf16.msra.mxu0 0
        %591 = vmatprep.subr.bf16.mxu0 0
        %592 = vmatpush1.bf16.msra.mxu0 0
        %593 = vmatprep.mubr.bf16.mxu0 0
        %594 = vmatmul.mubr.bf16.gmra.mrb[0].mxu0 %v487
        %v595 = vpop.f32.mrb[0].mxu0
        %v596 = vadd.f32 %v511, %v595
        %v597 = vpop.f32.mrb[0].mxu0
        %v598 = vpop.f32.mrb[0].mxu0
        %v599 = vadd.f32 %v511, %v598
        %v600 = vpop.f32.mrb[0].mxu0
        %601 = vmatprep.mubr.bf16.mxu0 0
        %602 = vmatmul.mubr.bf16.gmra.mrb[0].mxu0 %v488
        %v603 = vpop.f32.mrb[0].mxu0
        %v604 = vadd.f32 %v511, %v603
        %v605 = vpop.f32.mrb[0].mxu0
        %v606 = vpop.f32.mrb[0].mxu0
        %v607 = vadd.f32 %v511, %v606
        %v608 = vpop.f32.mrb[0].mxu0
        %609 = vmatprep.mubr.bf16.mxu0 0
        %610 = vmatmul.mubr.bf16.gmra.mrb[0].mxu0 %v489
        %v611 = vpop.f32.mrb[0].mxu0
        %v612 = vadd.f32 %v511, %v611
        %v613 = vpop.f32.mrb[0].mxu0
        %v614 = vpop.f32.mrb[0].mxu0
        %v615 = vadd.f32 %v511, %v614
        %v616 = vpop.f32.mrb[0].mxu0
        %617 = vdwg.mxu0
        %v618 = vpack.c.bf16 %v599, %v596
        %v619 = vpack.c.bf16 %v607, %v604
        %v620 = vpack.c.bf16 %v615, %v612
        %v624 = vunpack.c.l.b16 %v618
        %v625 = vunpack.c.h.b16 %v618
        %v626 = vunpack.c.l.b16 %v619
        %v627 = vunpack.c.h.b16 %v619
        %v628 = vunpack.c.l.b16 %v620
        %v629 = vunpack.c.h.b16 %v620
        %v630 = vpack.c.b16 %v624, %v624
        %v631 = vpack.c.b16 %v625, %v625
        %v632 = vpack.c.b16 %v626, %v626
        %v633 = vpack.c.b16 %v627, %v627
        %v634 = vpack.c.b16 %v628, %v628
        %v635 = vpack.c.b16 %v629, %v629
        %642 = vst [vmem:[%s360] sm:$0xf] %v630
        %643 = vst [vmem:[%s360 + $0x4] sm:$0xf] %v631
        %644 = vst [vmem:[%s360 + $0x8] sm:$0xf] %v632
        %645 = vst [vmem:[%s360 + $0xc] sm:$0xf] %v633
        %646 = vst [vmem:[%s360 + $0x10] sm:$0xf] %v634
        %647 = vst [vmem:[%s360 + $0x14] sm:$0xf] %v635
        %s648 = sand.u32 %s158, 1
        %s649 = sand.u32 %s158, 1
        %s650 = smul.addr %s649, 24
        %s651 = scalar_lea.vmem [#allocation4], %s650
        // Predicated region
        $region86: #{vit_forward.9} parent=76 // pred_check
          %p652 = pneg %p168
        $region87: #{vit_forward.9} parent=76 // pred_check_branch
          %654 = sbr.rel (%p652) target = $region89
        $region88: #{vit_forward.9} parent=76 // pred_region
          %s655 = smul.u32 6, %s20
          %s656 = smul.addr %s655, 3
          %s657 = sadd.s32 %s21, %s656
          %s658 = smul.addr %s657, 4
          %s659 = scalar_lea.vmem %s5, %s658
          // Predicated region
          $region90: #{vit_forward.9} parent=88 // pred_check
            _
          $region91: #{vit_forward.9} parent=88 // pred_check_branch
            %661 = sbr.rel (0) target = $region93
          $region92: #{vit_forward.9} parent=88 // pred_region
            // Predicated region
            $region94: #{vit_forward.9} parent=92 // pred_check
              _
            $region95: #{vit_forward.9} parent=92 // pred_check_branch
              %663 = sbr.rel target = $region97
            $region96: #{vit_forward.9} parent=92 // pred_region
              // Predicated region
              $region109: #{vit_forward.9} parent=96 // pred_check
                _
              $region110: #{vit_forward.9} parent=96 // pred_check_branch
                %688 = sbr.rel (0) target = $region112
              $region111: #{vit_forward.9} parent=96 // pred_region
                loop: start=0, step=1, limit=1
                $region113: #{vit_forward.9} parent=111 // loop_pre_header
                  _
                $region114: #{vit_forward.9} parent=111 // loop_header
                  %s690 = sphi 0, %s694
                  %p691 = scmp.ge.s32.totalorder %s690, 1
                  %s695 = sphi %s651, %s651
                  %s696 = sphi %s659, %s659
                $region115: #{vit_forward.9} parent=111 // loop_header_branch
                  %693 = sbr.rel (%p691) target = $region119
                $region116: #{vit_forward.9} parent=111 // loop_body
                  _
                $region117: #{vit_forward.9} parent=111 // loop_footer
                  %s694 = sadd.s32 1, %s690
                $region118: #{vit_forward.9} parent=111 // loop_footer_branch
                  %689 = sbr.rel target = $region114
                $region119: #{vit_forward.9} parent=111 // loop_exit
                  _
                loop: start=0, step=1, limit=1
                $region120: #{vit_forward.9} parent=111 // loop_pre_header
                  _
                $region121: #{vit_forward.9} parent=111 // loop_header
                  %s699 = sphi 0, %s703
                  %p700 = scmp.ge.s32.totalorder %s699, 1
                  %s704 = sphi %s651, %s651
                  %s705 = sphi %s659, %s659
                $region122: #{vit_forward.9} parent=111 // loop_header_branch
                  %702 = sbr.rel (%p700) target = $region126
                $region123: #{vit_forward.9} parent=111 // loop_body
                  %v706 = vld [vmem:[%s704] sm:$0xf]
                  %707 = vst [vmem:[%s705] sm:$0xf] %v706
                  %v708 = vld [vmem:[%s704 + $0x4] sm:$0xf]
                  %709 = vst [vmem:[%s705 + $0xc] sm:$0xf] %v708
                  %v710 = vld [vmem:[%s704 + $0x8] sm:$0xf]
                  %711 = vst [vmem:[%s705 + $0x18] sm:$0xf] %v710
                  %v712 = vld [vmem:[%s704 + $0xc] sm:$0xf]
                  %713 = vst [vmem:[%s705 + $0x24] sm:$0xf] %v712
                  %v714 = vld [vmem:[%s704 + $0x10] sm:$0xf]
                  %715 = vst [vmem:[%s705 + $0x30] sm:$0xf] %v714
                  %v716 = vld [vmem:[%s704 + $0x14] sm:$0xf]
                  %717 = vst [vmem:[%s705 + $0x3c] sm:$0xf] %v716
                $region124: #{vit_forward.9} parent=111 // loop_footer
                  %s703 = sadd.s32 1, %s699
                $region125: #{vit_forward.9} parent=111 // loop_footer_branch
                  %698 = sbr.rel target = $region121
                $region126: #{vit_forward.9} parent=111 // loop_exit
                  _
              $region112: #{vit_forward.9} parent=96 // pred_fallthru
                _
            $region97: #{vit_forward.9} parent=92 // pred_fallthru
              _
            // Predicated region
            $region98: #{vit_forward.9} parent=92 // pred_check
              _
            $region99: #{vit_forward.9} parent=92 // pred_check_branch
              %665 = sbr.rel (0) target = $region101
            $region100: #{vit_forward.9} parent=92 // pred_region
              loop: start=0, step=1, limit=1
              $region102: #{vit_forward.9} parent=100 // loop_pre_header
                _
              $region103: #{vit_forward.9} parent=100 // loop_header
                %s668 = sphi 0, %s672
                %p669 = scmp.ge.s32.totalorder %s668, 1
                %s673 = sphi %s651, %s651
                %s674 = sphi %s659, %s659
              $region104: #{vit_forward.9} parent=100 // loop_header_branch
                %671 = sbr.rel (%p669) target = $region108
              $region105: #{vit_forward.9} parent=100 // loop_body
                %v675 = vld [vmem:[%s673] sm:$0xf]
                %676 = vst [vmem:[%s674] sm:$0xf] %v675
                %v677 = vld [vmem:[%s673 + $0x4] sm:$0xf]
                %678 = vst [vmem:[%s674 + $0xc] sm:$0xf] %v677
                %v679 = vld [vmem:[%s673 + $0x8] sm:$0xf]
                %680 = vst [vmem:[%s674 + $0x18] sm:$0xf] %v679
                %v681 = vld [vmem:[%s673 + $0xc] sm:$0xf]
                %682 = vst [vmem:[%s674 + $0x24] sm:$0xf] %v681
                %v683 = vld [vmem:[%s673 + $0x10] sm:$0xf]
                %684 = vst [vmem:[%s674 + $0x30] sm:$0xf] %v683
                %v685 = vld [vmem:[%s673 + $0x14] sm:$0xf]
                %686 = vst [vmem:[%s674 + $0x3c] sm:$0xf] %v685
              $region106: #{vit_forward.9} parent=100 // loop_footer
                %s672 = sadd.s32 1, %s668
              $region107: #{vit_forward.9} parent=100 // loop_footer_branch
                %667 = sbr.rel target = $region103
              $region108: #{vit_forward.9} parent=100 // loop_exit
                _
            $region101: #{vit_forward.9} parent=92 // pred_fallthru
              _
          $region93: #{vit_forward.9} parent=88 // pred_fallthru
            _
          %718 = vnop
        $region89: #{vit_forward.9} parent=76 // pred_fallthru
          _
      $region77: #{vit_forward.9} parent=5 // pred_fallthru
        _
      %p719 = scmp.le.s32.totalorder 2, %s11
      // Predicated region
      $region127: #{vit_forward.9} parent=5 // pred_check
        %p720 = pneg %p719
      $region128: #{vit_forward.9} parent=5 // pred_check_branch
        %722 = sbr.rel (%p720) target = $region130
      $region129: #{vit_forward.9} parent=5 // pred_region
        %s723 = ssub.s32 %s11, 2
        // Predicated region
        $region131: #{vit_forward.9} parent=129 // pred_check
          %p724 = pneg %p174
        $region132: #{vit_forward.9} parent=129 // pred_check_branch
          %726 = sbr.rel (%p724) target = $region134
        $region133: #{vit_forward.9} parent=129 // pred_region
          %s727 = sand.u32 %s159, 1
          %s728 = sand.u32 %s159, 1
          %s729 = smul.addr %s728, 24
          %s730 = scalar_lea.vmem [#allocation4], %s729
        $region134: #{vit_forward.9} parent=129 // pred_fallthru
          _
      $region130: #{vit_forward.9} parent=5 // pred_fallthru
        _
    $region6: #{vit_forward.9} parent=1 // loop_footer
      %s15 = sadd.s32 1, %s11
    $region7: #{vit_forward.9} parent=1 // loop_footer_branch
      %10 = sbr.rel target = $region3
    $region8: #{vit_forward.9} parent=1 // loop_exit
      _

// kernel: vit_forward.10
$region0: #{vit_forward.10}
  #allocation0 [shape = 'u32[]', space=smem, size = 0x4, offset = 0x4, fixed_abs, tag = 'smem constant byte address 0x4 - core index']
  #allocation1 [shape = 'u32[144,128]{1,0:T(1,128)}', space=vmem, size = 0x12000, scoped, tag = 'internal scratch']
  %s0 = inlined_call_operand.vmem [shape: bf16[2,24,384], index: 0, kind: input, shape index: {}]
  %s1 = inlined_call_operand.vmem [shape: bf16[2,24,128], index: 1, kind: input, shape index: {}]
  %s2 = inlined_call_operand.vmem [shape: bf16[128,128], index: 2, kind: input, shape index: {}]
  %s3 = inlined_call_operand.vmem [shape: f32[1,128], index: 3, kind: input, shape index: {}]
  %s4 = inlined_call_operand.vmem [shape: bf16[2,24,128], index: 4, kind: output, shape index: {}]
  %s5 = sld [smem:[#allocation0]]
  $region49: #{vit_forward.10} parent=0
    _
  %s7 = ssub.s32 1, %s5
  %s8 = scalar_select 0, %s7, %s5
  loop: start=0, step=1, limit=4
  $region2: #{vit_forward.10} parent=0 // loop_pre_header
    _
  $region3: #{vit_forward.10} parent=0 // loop_header
    %s10 = sphi 0, %s14
    %p11 = scmp.ge.s32.totalorder %s10, 4
    %s20 = sphi 0, %s22
    %s23 = sphi 0, %s20
    %s24 = sphi 0, %s23
    %s40 = sphi 0, %s24
    %s46 = sphi 0, %s48
    %s49 = sphi 0, %s46
    %s50 = sphi 0, %s49
    %s66 = sphi 0, %s50
    %s70 = sphi 0, %s70
    %s72 = sphi 0, %s70
    %s73 = sphi 0, %s72
    %s87 = sphi 0, %s73
    %s91 = sphi 0, %s91
    %s93 = sphi 0, %s91
    %s94 = sphi 0, %s93
    %s108 = sphi 0, %s94
    %s114 = sphi 0, %s116
    %s117 = sphi 0, %s114
    %s118 = sphi 0, %s117
    %s134 = sphi 0, %s118
  $region4: #{vit_forward.10} parent=0 // loop_header_branch
    %13 = sbr.rel (%p11) target = $region8
  $region5: #{vit_forward.10} parent=0 // loop_body
    %s15 = ssub.s32 %s10, 1
    %s16 = ssub.s32 %s10, 2
    %s17 = sadd.s32 %s10, 1
    %s18 = ssub.s32 %s10, %s17
    %p19 = scmp.eq.s32.totalorder %s18, 0
    %s21 = sadd.s32 %s20, 1
    %s22 = scalar_select %p19, %s20, %s21
    %p25 = pneg %p19
    %p26 = scmp.eq.s32.totalorder %s10, 1
    %p27 = por %p25, %p26
    %p28 = scmp.ne.s32.totalorder %s20, %s23
    %p29 = scmp.eq.s32.totalorder %s10, 0
    %p30 = por %p28, %p29
    %p31 = scmp.ne.s32.totalorder %s20, %s23
    %p32 = scmp.eq.s32.totalorder %s15, 1
    %p33 = por %p31, %p32
    %p34 = scmp.ne.s32.totalorder %s23, %s24
    %p35 = scmp.eq.s32.totalorder %s15, 0
    %p36 = por %p34, %p35
    %p37 = scmp.ne.s32.totalorder %s23, %s24
    %p38 = scmp.eq.s32.totalorder %s16, 1
    %p39 = por %p37, %p38
    %p41 = scmp.ne.s32.totalorder %s24, %s40
    %p42 = scmp.eq.s32.totalorder %s16, 0
    %p43 = por %p41, %p42
    %s44 = ssub.s32 %s10, %s17
    %p45 = scmp.eq.s32.totalorder %s44, 0
    %s47 = sadd.s32 %s46, 1
    %s48 = scalar_select %p45, %s46, %s47
    %p51 = pneg %p45
    %p52 = scmp.eq.s32.totalorder %s10, 1
    %p53 = por %p51, %p52
    %p54 = scmp.ne.s32.totalorder %s46, %s49
    %p55 = scmp.eq.s32.totalorder %s10, 0
    %p56 = por %p54, %p55
    %p57 = scmp.ne.s32.totalorder %s46, %s49
    %p58 = scmp.eq.s32.totalorder %s15, 1
    %p59 = por %p57, %p58
    %p60 = scmp.ne.s32.totalorder %s49, %s50
    %p61 = scmp.eq.s32.totalorder %s15, 0
    %p62 = por %p60, %p61
    %p63 = scmp.ne.s32.totalorder %s49, %s50
    %p64 = scmp.eq.s32.totalorder %s16, 1
    %p65 = por %p63, %p64
    %p67 = scmp.ne.s32.totalorder %s50, %s66
    %p68 = scmp.eq.s32.totalorder %s16, 0
    %p69 = por %p67, %p68
    %s71 = sadd.s32 %s70, 1
    %p74 = scmp.eq.s32.totalorder %s10, 1
    %p75 = scmp.ne.s32.totalorder %s70, %s72
    %p76 = scmp.eq.s32.totalorder %s10, 0
    %p77 = por %p75, %p76
    %p78 = scmp.ne.s32.totalorder %s70, %s72
    %p79 = scmp.eq.s32.totalorder %s15, 1
    %p80 = por %p78, %p79
    %p81 = scmp.ne.s32.totalorder %s72, %s73
    %p82 = scmp.eq.s32.totalorder %s15, 0
    %p83 = por %p81, %p82
    %p84 = scmp.ne.s32.totalorder %s72, %s73
    %p85 = scmp.eq.s32.totalorder %s16, 1
    %p86 = por %p84, %p85
    %p88 = scmp.ne.s32.totalorder %s73, %s87
    %p89 = scmp.eq.s32.totalorder %s16, 0
    %p90 = por %p88, %p89
    %s92 = sadd.s32 %s91, 1
    %p95 = scmp.eq.s32.totalorder %s10, 1
    %p96 = scmp.ne.s32.totalorder %s91, %s93
    %p97 = scmp.eq.s32.totalorder %s10, 0
    %p98 = por %p96, %p97
    %p99 = scmp.ne.s32.totalorder %s91, %s93
    %p100 = scmp.eq.s32.totalorder %s15, 1
    %p101 = por %p99, %p100
    %p102 = scmp.ne.s32.totalorder %s93, %s94
    %p103 = scmp.eq.s32.totalorder %s15, 0
    %p104 = por %p102, %p103
    %p105 = scmp.ne.s32.totalorder %s93, %s94
    %p106 = scmp.eq.s32.totalorder %s16, 1
    %p107 = por %p105, %p106
    %p109 = scmp.ne.s32.totalorder %s94, %s108
    %p110 = scmp.eq.s32.totalorder %s16, 0
    %p111 = por %p109, %p110
    %s112 = ssub.s32 %s10, %s17
    %p113 = scmp.eq.s32.totalorder %s112, 0
    %s115 = sadd.s32 %s114, 1
    %s116 = scalar_select %p113, %s114, %s115
    %p119 = pneg %p113
    %p120 = scmp.eq.s32.totalorder %s10, 1
    %p121 = por %p119, %p120
    %p122 = scmp.ne.s32.totalorder %s114, %s117
    %p123 = scmp.eq.s32.totalorder %s10, 0
    %p124 = por %p122, %p123
    %p125 = scmp.ne.s32.totalorder %s114, %s117
    %p126 = scmp.eq.s32.totalorder %s15, 1
    %p127 = por %p125, %p126
    %p128 = scmp.ne.s32.totalorder %s117, %s118
    %p129 = scmp.eq.s32.totalorder %s15, 0
    %p130 = por %p128, %p129
    %p131 = scmp.ne.s32.totalorder %s117, %s118
    %p132 = scmp.eq.s32.totalorder %s16, 1
    %p133 = por %p131, %p132
    %p135 = scmp.ne.s32.totalorder %s118, %s134
    %p136 = scmp.eq.s32.totalorder %s16, 0
    %p137 = por %p135, %p136
    %p138 = scmp.le.s32.totalorder 1, %s10
    %p139 = scmp.lt.s32.totalorder %s10, 3
    %p140 = pnand %p138, %p139
    %p141 = pneg %p140
    // Predicated region
    $region9: #{vit_forward.10} parent=5 // pred_check
      _
    $region10: #{vit_forward.10} parent=5 // pred_check_branch
      %143 = sbr.rel (%p140) target = $region12
    $region11: #{vit_forward.10} parent=5 // pred_region
      %s144 = ssub.s32 %s10, 1
      // Predicated region
      $region13: #{vit_forward.10} parent=11 // pred_check
        %p145 = pneg %p83
      $region14: #{vit_forward.10} parent=11 // pred_check_branch
        %147 = sbr.rel (%p145) target = $region16
      $region15: #{vit_forward.10} parent=11 // pred_region
        _
      $region16: #{vit_forward.10} parent=11 // pred_fallthru
        _
      // Predicated region
      $region17: #{vit_forward.10} parent=11 // pred_check
        %p148 = pneg %p104
      $region18: #{vit_forward.10} parent=11 // pred_check_branch
        %150 = sbr.rel (%p148) target = $region20
      $region19: #{vit_forward.10} parent=11 // pred_region
        _
      $region20: #{vit_forward.10} parent=11 // pred_fallthru
        _
    $region12: #{vit_forward.10} parent=5 // pred_fallthru
      _
    %p151 = scmp.lt.s32.totalorder %s10, 2
    // Predicated region
    $region21: #{vit_forward.10} parent=5 // pred_check
      %p152 = pneg %p151
    $region22: #{vit_forward.10} parent=5 // pred_check_branch
      %154 = sbr.rel (%p152) target = $region24
    $region23: #{vit_forward.10} parent=5 // pred_region
      // Predicated region
      $region25: #{vit_forward.10} parent=23 // pred_check
        %p155 = pneg %p30
      $region26: #{vit_forward.10} parent=23 // pred_check_branch
        %157 = sbr.rel (%p155) target = $region28
      $region27: #{vit_forward.10} parent=23 // pred_region
        %p158 = scmp.lt.s32.totalorder %s10, 1
        %s159 = scalar_select %p158, %s10, 1
        %s160 = smul.addr %s159, 9
        %s161 = smul.addr %s160, 4
        %s162 = scalar_lea.vmem %s0, %s161
      $region28: #{vit_forward.10} parent=23 // pred_fallthru
        _
      // Predicated region
      $region29: #{vit_forward.10} parent=23 // pred_check
        %p163 = pneg %p56
      $region30: #{vit_forward.10} parent=23 // pred_check_branch
        %165 = sbr.rel (%p163) target = $region32
      $region31: #{vit_forward.10} parent=23 // pred_region
        %p166 = scmp.lt.s32.totalorder %s10, 1
        %s167 = scalar_select %p166, %s10, 1
        %s168 = smul.addr %s167, 3
        %s169 = smul.addr %s168, 4
        %s170 = scalar_lea.vmem %s1, %s169
      $region32: #{vit_forward.10} parent=23 // pred_fallthru
        _
    $region24: #{vit_forward.10} parent=5 // pred_fallthru
      _
    %p171 = scmp.le.s32.totalorder 1, %s10
    %p172 = scmp.lt.s32.totalorder %s10, 3
    %p173 = pnand %p171, %p172
    %p174 = pneg %p173
    // Predicated region
    $region33: #{vit_forward.10} parent=5 // pred_check
      _
    $region34: #{vit_forward.10} parent=5 // pred_check_branch
      %176 = sbr.rel (%p173) target = $region36
    $region35: #{vit_forward.10} parent=5 // pred_region
      %s177 = ssub.s32 %s10, 1
      %p178 = scmp.lt.s32.totalorder %s15, 1
      %s179 = scalar_select %p178, %s15, 1
      %s180 = smul.addr %s179, 9
      %s181 = smul.addr %s180, 4
      %s182 = scalar_lea.vmem %s0, %s181
      %p183 = pneg %p36
      %p184 = pneg %p33
      %p185 = scmp.lt.s32.totalorder %s15, 1
      %s186 = scalar_select %p185, %s15, 1
      %s187 = smul.addr %s186, 3
      %s188 = smul.addr %s187, 4
      %s189 = scalar_lea.vmem %s1, %s188
      %p190 = pneg %p62
      %p191 = pneg %p59
      %p192 = pneg %p83
      %p193 = pneg %p80
      %p194 = pneg %p104
      %p195 = pneg %p101
      %p196 = pneg %p130
      %p197 = pneg %p127
      %p198 = scmp.lt.s32.totalorder %s15, 1
      %s199 = scalar_select %p198, %s15, 1
      %s200 = smul.addr %s199, 3
      %s201 = smul.addr %s200, 4
      %s202 = scalar_lea.vmem %s4, %s201
      %p203 = scmp.lt.s32.totalorder %s15, 1
      %s204 = scalar_select %p203, %s15, 1
      %s205 = smul.addr %s204, 9
      %s206 = smul.addr %s205, 4
      %s207 = scalar_lea.vmem %s0, %s206
      %p208 = scmp.lt.s32.totalorder %s15, 1
      %s209 = scalar_select %p208, %s15, 1
      %s210 = smul.addr %s209, 3
      %s211 = smul.addr %s210, 4
      %s212 = scalar_lea.vmem %s1, %s211
      %p213 = scmp.lt.s32.totalorder %s15, 1
      %s214 = scalar_select %p213, %s15, 1
      %s215 = smul.addr %s214, 3
      %s216 = smul.addr %s215, 4
      %s217 = scalar_lea.vmem %s4, %s216
      %v219 = vld [vmem:[%s207] sm:$0xf]
      %v220 = vld [vmem:[%s207 + $0xc] sm:$0xf]
      %v221 = vld [vmem:[%s207 + $0x18] sm:$0xf]
      %v222 = vld [vmem:[%s207 + $0x4] sm:$0xf]
      %v223 = vld [vmem:[%s207 + $0x10] sm:$0xf]
      %v224 = vld [vmem:[%s207 + $0x1c] sm:$0xf]
      %v225 = vld [vmem:[%s207 + $0x8] sm:$0xf]
      %v226 = vld [vmem:[%s207 + $0x14] sm:$0xf]
      %v227 = vld [vmem:[%s207 + $0x20] sm:$0xf]
      %v231 = vunpack.c.l.b16 %v219
      %v232 = vunpack.c.l.b16 %v220
      %v233 = vunpack.c.l.b16 %v221
      %v234 = vpack.c.b16 %v232, %v231
      %v235 = vpack.c.b16 %v233, %v233
      %v239 = vunpack.c.l.b16 %v222
      %v240 = vunpack.c.l.b16 %v223
      %v241 = vunpack.c.l.b16 %v224
      %v242 = vpack.c.b16 %v240, %v239
      %v243 = vpack.c.b16 %v241, %v241
      %vm244 = vcmask 261120
      %v246 = vsel %vm244, %v234, 0
      %v249 = vsel %vm244, %v235, 0
      %v252 = vsel %vm244, %v242, 0
      %v255 = vsel %vm244, %v243, 0
      %257 = vmatprep.subr.bf16.mxu0 0
      %258 = vmatpush1.bf16.xpose.msra.mxu0 %v252
      %259 = vmatprep.subr.bf16.mxu0 0
      %260 = vmatpush1.bf16.xpose.msra.mxu0 %v255
      %261 = vmatprep.subr.bf16.mxu0 0
      %262 = vmatpush1.bf16.xpose.msra.mxu0 0
      %263 = vmatprep.subr.bf16.mxu0 0
      %264 = vmatpush1.bf16.xpose.msra.mxu0 0
      %265 = vmatprep.subr.bf16.mxu0 0
      %266 = vmatpush1.bf16.xpose.msra.mxu0 0
      %267 = vmatprep.subr.bf16.mxu0 0
      %268 = vmatpush1.bf16.xpose.msra.mxu0 0
      %269 = vmatprep.subr.bf16.mxu0 0
      %270 = vmatpush1.bf16.xpose.msra.mxu0 0
      %271 = vmatprep.subr.bf16.mxu0 0
      %272 = vmatpush1.bf16.xpose.msra.mxu0 0
      %273 = vmatprep.subr.bf16.mxu0 0
      %274 = vmatpush1.bf16.xpose.msra.mxu0 0
      %275 = vmatprep.subr.bf16.mxu0 0
      %276 = vmatpush1.bf16.xpose.msra.mxu0 0
      %277 = vmatprep.subr.bf16.mxu0 0
      %278 = vmatpush1.bf16.xpose.msra.mxu0 0
      %279 = vmatprep.subr.bf16.mxu0 0
      %280 = vmatpush1.bf16.xpose.msra.mxu0 0
      %281 = vmatprep.subr.bf16.mxu0 0
      %282 = vmatpush1.bf16.xpose.msra.mxu0 0
      %283 = vmatprep.subr.bf16.mxu0 0
      %284 = vmatpush1.bf16.xpose.msra.mxu0 0
      %285 = vmatprep.subr.bf16.mxu0 0
      %286 = vmatpush1.bf16.xpose.msra.mxu0 0
      %287 = vmatprep.subr.bf16.mxu0 0
      %288 = vmatpush1.bf16.xpose.msra.mxu0 0
      %289 = vmatprep.mubr.bf16.mxu0 0
      %290 = vmatmul.mubr.bf16.gmra.mrb[0].mxu0 %v246
      %v291 = vpop.f32.mrb[0].mxu0
      %v292 = vadd.f32 0.0, %v291
      %v293 = vpop.f32.mrb[0].mxu0
      %v294 = vpop.f32.mrb[0].mxu0
      %v295 = vadd.f32 0.0, %v294
      %v296 = vpop.f32.mrb[0].mxu0
      %297 = vmatprep.mubr.bf16.mxu0 0
      %298 = vmatmul.mubr.bf16.gmra.mrb[0].mxu0 %v249
      %v299 = vpop.f32.mrb[0].mxu0
      %v300 = vadd.f32 0.0, %v299
      %v301 = vpop.f32.mrb[0].mxu0
      %v302 = vpop.f32.mrb[0].mxu0
      %v303 = vpop.f32.mrb[0].mxu0
      %304 = vdwg.mxu0
      %v305 = vmul.f32 %v292, 0.17677669
      %v306 = vmul.f32 %v295, 0.17677669
      %v307 = vmul.f32 %v300, 0.17677669
      %v308 = vlaneseq
      %v309 = vand.u32 %v308, 127
      %vm310 = vcmp.lt.s32.totalorder %v309, 17
      %v311 = vsel %vm310, %v305, -1e+30
      %v312 = vsel %vm310, %v306, -1e+30
      %v313 = vsel %vm310, %v307, -1e+30
      %vm314 = vcmask 195584
      %v315 = vsel %vm314, %v311, -inf
      %316 = vmax.xlane.f32.xlu0 %v315
      %v317 = vpop.xlane.xlu0 %316
      %v318 = vsel %vm314, %v312, -inf
      %319 = vmax.xlane.f32.xlu0 %v318
      %v320 = vpop.xlane.xlu0 %319
      %v321 = vsel %vm314, %v313, -inf
      %322 = vmax.xlane.f32.xlu0 %v321
      %v323 = vpop.xlane.xlu0 %322
      %v324 = vsub.f32 %v311, %v317
      %v325 = vsub.f32 %v312, %v320
      %v326 = vsub.f32 %v313, %v323
      %v327 = vmul.f32 %v324, 1.442695
      %v328 = vpow.pop %v327
      %v329 = vmul.f32 %v325, 1.442695
      %v330 = vpow.pop %v329
      %v331 = vmul.f32 %v326, 1.442695
      %v332 = vpow.pop %v331
      %v333 = vsel %vm314, %v328, 0.0
      %334 = vadd.xlane.f32.xlu0 %v333
      %v335 = vpop.xlane.xlu0 %334
      %v336 = vsel %vm314, %v330, 0.0
      %337 = vadd.xlane.f32.xlu0 %v336
      %v338 = vpop.xlane.xlu0 %337
      %v339 = vsel %vm314, %v332, 0.0
      %340 = vadd.xlane.f32.xlu0 %v339
      %v341 = vpop.xlane.xlu0 %340
      %v342 = vrcp.pop %v335
      %v343 = vrcp.pop %v338
      %v344 = vrcp.pop %v341
      %v345 = vmul.f32 %v328, %v342
      %v346 = vmul.f32 %v330, %v343
      %v347 = vmul.f32 %v332, %v344
      %v348 = vpack.c.bf16 %v346, %v345
      %v349 = vpack.c.bf16 %v347, %v347
      %v353 = vunpack.c.l.b16 %v225
      %v354 = vunpack.c.l.b16 %v226
      %v355 = vunpack.c.l.b16 %v227
      %v356 = vpack.c.b16 %v354, %v353
      %v357 = vpack.c.b16 %v355, %v355
      %v360 = vsel %vm314, %v348, 0
      %v363 = vsel %vm314, %v349, 0
      %vm365 = vcmask 1043456
      %v367 = vsel %vm365, %v357, 0
      %369 = vmatprep.subr.bf16.mxu0 0
      %370 = vmatpush1.bf16.msra.mxu0 %v356
      %371 = vmatprep.subr.bf16.mxu0 0
      %372 = vmatpush1.bf16.msra.mxu0 %v367
      %373 = vmatprep.subr.bf16.mxu0 0
      %374 = vmatpush1.bf16.msra.mxu0 0
      %375 = vmatprep.subr.bf16.mxu0 0
      %376 = vmatpush1.bf16.msra.mxu0 0
      %377 = vmatprep.subr.bf16.mxu0 0
      %378 = vmatpush1.bf16.msra.mxu0 0
      %379 = vmatprep.subr.bf16.mxu0 0
      %380 = vmatpush1.bf16.msra.mxu0 0
      %381 = vmatprep.subr.bf16.mxu0 0
      %382 = vmatpush1.bf16.msra.mxu0 0
      %383 = vmatprep.subr.bf16.mxu0 0
      %384 = vmatpush1.bf16.msra.mxu0 0
      %385 = vmatprep.subr.bf16.mxu0 0
      %386 = vmatpush1.bf16.msra.mxu0 0
      %387 = vmatprep.subr.bf16.mxu0 0
      %388 = vmatpush1.bf16.msra.mxu0 0
      %389 = vmatprep.subr.bf16.mxu0 0
      %390 = vmatpush1.bf16.msra.mxu0 0
      %391 = vmatprep.subr.bf16.mxu0 0
      %392 = vmatpush1.bf16.msra.mxu0 0
      %393 = vmatprep.subr.bf16.mxu0 0
      %394 = vmatpush1.bf16.msra.mxu0 0
      %395 = vmatprep.subr.bf16.mxu0 0
      %396 = vmatpush1.bf16.msra.mxu0 0
      %397 = vmatprep.subr.bf16.mxu0 0
      %398 = vmatpush1.bf16.msra.mxu0 0
      %399 = vmatprep.subr.bf16.mxu0 0
      %400 = vmatpush1.bf16.msra.mxu0 0
      %401 = vmatprep.mubr.bf16.mxu0 0
      %402 = vmatmul.mubr.bf16.gmra.mrb[0].mxu0 %v360
      %v403 = vpop.f32.mrb[0].mxu0
      %v404 = vadd.f32 0.0, %v403
      %v405 = vpop.f32.mrb[0].mxu0
      %v406 = vpop.f32.mrb[0].mxu0
      %v407 = vadd.f32 0.0, %v406
      %v408 = vpop.f32.mrb[0].mxu0
      %409 = vmatprep.mubr.bf16.mxu0 0
      %410 = vmatmul.mubr.bf16.gmra.mrb[0].mxu0 %v363
      %v411 = vpop.f32.mrb[0].mxu0
      %v412 = vadd.f32 0.0, %v411
      %v413 = vpop.f32.mrb[0].mxu0
      %v414 = vpop.f32.mrb[0].mxu0
      %v415 = vpop.f32.mrb[0].mxu0
      %416 = vdwg.mxu0
      %v417 = vld [vmem:[%s207] sm:$0xf]
      %v418 = vld [vmem:[%s207 + $0xc] sm:$0xf]
      %v419 = vld [vmem:[%s207 + $0x18] sm:$0xf]
      %v420 = vld [vmem:[%s207 + $0x4] sm:$0xf]
      %v421 = vld [vmem:[%s207 + $0x10] sm:$0xf]
      %v422 = vld [vmem:[%s207 + $0x1c] sm:$0xf]
      %v423 = vld [vmem:[%s207 + $0x8] sm:$0xf]
      %v424 = vld [vmem:[%s207 + $0x14] sm:$0xf]
      %v425 = vld [vmem:[%s207 + $0x20] sm:$0xf]
      %v429 = vunpack.c.l.b16 %v417
      %v430 = vunpack.c.l.b16 %v418
      %v431 = vunpack.c.l.b16 %v419
      %v432 = vpack.c.b16 %v430, %v429
      %v433 = vpack.c.b16 %v431, %v431
      %434 = vrot.lane.b32.xlu0 %v432, 96
      %v435 = vpop.permute.xlu0 %434
      %436 = vrot.lane.b32.xlu0 %v433, 96
      %v437 = vpop.permute.xlu0 %436
      %v441 = vunpack.c.l.b16 %v420
      %v442 = vunpack.c.l.b16 %v421
      %v443 = vunpack.c.l.b16 %v422
      %v444 = vpack.c.b16 %v442, %v441
      %v445 = vpack.c.b16 %v443, %v443
      %446 = vrot.lane.b32.xlu0 %v444, 96
      %v447 = vpop.permute.xlu0 %446
      %448 = vrot.lane.b32.xlu0 %v445, 96
      %v449 = vpop.permute.xlu0 %448
      %v451 = vsel %vm244, %v435, 0
      %v454 = vsel %vm244, %v437, 0
      %v457 = vsel %vm244, %v447, 0
      %v460 = vsel %vm244, %v449, 0
      %462 = vmatprep.subr.bf16.mxu0 0
      %463 = vmatpush1.bf16.xpose.msra.mxu0 %v457
      %464 = vmatprep.subr.bf16.mxu0 0
      %465 = vmatpush1.bf16.xpose.msra.mxu0 %v460
      %466 = vmatprep.subr.bf16.mxu0 0
      %467 = vmatpush1.bf16.xpose.msra.mxu0 0
      %468 = vmatprep.subr.bf16.mxu0 0
      %469 = vmatpush1.bf16.xpose.msra.mxu0 0
      %470 = vmatprep.subr.bf16.mxu0 0
      %471 = vmatpush1.bf16.xpose.msra.mxu0 0
      %472 = vmatprep.subr.bf16.mxu0 0
      %473 = vmatpush1.bf16.xpose.msra.mxu0 0
      %474 = vmatprep.subr.bf16.mxu0 0
      %475 = vmatpush1.bf16.xpose.msra.mxu0 0
      %476 = vmatprep.subr.bf16.mxu0 0
      %477 = vmatpush1.bf16.xpose.msra.mxu0 0
      %478 = vmatprep.subr.bf16.mxu0 0
      %479 = vmatpush1.bf16.xpose.msra.mxu0 0
      %480 = vmatprep.subr.bf16.mxu0 0
      %481 = vmatpush1.bf16.xpose.msra.mxu0 0
      %482 = vmatprep.subr.bf16.mxu0 0
      %483 = vmatpush1.bf16.xpose.msra.mxu0 0
      %484 = vmatprep.subr.bf16.mxu0 0
      %485 = vmatpush1.bf16.xpose.msra.mxu0 0
      %486 = vmatprep.subr.bf16.mxu0 0
      %487 = vmatpush1.bf16.xpose.msra.mxu0 0
      %488 = vmatprep.subr.bf16.mxu0 0
      %489 = vmatpush1.bf16.xpose.msra.mxu0 0
      %490 = vmatprep.subr.bf16.mxu0 0
      %491 = vmatpush1.bf16.xpose.msra.mxu0 0
      %492 = vmatprep.subr.bf16.mxu0 0
      %493 = vmatpush1.bf16.xpose.msra.mxu0 0
      %494 = vmatprep.mubr.bf16.mxu0 0
      %495 = vmatmul.mubr.bf16.gmra.mrb[0].mxu0 %v451
      %v496 = vpop.f32.mrb[0].mxu0
      %v497 = vadd.f32 0.0, %v496
      %v498 = vpop.f32.mrb[0].mxu0
      %v499 = vpop.f32.mrb[0].mxu0
      %v500 = vadd.f32 0.0, %v499
      %v501 = vpop.f32.mrb[0].mxu0
      %502 = vmatprep.mubr.bf16.mxu0 0
      %503 = vmatmul.mubr.bf16.gmra.mrb[0].mxu0 %v454
      %v504 = vpop.f32.mrb[0].mxu0
      %v505 = vadd.f32 0.0, %v504
      %v506 = vpop.f32.mrb[0].mxu0
      %v507 = vpop.f32.mrb[0].mxu0
      %v508 = vpop.f32.mrb[0].mxu0
      %509 = vdwg.mxu0
      %v510 = vmul.f32 %v497, 0.17677669
      %v511 = vmul.f32 %v500, 0.17677669
      %v512 = vmul.f32 %v505, 0.17677669
      %v513 = vsel %vm310, %v510, -1e+30
      %v514 = vsel %vm310, %v511, -1e+30
      %v515 = vsel %vm310, %v512, -1e+30
      %v516 = vsel %vm314, %v513, -inf
      %517 = vmax.xlane.f32.xlu0 %v516
      %v518 = vpop.xlane.xlu0 %517
      %v519 = vsel %vm314, %v514, -inf
      %520 = vmax.xlane.f32.xlu0 %v519
      %v521 = vpop.xlane.xlu0 %520
      %v522 = vsel %vm314, %v515, -inf
      %523 = vmax.xlane.f32.xlu0 %v522
      %v524 = vpop.xlane.xlu0 %523
      %v525 = vsub.f32 %v513, %v518
      %v526 = vsub.f32 %v514, %v521
      %v527 = vsub.f32 %v515, %v524
      %v528 = vmul.f32 %v525, 1.442695
      %v529 = vpow.pop %v528
      %v530 = vmul.f32 %v526, 1.442695
      %v531 = vpow.pop %v530
      %v532 = vmul.f32 %v527, 1.442695
      %v533 = vpow.pop %v532
      %v534 = vsel %vm314, %v529, 0.0
      %535 = vadd.xlane.f32.xlu0 %v534
      %v536 = vpop.xlane.xlu0 %535
      %v537 = vsel %vm314, %v531, 0.0
      %538 = vadd.xlane.f32.xlu0 %v537
      %v539 = vpop.xlane.xlu0 %538
      %v540 = vsel %vm314, %v533, 0.0
      %541 = vadd.xlane.f32.xlu0 %v540
      %v542 = vpop.xlane.xlu0 %541
      %v543 = vrcp.pop %v536
      %v544 = vrcp.pop %v539
      %v545 = vrcp.pop %v542
      %v546 = vmul.f32 %v529, %v543
      %v547 = vmul.f32 %v531, %v544
      %v548 = vmul.f32 %v533, %v545
      %v549 = vpack.c.bf16 %v547, %v546
      %v550 = vpack.c.bf16 %v548, %v548
      %v554 = vunpack.c.l.b16 %v423
      %v555 = vunpack.c.l.b16 %v424
      %v556 = vunpack.c.l.b16 %v425
      %v557 = vpack.c.b16 %v555, %v554
      %v558 = vpack.c.b16 %v556, %v556
      %559 = vrot.lane.b32.xlu0 %v557, 96
      %v560 = vpop.permute.xlu0 %559
      %561 = vrot.lane.b32.xlu0 %v558, 96
      %v562 = vpop.permute.xlu0 %561
      %v565 = vsel %vm314, %v549, 0
      %v568 = vsel %vm314, %v550, 0
      %v571 = vsel %vm365, %v562, 0
      %573 = vmatprep.subr.bf16.mxu0 0
      %574 = vmatpush1.bf16.msra.mxu0 %v560
      %575 = vmatprep.subr.bf16.mxu0 0
      %576 = vmatpush1.bf16.msra.mxu0 %v571
      %577 = vmatprep.subr.bf16.mxu0 0
      %578 = vmatpush1.bf16.msra.mxu0 0
      %579 = vmatprep.subr.bf16.mxu0 0
      %580 = vmatpush1.bf16.msra.mxu0 0
      %581 = vmatprep.subr.bf16.mxu0 0
      %582 = vmatpush1.bf16.msra.mxu0 0
      %583 = vmatprep.subr.bf16.mxu0 0
      %584 = vmatpush1.bf16.msra.mxu0 0
      %585 = vmatprep.subr.bf16.mxu0 0
      %586 = vmatpush1.bf16.msra.mxu0 0
      %587 = vmatprep.subr.bf16.mxu0 0
      %588 = vmatpush1.bf16.msra.mxu0 0
      %589 = vmatprep.subr.bf16.mxu0 0
      %590 = vmatpush1.bf16.msra.mxu0 0
      %591 = vmatprep.subr.bf16.mxu0 0
      %592 = vmatpush1.bf16.msra.mxu0 0
      %593 = vmatprep.subr.bf16.mxu0 0
      %594 = vmatpush1.bf16.msra.mxu0 0
      %595 = vmatprep.subr.bf16.mxu0 0
      %596 = vmatpush1.bf16.msra.mxu0 0
      %597 = vmatprep.subr.bf16.mxu0 0
      %598 = vmatpush1.bf16.msra.mxu0 0
      %599 = vmatprep.subr.bf16.mxu0 0
      %600 = vmatpush1.bf16.msra.mxu0 0
      %601 = vmatprep.subr.bf16.mxu0 0
      %602 = vmatpush1.bf16.msra.mxu0 0
      %603 = vmatprep.subr.bf16.mxu0 0
      %604 = vmatpush1.bf16.msra.mxu0 0
      %605 = vmatprep.mubr.bf16.mxu0 0
      %606 = vmatmul.mubr.bf16.gmra.mrb[0].mxu0 %v565
      %v607 = vpop.f32.mrb[0].mxu0
      %v608 = vadd.f32 0.0, %v607
      %v609 = vpop.f32.mrb[0].mxu0
      %v610 = vpop.f32.mrb[0].mxu0
      %v611 = vadd.f32 0.0, %v610
      %v612 = vpop.f32.mrb[0].mxu0
      %613 = vmatprep.mubr.bf16.mxu0 0
      %614 = vmatmul.mubr.bf16.gmra.mrb[0].mxu0 %v568
      %v615 = vpop.f32.mrb[0].mxu0
      %v616 = vadd.f32 0.0, %v615
      %v617 = vpop.f32.mrb[0].mxu0
      %v618 = vpop.f32.mrb[0].mxu0
      %v619 = vpop.f32.mrb[0].mxu0
      %620 = vdwg.mxu0
      %v621 = vld [vmem:[%s207] sm:$0xf]
      %v622 = vld [vmem:[%s207 + $0xc] sm:$0xf]
      %v623 = vld [vmem:[%s207 + $0x18] sm:$0xf]
      %v624 = vld [vmem:[%s207 + $0x4] sm:$0xf]
      %v625 = vld [vmem:[%s207 + $0x10] sm:$0xf]
      %v626 = vld [vmem:[%s207 + $0x1c] sm:$0xf]
      %v627 = vld [vmem:[%s207 + $0x8] sm:$0xf]
      %v628 = vld [vmem:[%s207 + $0x14] sm:$0xf]
      %v629 = vld [vmem:[%s207 + $0x20] sm:$0xf]
      %v633 = vunpack.c.l.b16 %v621
      %v634 = vunpack.c.l.b16 %v622
      %v635 = vunpack.c.l.b16 %v623
      %v636 = vpack.c.b16 %v634, %v633
      %v637 = vpack.c.b16 %v635, %v635
      %638 = vrot.lane.b32.xlu0 %v636, 64
      %v639 = vpop.permute.xlu0 %638
      %640 = vrot.lane.b32.xlu0 %v637, 64
      %v641 = vpop.permute.xlu0 %640
      %v645 = vunpack.c.l.b16 %v624
      %v646 = vunpack.c.l.b16 %v625
      %v647 = vunpack.c.l.b16 %v626
      %v648 = vpack.c.b16 %v646, %v645
      %v649 = vpack.c.b16 %v647, %v647
      %650 = vrot.lane.b32.xlu0 %v648, 64
      %v651 = vpop.permute.xlu0 %650
      %652 = vrot.lane.b32.xlu0 %v649, 64
      %v653 = vpop.permute.xlu0 %652
      %v655 = vsel %vm244, %v639, 0
      %v658 = vsel %vm244, %v641, 0
      %v661 = vsel %vm244, %v651, 0
      %v664 = vsel %vm244, %v653, 0
      %666 = vmatprep.subr.bf16.mxu0 0
      %667 = vmatpush1.bf16.xpose.msra.mxu0 %v661
      %668 = vmatprep.subr.bf16.mxu0 0
      %669 = vmatpush1.bf16.xpose.msra.mxu0 %v664
      %670 = vmatprep.subr.bf16.mxu0 0
      %671 = vmatpush1.bf16.xpose.msra.mxu0 0
      %672 = vmatprep.subr.bf16.mxu0 0
      %673 = vmatpush1.bf16.xpose.msra.mxu0 0
      %674 = vmatprep.subr.bf16.mxu0 0
      %675 = vmatpush1.bf16.xpose.msra.mxu0 0
      %676 = vmatprep.subr.bf16.mxu0 0
      %677 = vmatpush1.bf16.xpose.msra.mxu0 0
      %678 = vmatprep.subr.bf16.mxu0 0
      %679 = vmatpush1.bf16.xpose.msra.mxu0 0
      %680 = vmatprep.subr.bf16.mxu0 0
      %681 = vmatpush1.bf16.xpose.msra.mxu0 0
      %682 = vmatprep.subr.bf16.mxu0 0
      %683 = vmatpush1.bf16.xpose.msra.mxu0 0
      %684 = vmatprep.subr.bf16.mxu0 0
      %685 = vmatpush1.bf16.xpose.msra.mxu0 0
      %686 = vmatprep.subr.bf16.mxu0 0
      %687 = vmatpush1.bf16.xpose.msra.mxu0 0
      %688 = vmatprep.subr.bf16.mxu0 0
      %689 = vmatpush1.bf16.xpose.msra.mxu0 0
      %690 = vmatprep.subr.bf16.mxu0 0
      %691 = vmatpush1.bf16.xpose.msra.mxu0 0
      %692 = vmatprep.subr.bf16.mxu0 0
      %693 = vmatpush1.bf16.xpose.msra.mxu0 0
      %694 = vmatprep.subr.bf16.mxu0 0
      %695 = vmatpush1.bf16.xpose.msra.mxu0 0
      %696 = vmatprep.subr.bf16.mxu0 0
      %697 = vmatpush1.bf16.xpose.msra.mxu0 0
      %698 = vmatprep.mubr.bf16.mxu0 0
      %699 = vmatmul.mubr.bf16.gmra.mrb[0].mxu0 %v655
      %v700 = vpop.f32.mrb[0].mxu0
      %v701 = vadd.f32 0.0, %v700
      %v702 = vpop.f32.mrb[0].mxu0
      %v703 = vpop.f32.mrb[0].mxu0
      %v704 = vadd.f32 0.0, %v703
      %v705 = vpop.f32.mrb[0].mxu0
      %706 = vmatprep.mubr.bf16.mxu0 0
      %707 = vmatmul.mubr.bf16.gmra.mrb[0].mxu0 %v658
      %v708 = vpop.f32.mrb[0].mxu0
      %v709 = vadd.f32 0.0, %v708
      %v710 = vpop.f32.mrb[0].mxu0
      %v711 = vpop.f32.mrb[0].mxu0
      %v712 = vpop.f32.mrb[0].mxu0
      %713 = vdwg.mxu0
      %v714 = vmul.f32 %v701, 0.17677669
      %v715 = vmul.f32 %v704, 0.17677669
      %v716 = vmul.f32 %v709, 0.17677669
      %v717 = vsel %vm310, %v714, -1e+30
      %v718 = vsel %vm310, %v715, -1e+30
      %v719 = vsel %vm310, %v716, -1e+30
      %v720 = vsel %vm314, %v717, -inf
      %721 = vmax.xlane.f32.xlu0 %v720
      %v722 = vpop.xlane.xlu0 %721
      %v723 = vsel %vm314, %v718, -inf
      %724 = vmax.xlane.f32.xlu0 %v723
      %v725 = vpop.xlane.xlu0 %724
      %v726 = vsel %vm314, %v719, -inf
      %727 = vmax.xlane.f32.xlu0 %v726
      %v728 = vpop.xlane.xlu0 %727
      %v729 = vsub.f32 %v717, %v722
      %v730 = vsub.f32 %v718, %v725
      %v731 = vsub.f32 %v719, %v728
      %v732 = vmul.f32 %v729, 1.442695
      %v733 = vpow.pop %v732
      %v734 = vmul.f32 %v730, 1.442695
      %v735 = vpow.pop %v734
      %v736 = vmul.f32 %v731, 1.442695
      %v737 = vpow.pop %v736
      %v738 = vsel %vm314, %v733, 0.0
      %739 = vadd.xlane.f32.xlu0 %v738
      %v740 = vpop.xlane.xlu0 %739
      %v741 = vsel %vm314, %v735, 0.0
      %742 = vadd.xlane.f32.xlu0 %v741
      %v743 = vpop.xlane.xlu0 %742
      %v744 = vsel %vm314, %v737, 0.0
      %745 = vadd.xlane.f32.xlu0 %v744
      %v746 = vpop.xlane.xlu0 %745
      %v747 = vrcp.pop %v740
      %v748 = vrcp.pop %v743
      %v749 = vrcp.pop %v746
      %v750 = vmul.f32 %v733, %v747
      %v751 = vmul.f32 %v735, %v748
      %v752 = vmul.f32 %v737, %v749
      %v753 = vpack.c.bf16 %v751, %v750
      %v754 = vpack.c.bf16 %v752, %v752
      %v758 = vunpack.c.l.b16 %v627
      %v759 = vunpack.c.l.b16 %v628
      %v760 = vunpack.c.l.b16 %v629
      %v761 = vpack.c.b16 %v759, %v758
      %v762 = vpack.c.b16 %v760, %v760
      %763 = vrot.lane.b32.xlu0 %v761, 64
      %v764 = vpop.permute.xlu0 %763
      %765 = vrot.lane.b32.xlu0 %v762, 64
      %v766 = vpop.permute.xlu0 %765
      %v769 = vsel %vm314, %v753, 0
      %v772 = vsel %vm314, %v754, 0
      %v775 = vsel %vm365, %v766, 0
      %777 = vmatprep.subr.bf16.mxu0 0
      %778 = vmatpush1.bf16.msra.mxu0 %v764
      %779 = vmatprep.subr.bf16.mxu0 0
      %780 = vmatpush1.bf16.msra.mxu0 %v775
      %781 = vmatprep.subr.bf16.mxu0 0
      %782 = vmatpush1.bf16.msra.mxu0 0
      %783 = vmatprep.subr.bf16.mxu0 0
      %784 = vmatpush1.bf16.msra.mxu0 0
      %785 = vmatprep.subr.bf16.mxu0 0
      %786 = vmatpush1.bf16.msra.mxu0 0
      %787 = vmatprep.subr.bf16.mxu0 0
      %788 = vmatpush1.bf16.msra.mxu0 0
      %789 = vmatprep.subr.bf16.mxu0 0
      %790 = vmatpush1.bf16.msra.mxu0 0
      %791 = vmatprep.subr.bf16.mxu0 0
      %792 = vmatpush1.bf16.msra.mxu0 0
      %793 = vmatprep.subr.bf16.mxu0 0
      %794 = vmatpush1.bf16.msra.mxu0 0
      %795 = vmatprep.subr.bf16.mxu0 0
      %796 = vmatpush1.bf16.msra.mxu0 0
      %797 = vmatprep.subr.bf16.mxu0 0
      %798 = vmatpush1.bf16.msra.mxu0 0
      %799 = vmatprep.subr.bf16.mxu0 0
      %800 = vmatpush1.bf16.msra.mxu0 0
      %801 = vmatprep.subr.bf16.mxu0 0
      %802 = vmatpush1.bf16.msra.mxu0 0
      %803 = vmatprep.subr.bf16.mxu0 0
      %804 = vmatpush1.bf16.msra.mxu0 0
      %805 = vmatprep.subr.bf16.mxu0 0
      %806 = vmatpush1.bf16.msra.mxu0 0
      %807 = vmatprep.subr.bf16.mxu0 0
      %808 = vmatpush1.bf16.msra.mxu0 0
      %809 = vmatprep.mubr.bf16.mxu0 0
      %810 = vmatmul.mubr.bf16.gmra.mrb[0].mxu0 %v769
      %v811 = vpop.f32.mrb[0].mxu0
      %v812 = vadd.f32 0.0, %v811
      %v813 = vpop.f32.mrb[0].mxu0
      %v814 = vpop.f32.mrb[0].mxu0
      %v815 = vadd.f32 0.0, %v814
      %v816 = vpop.f32.mrb[0].mxu0
      %817 = vmatprep.mubr.bf16.mxu0 0
      %818 = vmatmul.mubr.bf16.gmra.mrb[0].mxu0 %v772
      %v819 = vpop.f32.mrb[0].mxu0
      %v820 = vadd.f32 0.0, %v819
      %v821 = vpop.f32.mrb[0].mxu0
      %v822 = vpop.f32.mrb[0].mxu0
      %v823 = vpop.f32.mrb[0].mxu0
      %824 = vdwg.mxu0
      %v825 = vld [vmem:[%s207] sm:$0xf]
      %v826 = vld [vmem:[%s207 + $0xc] sm:$0xf]
      %v827 = vld [vmem:[%s207 + $0x18] sm:$0xf]
      %v828 = vld [vmem:[%s207 + $0x4] sm:$0xf]
      %v829 = vld [vmem:[%s207 + $0x10] sm:$0xf]
      %v830 = vld [vmem:[%s207 + $0x1c] sm:$0xf]
      %v831 = vld [vmem:[%s207 + $0x8] sm:$0xf]
      %v832 = vld [vmem:[%s207 + $0x14] sm:$0xf]
      %v833 = vld [vmem:[%s207 + $0x20] sm:$0xf]
      %v837 = vunpack.c.l.b16 %v825
      %v838 = vunpack.c.l.b16 %v826
      %v839 = vunpack.c.l.b16 %v827
      %v840 = vpack.c.b16 %v838, %v837
      %v841 = vpack.c.b16 %v839, %v839
      %842 = vrot.lane.b32.xlu0 %v840, 32
      %v843 = vpop.permute.xlu0 %842
      %844 = vrot.lane.b32.xlu0 %v841, 32
      %v845 = vpop.permute.xlu0 %844
      %v849 = vunpack.c.l.b16 %v828
      %v850 = vunpack.c.l.b16 %v829
      %v851 = vunpack.c.l.b16 %v830
      %v852 = vpack.c.b16 %v850, %v849
      %v853 = vpack.c.b16 %v851, %v851
      %854 = vrot.lane.b32.xlu0 %v852, 32
      %v855 = vpop.permute.xlu0 %854
      %856 = vrot.lane.b32.xlu0 %v853, 32
      %v857 = vpop.permute.xlu0 %856
      %v859 = vsel %vm244, %v843, 0
      %v862 = vsel %vm244, %v845, 0
      %v865 = vsel %vm244, %v855, 0
      %v868 = vsel %vm244, %v857, 0
      %870 = vmatprep.subr.bf16.mxu0 0
      %871 = vmatpush1.bf16.xpose.msra.mxu0 %v865
      %872 = vmatprep.subr.bf16.mxu0 0
      %873 = vmatpush1.bf16.xpose.msra.mxu0 %v868
      %874 = vmatprep.subr.bf16.mxu0 0
      %875 = vmatpush1.bf16.xpose.msra.mxu0 0
      %876 = vmatprep.subr.bf16.mxu0 0
      %877 = vmatpush1.bf16.xpose.msra.mxu0 0
      %878 = vmatprep.subr.bf16.mxu0 0
      %879 = vmatpush1.bf16.xpose.msra.mxu0 0
      %880 = vmatprep.subr.bf16.mxu0 0
      %881 = vmatpush1.bf16.xpose.msra.mxu0 0
      %882 = vmatprep.subr.bf16.mxu0 0
      %883 = vmatpush1.bf16.xpose.msra.mxu0 0
      %884 = vmatprep.subr.bf16.mxu0 0
      %885 = vmatpush1.bf16.xpose.msra.mxu0 0
      %886 = vmatprep.subr.bf16.mxu0 0
      %887 = vmatpush1.bf16.xpose.msra.mxu0 0
      %888 = vmatprep.subr.bf16.mxu0 0
      %889 = vmatpush1.bf16.xpose.msra.mxu0 0
      %890 = vmatprep.subr.bf16.mxu0 0
      %891 = vmatpush1.bf16.xpose.msra.mxu0 0
      %892 = vmatprep.subr.bf16.mxu0 0
      %893 = vmatpush1.bf16.xpose.msra.mxu0 0
      %894 = vmatprep.subr.bf16.mxu0 0
      %895 = vmatpush1.bf16.xpose.msra.mxu0 0
      %896 = vmatprep.subr.bf16.mxu0 0
      %897 = vmatpush1.bf16.xpose.msra.mxu0 0
      %898 = vmatprep.subr.bf16.mxu0 0
      %899 = vmatpush1.bf16.xpose.msra.mxu0 0
      %900 = vmatprep.subr.bf16.mxu0 0
      %901 = vmatpush1.bf16.xpose.msra.mxu0 0
      %902 = vmatprep.mubr.bf16.mxu0 0
      %903 = vmatmul.mubr.bf16.gmra.mrb[0].mxu0 %v859
      %v904 = vpop.f32.mrb[0].mxu0
      %v905 = vadd.f32 0.0, %v904
      %v906 = vpop.f32.mrb[0].mxu0
      %v907 = vpop.f32.mrb[0].mxu0
      %v908 = vadd.f32 0.0, %v907
      %v909 = vpop.f32.mrb[0].mxu0
      %910 = vmatprep.mubr.bf16.mxu0 0
      %911 = vmatmul.mubr.bf16.gmra.mrb[0].mxu0 %v862
      %v912 = vpop.f32.mrb[0].mxu0
      %v913 = vadd.f32 0.0, %v912
      %v914 = vpop.f32.mrb[0].mxu0
      %v915 = vpop.f32.mrb[0].mxu0
      %v916 = vpop.f32.mrb[0].mxu0
      %917 = vdwg.mxu0
      %v918 = vmul.f32 %v905, 0.17677669
      %v919 = vmul.f32 %v908, 0.17677669
      %v920 = vmul.f32 %v913, 0.17677669
      %v921 = vsel %vm310, %v918, -1e+30
      %v922 = vsel %vm310, %v919, -1e+30
      %v923 = vsel %vm310, %v920, -1e+30
      %v924 = vsel %vm314, %v921, -inf
      %925 = vmax.xlane.f32.xlu0 %v924
      %v926 = vpop.xlane.xlu0 %925
      %v927 = vsel %vm314, %v922, -inf
      %928 = vmax.xlane.f32.xlu0 %v927
      %v929 = vpop.xlane.xlu0 %928
      %v930 = vsel %vm314, %v923, -inf
      %931 = vmax.xlane.f32.xlu0 %v930
      %v932 = vpop.xlane.xlu0 %931
      %v933 = vsub.f32 %v921, %v926
      %v934 = vsub.f32 %v922, %v929
      %v935 = vsub.f32 %v923, %v932
      %v936 = vmul.f32 %v933, 1.442695
      %v937 = vpow.pop %v936
      %v938 = vmul.f32 %v934, 1.442695
      %v939 = vpow.pop %v938
      %v940 = vmul.f32 %v935, 1.442695
      %v941 = vpow.pop %v940
      %v942 = vsel %vm314, %v937, 0.0
      %943 = vadd.xlane.f32.xlu0 %v942
      %v944 = vpop.xlane.xlu0 %943
      %v945 = vsel %vm314, %v939, 0.0
      %946 = vadd.xlane.f32.xlu0 %v945
      %v947 = vpop.xlane.xlu0 %946
      %v948 = vsel %vm314, %v941, 0.0
      %949 = vadd.xlane.f32.xlu0 %v948
      %v950 = vpop.xlane.xlu0 %949
      %v951 = vrcp.pop %v944
      %v952 = vrcp.pop %v947
      %v953 = vrcp.pop %v950
      %v954 = vmul.f32 %v937, %v951
      %v955 = vmul.f32 %v939, %v952
      %v956 = vmul.f32 %v941, %v953
      %v957 = vpack.c.bf16 %v955, %v954
      %v958 = vpack.c.bf16 %v956, %v956
      %v962 = vunpack.c.l.b16 %v831
      %v963 = vunpack.c.l.b16 %v832
      %v964 = vunpack.c.l.b16 %v833
      %v965 = vpack.c.b16 %v963, %v962
      %v966 = vpack.c.b16 %v964, %v964
      %967 = vrot.lane.b32.xlu0 %v965, 32
      %v968 = vpop.permute.xlu0 %967
      %969 = vrot.lane.b32.xlu0 %v966, 32
      %v970 = vpop.permute.xlu0 %969
      %v973 = vsel %vm314, %v957, 0
      %v976 = vsel %vm314, %v958, 0
      %v979 = vsel %vm365, %v970, 0
      %981 = vmatprep.subr.bf16.mxu0 0
      %982 = vmatpush1.bf16.msra.mxu0 %v968
      %983 = vmatprep.subr.bf16.mxu0 0
      %984 = vmatpush1.bf16.msra.mxu0 %v979
      %985 = vmatprep.subr.bf16.mxu0 0
      %986 = vmatpush1.bf16.msra.mxu0 0
      %987 = vmatprep.subr.bf16.mxu0 0
      %988 = vmatpush1.bf16.msra.mxu0 0
      %989 = vmatprep.subr.bf16.mxu0 0
      %990 = vmatpush1.bf16.msra.mxu0 0
      %991 = vmatprep.subr.bf16.mxu0 0
      %992 = vmatpush1.bf16.msra.mxu0 0
      %993 = vmatprep.subr.bf16.mxu0 0
      %994 = vmatpush1.bf16.msra.mxu0 0
      %995 = vmatprep.subr.bf16.mxu0 0
      %996 = vmatpush1.bf16.msra.mxu0 0
      %997 = vmatprep.subr.bf16.mxu0 0
      %998 = vmatpush1.bf16.msra.mxu0 0
      %999 = vmatprep.subr.bf16.mxu0 0
      %1000 = vmatpush1.bf16.msra.mxu0 0
      %1001 = vmatprep.subr.bf16.mxu0 0
      %1002 = vmatpush1.bf16.msra.mxu0 0
      %1003 = vmatprep.subr.bf16.mxu0 0
      %1004 = vmatpush1.bf16.msra.mxu0 0
      %1005 = vmatprep.subr.bf16.mxu0 0
      %1006 = vmatpush1.bf16.msra.mxu0 0
      %1007 = vmatprep.subr.bf16.mxu0 0
      %1008 = vmatpush1.bf16.msra.mxu0 0
      %1009 = vmatprep.subr.bf16.mxu0 0
      %1010 = vmatpush1.bf16.msra.mxu0 0
      %1011 = vmatprep.subr.bf16.mxu0 0
      %1012 = vmatpush1.bf16.msra.mxu0 0
      %1013 = vmatprep.mubr.bf16.mxu0 0
      %1014 = vmatmul.mubr.bf16.gmra.mrb[0].mxu0 %v973
      %v1015 = vpop.f32.mrb[0].mxu0
      %v1016 = vadd.f32 0.0, %v1015
      %v1017 = vpop.f32.mrb[0].mxu0
      %v1018 = vpop.f32.mrb[0].mxu0
      %v1019 = vadd.f32 0.0, %v1018
      %v1020 = vpop.f32.mrb[0].mxu0
      %1021 = vmatprep.mubr.bf16.mxu0 0
      %1022 = vmatmul.mubr.bf16.gmra.mrb[0].mxu0 %v976
      %v1023 = vpop.f32.mrb[0].mxu0
      %v1024 = vadd.f32 0.0, %v1023
      %v1025 = vpop.f32.mrb[0].mxu0
      %v1026 = vpop.f32.mrb[0].mxu0
      %v1027 = vpop.f32.mrb[0].mxu0
      %1028 = vdwg.mxu0
      %1032 = vrot.lane.b32.xlu0 %v608, 32
      %v1033 = vpop.permute.xlu0 %1032
      %1034 = vrot.lane.b32.xlu0 %v611, 32
      %v1035 = vpop.permute.xlu0 %1034
      %1036 = vrot.lane.b32.xlu0 %v616, 32
      %v1037 = vpop.permute.xlu0 %1036
      %1044 = vrot.lane.b32.xlu0 %v812, 64
      %v1045 = vpop.permute.xlu0 %1044
      %1046 = vrot.lane.b32.xlu0 %v815, 64
      %v1047 = vpop.permute.xlu0 %1046
      %1048 = vrot.lane.b32.xlu0 %v820, 64
      %v1049 = vpop.permute.xlu0 %1048
      %1056 = vrot.lane.b32.xlu0 %v1016, 96
      %v1057 = vpop.permute.xlu0 %1056
      %1058 = vrot.lane.b32.xlu0 %v1019, 96
      %v1059 = vpop.permute.xlu0 %1058
      %1060 = vrot.lane.b32.xlu0 %v1024, 96
      %v1061 = vpop.permute.xlu0 %1060
      %v1065 = vsel %vm244, %v404, %v1033
      %v1066 = vsel %vm244, %v407, %v1035
      %v1067 = vsel %vm244, %v412, %v1037
      %vm1068 = vcmask 523264
      %v1069 = vsel %vm1068, %v1065, %v1045
      %v1070 = vsel %vm1068, %v1066, %v1047
      %v1071 = vsel %vm1068, %v1067, %v1049
      %vm1072 = vcmask 785408
      %v1073 = vsel %vm1072, %v1069, %v1057
      %v1074 = vsel %vm1072, %v1070, %v1059
      %v1075 = vsel %vm1072, %v1071, %v1061
      %v1076 = vpack.c.bf16 %v1074, %v1073
      %v1077 = vpack.c.bf16 %v1075, %v1075
      %v1078 = vld [vmem:[%s2] sm:$0xf]
      %v1079 = vld [vmem:[%s2 + $0x4] sm:$0xf]
      %v1080 = vld [vmem:[%s2 + $0x8] sm:$0xf]
      %v1081 = vld [vmem:[%s2 + $0xc] sm:$0xf]
      %v1082 = vld [vmem:[%s2 + $0x10] sm:$0xf]
      %v1083 = vld [vmem:[%s2 + $0x14] sm:$0xf]
      %v1084 = vld [vmem:[%s2 + $0x18] sm:$0xf]
      %v1085 = vld [vmem:[%s2 + $0x1c] sm:$0xf]
      %v1086 = vld [vmem:[%s2 + $0x20] sm:$0xf]
      %v1087 = vld [vmem:[%s2 + $0x24] sm:$0xf]
      %v1088 = vld [vmem:[%s2 + $0x28] sm:$0xf]
      %v1089 = vld [vmem:[%s2 + $0x2c] sm:$0xf]
      %v1090 = vld [vmem:[%s2 + $0x30] sm:$0xf]
      %v1091 = vld [vmem:[%s2 + $0x34] sm:$0xf]
      %v1092 = vld [vmem:[%s2 + $0x38] sm:$0xf]
      %v1093 = vld [vmem:[%s2 + $0x3c] sm:$0xf]
      %v1094 = vld [vmem:[%s3] sm:$0x1]
      %v1096 = vlaneseq
      %v1097 = vshrl.u32 %v1096, 7
      %v1098 = vsub.s32 0, %v1097
      %v1099 = vrot.slane %v1094, %v1098
      %v1117 = vunpack.c.l.b16 %v1078
      %v1118 = vunpack.c.l.b16 %v1079
      %v1119 = vunpack.c.l.b16 %v1080
      %v1120 = vunpack.c.l.b16 %v1081
      %v1121 = vunpack.c.l.b16 %v1082
      %v1122 = vunpack.c.l.b16 %v1083
      %v1123 = vunpack.c.l.b16 %v1084
      %v1124 = vunpack.c.l.b16 %v1085
      %v1125 = vunpack.c.l.b16 %v1086
      %v1126 = vunpack.c.l.b16 %v1087
      %v1127 = vunpack.c.l.b16 %v1088
      %v1128 = vunpack.c.l.b16 %v1089
      %v1129 = vunpack.c.l.b16 %v1090
      %v1130 = vunpack.c.l.b16 %v1091
      %v1131 = vunpack.c.l.b16 %v1092
      %v1132 = vunpack.c.l.b16 %v1093
      %v1133 = vpack.c.b16 %v1118, %v1117
      %v1134 = vpack.c.b16 %v1120, %v1119
      %v1135 = vpack.c.b16 %v1122, %v1121
      %v1136 = vpack.c.b16 %v1124, %v1123
      %v1137 = vpack.c.b16 %v1126, %v1125
      %v1138 = vpack.c.b16 %v1128, %v1127
      %v1139 = vpack.c.b16 %v1130, %v1129
      %v1140 = vpack.c.b16 %v1132, %v1131
      %1149 = vmatprep.subr.bf16.mxu0 0
      %1150 = vmatpush1.bf16.msra.mxu0 %v1133
      %1151 = vmatprep.subr.bf16.mxu0 0
      %1152 = vmatpush1.bf16.msra.mxu0 %v1134
      %1153 = vmatprep.subr.bf16.mxu0 0
      %1154 = vmatpush1.bf16.msra.mxu0 %v1135
      %1155 = vmatprep.subr.bf16.mxu0 0
      %1156 = vmatpush1.bf16.msra.mxu0 %v1136
      %1157 = vmatprep.subr.bf16.mxu0 0
      %1158 = vmatpush1.bf16.msra.mxu0 %v1137
      %1159 = vmatprep.subr.bf16.mxu0 0
      %1160 = vmatpush1.bf16.msra.mxu0 %v1138
      %1161 = vmatprep.subr.bf16.mxu0 0
      %1162 = vmatpush1.bf16.msra.mxu0 %v1139
      %1163 = vmatprep.subr.bf16.mxu0 0
      %1164 = vmatpush1.bf16.msra.mxu0 %v1140
      %1165 = vmatprep.subr.bf16.mxu0 0
      %1166 = vmatpush1.bf16.msra.mxu0 0
      %1167 = vmatprep.subr.bf16.mxu0 0
      %1168 = vmatpush1.bf16.msra.mxu0 0
      %1169 = vmatprep.subr.bf16.mxu0 0
      %1170 = vmatpush1.bf16.msra.mxu0 0
      %1171 = vmatprep.subr.bf16.mxu0 0
      %1172 = vmatpush1.bf16.msra.mxu0 0
      %1173 = vmatprep.subr.bf16.mxu0 0
      %1174 = vmatpush1.bf16.msra.mxu0 0
      %1175 = vmatprep.subr.bf16.mxu0 0
      %1176 = vmatpush1.bf16.msra.mxu0 0
      %1177 = vmatprep.subr.bf16.mxu0 0
      %1178 = vmatpush1.bf16.msra.mxu0 0
      %1179 = vmatprep.subr.bf16.mxu0 0
      %1180 = vmatpush1.bf16.msra.mxu0 0
      %1181 = vmatprep.mubr.bf16.mxu0 0
      %1182 = vmatmul.mubr.bf16.gmra.mrb[0].mxu0 %v1076
      %v1183 = vpop.f32.mrb[0].mxu0
      %v1184 = vadd.f32 %v1099, %v1183
      %v1185 = vpop.f32.mrb[0].mxu0
      %v1186 = vpop.f32.mrb[0].mxu0
      %v1187 = vadd.f32 %v1099, %v1186
      %v1188 = vpop.f32.mrb[0].mxu0
      %1189 = vmatprep.mubr.bf16.mxu0 0
      %1190 = vmatmul.mubr.bf16.gmra.mrb[0].mxu0 %v1077
      %v1191 = vpop.f32.mrb[0].mxu0
      %v1192 = vadd.f32 %v1099, %v1191
      %v1193 = vpop.f32.mrb[0].mxu0
      %v1194 = vpop.f32.mrb[0].mxu0
      %v1195 = vpop.f32.mrb[0].mxu0
      %1196 = vdwg.mxu0
      %v1197 = vld [vmem:[%s212] sm:$0xf]
      %v1198 = vld [vmem:[%s212 + $0x4] sm:$0xf]
      %v1199 = vld [vmem:[%s212 + $0x8] sm:$0xf]
      %v1200 = vunpack.c.l.bf16 %v1197
      %v1201 = vunpack.c.l.bf16 %v1198
      %v1202 = vunpack.c.l.bf16 %v1199
      %v1203 = vadd.f32 %v1184, %v1200
      %v1204 = vadd.f32 %v1187, %v1201
      %v1205 = vadd.f32 %v1192, %v1202
      %v1206 = vpack.c.bf16 %v1204, %v1203
      %v1207 = vpack.c.bf16 %v1205, %v1205
      %v1210 = vunpack.c.l.b16 %v1206
      %v1211 = vunpack.c.h.b16 %v1206
      %v1212 = vunpack.c.l.b16 %v1207
      %v1213 = vpack.c.b16 %v1210, %v1210
      %v1214 = vpack.c.b16 %v1211, %v1211
      %v1215 = vpack.c.b16 %v1212, %v1212
      %1219 = vst [vmem:[%s217] sm:$0xf] %v1213
      %1220 = vst [vmem:[%s217 + $0x4] sm:$0xf] %v1214
      %1221 = vst [vmem:[%s217 + $0x8] sm:$0xf] %v1215
      %p1222 = scmp.lt.s32.totalorder %s15, 1
      %s1223 = scalar_select %p1222, %s15, 1
      %s1224 = smul.addr %s1223, 3
      %s1225 = smul.addr %s1224, 4
      %s1226 = scalar_lea.vmem %s4, %s1225
      // Predicated region
      $region37: #{vit_forward.10} parent=35 // pred_check
        %p1227 = pneg %p127
      $region38: #{vit_forward.10} parent=35 // pred_check_branch
        %1229 = sbr.rel (%p1227) target = $region40
      $region39: #{vit_forward.10} parent=35 // pred_region
        _
      $region40: #{vit_forward.10} parent=35 // pred_fallthru
        _
    $region36: #{vit_forward.10} parent=5 // pred_fallthru
      _
    %p1230 = scmp.le.s32.totalorder 2, %s10
    // Predicated region
    $region41: #{vit_forward.10} parent=5 // pred_check
      %p1231 = pneg %p1230
    $region42: #{vit_forward.10} parent=5 // pred_check_branch
      %1233 = sbr.rel (%p1231) target = $region44
    $region43: #{vit_forward.10} parent=5 // pred_region
      %s1234 = ssub.s32 %s10, 2
      // Predicated region
      $region45: #{vit_forward.10} parent=43 // pred_check
        %p1235 = pneg %p133
      $region46: #{vit_forward.10} parent=43 // pred_check_branch
        %1237 = sbr.rel (%p1235) target = $region48
      $region47: #{vit_forward.10} parent=43 // pred_region
        %p1238 = scmp.lt.s32.totalorder %s16, 1
        %s1239 = scalar_select %p1238, %s16, 1
        %s1240 = smul.addr %s1239, 3
        %s1241 = smul.addr %s1240, 4
        %s1242 = scalar_lea.vmem %s4, %s1241
      $region48: #{vit_forward.10} parent=43 // pred_fallthru
        _
    $region44: #{vit_forward.10} parent=5 // pred_fallthru
      _
  $region6: #{vit_forward.10} parent=0 // loop_footer
    %s14 = sadd.s32 1, %s10
  $region7: #{vit_forward.10} parent=0 // loop_footer_branch
    %9 = sbr.rel target = $region3
  $region8: #{vit_forward.10} parent=0 // loop_exit
    _

// kernel: vit_forward.11
$region0: #{vit_forward.11}
  #allocation0 [shape = 'u32[]', space=smem, size = 0x4, offset = 0x4, fixed_abs, tag = 'smem constant byte address 0x4 - core index']
  #allocation1 [shape = 'u32[144,128]{1,0:T(1,128)}', space=vmem, size = 0x12000, scoped, tag = 'internal scratch']
  #allocation2 [shape = 'bf16[48,128]{1,0:T(16,128)(2,1)}', space=vmem, size = 0x3000, scoped, tag = 'scratch operand']
  #allocation3 [shape = 'f32[48,128]{1,0:T(8,128)}', space=vmem, size = 0x6000, scoped, tag = 'scratch operand']
  %s0 = inlined_call_operand.vmem [shape: bf16[48,128], index: 0, kind: input, shape index: {}]
  %s1 = inlined_call_operand.vmem [shape: f32[1,128], index: 1, kind: input, shape index: {}]
  %s2 = inlined_call_operand.vmem [shape: f32[1,128], index: 2, kind: input, shape index: {}]
  %s3 = inlined_call_operand.vmem [shape: bf16[128,512], index: 3, kind: input, shape index: {}]
  %s4 = inlined_call_operand.vmem [shape: f32[1,512], index: 4, kind: input, shape index: {}]
  %s5 = inlined_call_operand.vmem [shape: bf16[512,128], index: 5, kind: input, shape index: {}]
  %s6 = inlined_call_operand.vmem [shape: f32[1,128], index: 6, kind: input, shape index: {}]
  %s7 = inlined_call_operand.vmem [shape: bf16[48,128], index: 7, kind: output, shape index: {}]
  %s8 = sld [smem:[#allocation0]]
  $region46: #{vit_forward.11} parent=0
    _
  %s10 = ssub.s32 1, %s8
  %s11 = scalar_select 0, %s10, %s8
  // Predicated region
  $region2: #{vit_forward.11} parent=0 // pred_check
    _
  $region3: #{vit_forward.11} parent=0 // pred_check_branch
    %13 = sbr.rel (0) target = $region5
  $region4: #{vit_forward.11} parent=0 // pred_region
    _
  $region5: #{vit_forward.11} parent=0 // pred_fallthru
    _
  // Predicated region
  $region6: #{vit_forward.11} parent=0 // pred_check
    _
  $region7: #{vit_forward.11} parent=0 // pred_check_branch
    %15 = sbr.rel (0) target = $region9
  $region8: #{vit_forward.11} parent=0 // pred_region
    _
  $region9: #{vit_forward.11} parent=0 // pred_fallthru
    _
  // Predicated region
  $region10: #{vit_forward.11} parent=0 // pred_check
    _
  $region11: #{vit_forward.11} parent=0 // pred_check_branch
    %17 = sbr.rel (0) target = $region13
  $region12: #{vit_forward.11} parent=0 // pred_region
    _
  $region13: #{vit_forward.11} parent=0 // pred_fallthru
    _
  // Predicated region
  $region14: #{vit_forward.11} parent=0 // pred_check
    _
  $region15: #{vit_forward.11} parent=0 // pred_check_branch
    %19 = sbr.rel (0) target = $region17
  $region16: #{vit_forward.11} parent=0 // pred_region
    _
  $region17: #{vit_forward.11} parent=0 // pred_fallthru
    _
  // Predicated region
  $region18: #{vit_forward.11} parent=0 // pred_check
    _
  $region19: #{vit_forward.11} parent=0 // pred_check_branch
    %21 = sbr.rel (0) target = $region21
  $region20: #{vit_forward.11} parent=0 // pred_region
    _
  $region21: #{vit_forward.11} parent=0 // pred_fallthru
    _
  // Predicated region
  $region22: #{vit_forward.11} parent=0 // pred_check
    _
  $region23: #{vit_forward.11} parent=0 // pred_check_branch
    %23 = sbr.rel (0) target = $region25
  $region24: #{vit_forward.11} parent=0 // pred_region
    _
  $region25: #{vit_forward.11} parent=0 // pred_fallthru
    _
  // Predicated region
  $region26: #{vit_forward.11} parent=0 // pred_check
    _
  $region27: #{vit_forward.11} parent=0 // pred_check_branch
    %25 = sbr.rel (0) target = $region29
  $region28: #{vit_forward.11} parent=0 // pred_region
    _
  $region29: #{vit_forward.11} parent=0 // pred_fallthru
    _
  %p27 = scmp.eq.s32.totalorder 0, 0
  // Predicated region
  $region30: #{vit_forward.11} parent=0 // pred_check
    %p28 = pneg %p27
  $region31: #{vit_forward.11} parent=0 // pred_check_branch
    %30 = sbr.rel (%p28) target = $region33
  $region32: #{vit_forward.11} parent=0 // pred_region
    %v31 = vld [vmem:[%s0] sm:$0xf]
    %v32 = vld [vmem:[%s0 + $0x4] sm:$0xf]
    %v33 = vld [vmem:[%s0 + $0x8] sm:$0xf]
    %v34 = vld [vmem:[%s0 + $0xc] sm:$0xf]
    %v35 = vld [vmem:[%s0 + $0x10] sm:$0xf]
    %v36 = vld [vmem:[%s0 + $0x14] sm:$0xf]
    %v37 = vunpack.c.l.bf16 %v31
    %v38 = vunpack.c.l.bf16 %v32
    %v39 = vunpack.c.l.bf16 %v33
    %v40 = vunpack.c.l.bf16 %v34
    %v41 = vunpack.c.l.bf16 %v35
    %v42 = vunpack.c.l.bf16 %v36
    %43 = vadd.xlane.f32.xlu0 %v37
    %v44 = vpop.xlane.xlu0 %43
    %45 = vadd.xlane.f32.xlu0 %v38
    %v46 = vpop.xlane.xlu0 %45
    %47 = vadd.xlane.f32.xlu0 %v39
    %v48 = vpop.xlane.xlu0 %47
    %49 = vadd.xlane.f32.xlu0 %v40
    %v50 = vpop.xlane.xlu0 %49
    %51 = vadd.xlane.f32.xlu0 %v41
    %v52 = vpop.xlane.xlu0 %51
    %53 = vadd.xlane.f32.xlu0 %v42
    %v54 = vpop.xlane.xlu0 %53
    %v55 = vrcp.pop 128.0
    %v56 = vmul.f32 %v44, %v55
    %v57 = vmul.f32 %v46, %v55
    %v58 = vmul.f32 %v48, %v55
    %v59 = vmul.f32 %v50, %v55
    %v60 = vmul.f32 %v52, %v55
    %v61 = vmul.f32 %v54, %v55
    %v62 = vsub.f32 %v37, %v56
    %v63 = vsub.f32 %v38, %v57
    %v64 = vsub.f32 %v39, %v58
    %v65 = vsub.f32 %v40, %v59
    %v66 = vsub.f32 %v41, %v60
    %v67 = vsub.f32 %v42, %v61
    %v68 = vmul.f32 %v62, %v62
    %v69 = vmul.f32 %v63, %v63
    %v70 = vmul.f32 %v64, %v64
    %v71 = vmul.f32 %v65, %v65
    %v72 = vmul.f32 %v66, %v66
    %v73 = vmul.f32 %v67, %v67
    %74 = vadd.xlane.f32.xlu0 %v68
    %v75 = vpop.xlane.xlu0 %74
    %76 = vadd.xlane.f32.xlu0 %v69
    %v77 = vpop.xlane.xlu0 %76
    %78 = vadd.xlane.f32.xlu0 %v70
    %v79 = vpop.xlane.xlu0 %78
    %80 = vadd.xlane.f32.xlu0 %v71
    %v81 = vpop.xlane.xlu0 %80
    %82 = vadd.xlane.f32.xlu0 %v72
    %v83 = vpop.xlane.xlu0 %82
    %84 = vadd.xlane.f32.xlu0 %v73
    %v85 = vpop.xlane.xlu0 %84
    %v86 = vmul.f32 %v75, %v55
    %v87 = vmul.f32 %v77, %v55
    %v88 = vmul.f32 %v79, %v55
    %v89 = vmul.f32 %v81, %v55
    %v90 = vmul.f32 %v83, %v55
    %v91 = vmul.f32 %v85, %v55
    %v92 = vadd.f32 %v86, 1e-06
    %v93 = vadd.f32 %v87, 1e-06
    %v94 = vadd.f32 %v88, 1e-06
    %v95 = vadd.f32 %v89, 1e-06
    %v96 = vadd.f32 %v90, 1e-06
    %v97 = vadd.f32 %v91, 1e-06
    %v98 = vrsqrt.pop %v92
    %v99 = vrsqrt.pop %v93
    %v100 = vrsqrt.pop %v94
    %v101 = vrsqrt.pop %v95
    %v102 = vrsqrt.pop %v96
    %v103 = vrsqrt.pop %v97
    %v104 = vmul.f32 %v62, %v98
    %v105 = vmul.f32 %v63, %v99
    %v106 = vmul.f32 %v64, %v100
    %v107 = vmul.f32 %v65, %v101
    %v108 = vmul.f32 %v66, %v102
    %v109 = vmul.f32 %v67, %v103
    %v110 = vld [vmem:[%s1] sm:$0x1]
    %v112 = vlaneseq
    %v113 = vshrl.u32 %v112, 7
    %v114 = vsub.s32 0, %v113
    %v115 = vrot.slane %v110, %v114
    %v117 = vmul.f32 %v104, %v115
    %v118 = vmul.f32 %v105, %v115
    %v119 = vmul.f32 %v106, %v115
    %v120 = vmul.f32 %v107, %v115
    %v121 = vmul.f32 %v108, %v115
    %v122 = vmul.f32 %v109, %v115
    %v123 = vld [vmem:[%s2] sm:$0x1]
    %v125 = vlaneseq
    %v126 = vshrl.u32 %v125, 7
    %v127 = vsub.s32 0, %v126
    %v128 = vrot.slane %v123, %v127
    %v130 = vadd.f32 %v117, %v128
    %v131 = vadd.f32 %v118, %v128
    %v132 = vadd.f32 %v119, %v128
    %v133 = vadd.f32 %v120, %v128
    %v134 = vadd.f32 %v121, %v128
    %v135 = vadd.f32 %v122, %v128
    %v136 = vpack.c.bf16 %v131, %v130
    %v137 = vpack.c.bf16 %v133, %v132
    %v138 = vpack.c.bf16 %v135, %v134
    %139 = vst [vmem:[#allocation2] sm:$0xff] %v136
    %140 = vst [vmem:[#allocation2 + $0x8] sm:$0xff] %v137
    %141 = vst [vmem:[#allocation2 + $0x10] sm:$0xff] %v138
    %142 = vst [vmem:[#allocation3] sm:$0xff] 0.0
    %143 = vst [vmem:[#allocation3 + $0x8] sm:$0xff] 0.0
    %144 = vst [vmem:[#allocation3 + $0x10] sm:$0xff] 0.0
    %145 = vst [vmem:[#allocation3 + $0x18] sm:$0xff] 0.0
    %146 = vst [vmem:[#allocation3 + $0x20] sm:$0xff] 0.0
    %147 = vst [vmem:[#allocation3 + $0x28] sm:$0xff] 0.0
  $region33: #{vit_forward.11} parent=0 // pred_fallthru
    _
  %v148 = vld [vmem:[#allocation2] sm:$0xff]
  %v149 = vld [vmem:[#allocation2 + $0x8] sm:$0xff]
  %v150 = vld [vmem:[#allocation2 + $0x10] sm:$0xff]
  %v151 = vld [vmem:[%s3] sm:$0xff]
  %v152 = vld [vmem:[%s3 + $0x8] sm:$0xff]
  %v153 = vld [vmem:[%s3 + $0x10] sm:$0xff]
  %v154 = vld [vmem:[%s3 + $0x18] sm:$0xff]
  %v155 = vld [vmem:[%s3 + $0x20] sm:$0xff]
  %v156 = vld [vmem:[%s3 + $0x28] sm:$0xff]
  %v157 = vld [vmem:[%s3 + $0x30] sm:$0xff]
  %v158 = vld [vmem:[%s3 + $0x38] sm:$0xff]
  %v159 = vld [vmem:[%s3 + $0x40] sm:$0xff]
  %v160 = vld [vmem:[%s3 + $0x48] sm:$0xff]
  %v161 = vld [vmem:[%s3 + $0x50] sm:$0xff]
  %v162 = vld [vmem:[%s3 + $0x58] sm:$0xff]
  %v163 = vld [vmem:[%s3 + $0x60] sm:$0xff]
  %v164 = vld [vmem:[%s3 + $0x68] sm:$0xff]
  %v165 = vld [vmem:[%s3 + $0x70] sm:$0xff]
  %v166 = vld [vmem:[%s3 + $0x78] sm:$0xff]
  %v167 = vld [vmem:[%s3 + $0x80] sm:$0xff]
  %v168 = vld [vmem:[%s3 + $0x88] sm:$0xff]
  %v169 = vld [vmem:[%s3 + $0x90] sm:$0xff]
  %v170 = vld [vmem:[%s3 + $0x98] sm:$0xff]
  %v171 = vld [vmem:[%s3 + $0xa0] sm:$0xff]
  %v172 = vld [vmem:[%s3 + $0xa8] sm:$0xff]
  %v173 = vld [vmem:[%s3 + $0xb0] sm:$0xff]
  %v174 = vld [vmem:[%s3 + $0xb8] sm:$0xff]
  %v175 = vld [vmem:[%s3 + $0xc0] sm:$0xff]
  %v176 = vld [vmem:[%s3 + $0xc8] sm:$0xff]
  %v177 = vld [vmem:[%s3 + $0xd0] sm:$0xff]
  %v178 = vld [vmem:[%s3 + $0xd8] sm:$0xff]
  %v179 = vld [vmem:[%s3 + $0xe0] sm:$0xff]
  %v180 = vld [vmem:[%s3 + $0xe8] sm:$0xff]
  %v181 = vld [vmem:[%s3 + $0xf0] sm:$0xff]
  %v182 = vld [vmem:[%s3 + $0xf8] sm:$0xff]
  %v183 = vld [vmem:[%s4] sm:$0xf]
  %v185 = vlaneseq
  %v186 = vshrl.u32 %v185, 7
  %v187 = vsub.s32 0, %v186
  %v188 = vrot.slane %v183, %v187
  %v189 = vlaneseq
  %v190 = vshrl.u32 %v189, 7
  %v191 = vsub.s32 1, %v190
  %v192 = vrot.slane %v183, %v191
  %v193 = vlaneseq
  %v194 = vshrl.u32 %v193, 7
  %v195 = vsub.s32 2, %v194
  %v196 = vrot.slane %v183, %v195
  %v197 = vlaneseq
  %v198 = vshrl.u32 %v197, 7
  %v199 = vsub.s32 3, %v198
  %v200 = vrot.slane %v183, %v199
  %v237 = vunpack.c.l.b16 %v151
  %v238 = vunpack.c.h.b16 %v151
  %v239 = vunpack.c.l.b16 %v152
  %v240 = vunpack.c.h.b16 %v152
  %v241 = vunpack.c.l.b16 %v153
  %v242 = vunpack.c.h.b16 %v153
  %v243 = vunpack.c.l.b16 %v154
  %v244 = vunpack.c.h.b16 %v154
  %v245 = vunpack.c.l.b16 %v155
  %v246 = vunpack.c.h.b16 %v155
  %v247 = vunpack.c.l.b16 %v156
  %v248 = vunpack.c.h.b16 %v156
  %v249 = vunpack.c.l.b16 %v157
  %v250 = vunpack.c.h.b16 %v157
  %v251 = vunpack.c.l.b16 %v158
  %v252 = vunpack.c.h.b16 %v158
  %v253 = vunpack.c.l.b16 %v159
  %v254 = vunpack.c.h.b16 %v159
  %v255 = vunpack.c.l.b16 %v160
  %v256 = vunpack.c.h.b16 %v160
  %v257 = vunpack.c.l.b16 %v161
  %v258 = vunpack.c.h.b16 %v161
  %v259 = vunpack.c.l.b16 %v162
  %v260 = vunpack.c.h.b16 %v162
  %v261 = vunpack.c.l.b16 %v163
  %v262 = vunpack.c.h.b16 %v163
  %v263 = vunpack.c.l.b16 %v164
  %v264 = vunpack.c.h.b16 %v164
  %v265 = vunpack.c.l.b16 %v165
  %v266 = vunpack.c.h.b16 %v165
  %v267 = vunpack.c.l.b16 %v166
  %v268 = vunpack.c.h.b16 %v166
  %v269 = vunpack.c.l.b16 %v167
  %v270 = vunpack.c.h.b16 %v167
  %v271 = vunpack.c.l.b16 %v168
  %v272 = vunpack.c.h.b16 %v168
  %v273 = vunpack.c.l.b16 %v169
  %v274 = vunpack.c.h.b16 %v169
  %v275 = vunpack.c.l.b16 %v170
  %v276 = vunpack.c.h.b16 %v170
  %v277 = vunpack.c.l.b16 %v171
  %v278 = vunpack.c.h.b16 %v171
  %v279 = vunpack.c.l.b16 %v172
  %v280 = vunpack.c.h.b16 %v172
  %v281 = vunpack.c.l.b16 %v173
  %v282 = vunpack.c.h.b16 %v173
  %v283 = vunpack.c.l.b16 %v174
  %v284 = vunpack.c.h.b16 %v174
  %v285 = vunpack.c.l.b16 %v175
  %v286 = vunpack.c.h.b16 %v175
  %v287 = vunpack.c.l.b16 %v176
  %v288 = vunpack.c.h.b16 %v176
  %v289 = vunpack.c.l.b16 %v177
  %v290 = vunpack.c.h.b16 %v177
  %v291 = vunpack.c.l.b16 %v178
  %v292 = vunpack.c.h.b16 %v178
  %v293 = vunpack.c.l.b16 %v179
  %v294 = vunpack.c.h.b16 %v179
  %v295 = vunpack.c.l.b16 %v180
  %v296 = vunpack.c.h.b16 %v180
  %v297 = vunpack.c.l.b16 %v181
  %v298 = vunpack.c.h.b16 %v181
  %v299 = vunpack.c.l.b16 %v182
  %v300 = vunpack.c.h.b16 %v182
  %v301 = vpack.c.b16 %v241, %v237
  %v302 = vpack.c.b16 %v242, %v238
  %v303 = vpack.c.b16 %v243, %v239
  %v304 = vpack.c.b16 %v244, %v240
  %v305 = vpack.c.b16 %v249, %v245
  %v306 = vpack.c.b16 %v250, %v246
  %v307 = vpack.c.b16 %v251, %v247
  %v308 = vpack.c.b16 %v252, %v248
  %v309 = vpack.c.b16 %v257, %v253
  %v310 = vpack.c.b16 %v258, %v254
  %v311 = vpack.c.b16 %v259, %v255
  %v312 = vpack.c.b16 %v260, %v256
  %v313 = vpack.c.b16 %v265, %v261
  %v314 = vpack.c.b16 %v266, %v262
  %v315 = vpack.c.b16 %v267, %v263
  %v316 = vpack.c.b16 %v268, %v264
  %v317 = vpack.c.b16 %v273, %v269
  %v318 = vpack.c.b16 %v274, %v270
  %v319 = vpack.c.b16 %v275, %v271
  %v320 = vpack.c.b16 %v276, %v272
  %v321 = vpack.c.b16 %v281, %v277
  %v322 = vpack.c.b16 %v282, %v278
  %v323 = vpack.c.b16 %v283, %v279
  %v324 = vpack.c.b16 %v284, %v280
  %v325 = vpack.c.b16 %v289, %v285
  %v326 = vpack.c.b16 %v290, %v286
  %v327 = vpack.c.b16 %v291, %v287
  %v328 = vpack.c.b16 %v292, %v288
  %v329 = vpack.c.b16 %v297, %v293
  %v330 = vpack.c.b16 %v298, %v294
  %v331 = vpack.c.b16 %v299, %v295
  %v332 = vpack.c.b16 %v300, %v296
  %365 = vmatprep.subr.bf16.mxu0 %v302
  %366 = vmatpush1.bf16.msra.mxu0 %v301
  %367 = vmatprep.subr.bf16.mxu0 %v306
  %368 = vmatpush1.bf16.msra.mxu0 %v305
  %369 = vmatprep.subr.bf16.mxu0 %v310
  %370 = vmatpush1.bf16.msra.mxu0 %v309
  %371 = vmatprep.subr.bf16.mxu0 %v314
  %372 = vmatpush1.bf16.msra.mxu0 %v313
  %373 = vmatprep.subr.bf16.mxu0 %v318
  %374 = vmatpush1.bf16.msra.mxu0 %v317
  %375 = vmatprep.subr.bf16.mxu0 %v322
  %376 = vmatpush1.bf16.msra.mxu0 %v321
  %377 = vmatprep.subr.bf16.mxu0 %v326
  %378 = vmatpush1.bf16.msra.mxu0 %v325
  %379 = vmatprep.subr.bf16.mxu0 %v330
  %380 = vmatpush1.bf16.msra.mxu0 %v329
  %381 = vmatprep.subr.bf16.mxu0 0
  %382 = vmatpush1.bf16.msra.mxu0 0
  %383 = vmatprep.subr.bf16.mxu0 0
  %384 = vmatpush1.bf16.msra.mxu0 0
  %385 = vmatprep.subr.bf16.mxu0 0
  %386 = vmatpush1.bf16.msra.mxu0 0
  %387 = vmatprep.subr.bf16.mxu0 0
  %388 = vmatpush1.bf16.msra.mxu0 0
  %389 = vmatprep.subr.bf16.mxu0 0
  %390 = vmatpush1.bf16.msra.mxu0 0
  %391 = vmatprep.subr.bf16.mxu0 0
  %392 = vmatpush1.bf16.msra.mxu0 0
  %393 = vmatprep.subr.bf16.mxu0 0
  %394 = vmatpush1.bf16.msra.mxu0 0
  %395 = vmatprep.subr.bf16.mxu0 0
  %396 = vmatpush1.bf16.msra.mxu0 0
  %397 = vmatprep.mubr.bf16.mxu0 0
  %398 = vmatmul.mubr.bf16.gmra.mrb[0].mxu0 %v148
  %v399 = vpop.f32.mrb[0].mxu0
  %v400 = vadd.f32 %v188, %v399
  %v401 = vpop.f32.mrb[0].mxu0
  %v402 = vadd.f32 %v192, %v401
  %v403 = vpop.f32.mrb[0].mxu0
  %v404 = vadd.f32 %v188, %v403
  %v405 = vpop.f32.mrb[0].mxu0
  %v406 = vadd.f32 %v192, %v405
  %407 = vmatprep.mubr.bf16.mxu0 0
  %408 = vmatmul.mubr.bf16.gmra.mrb[0].mxu0 %v149
  %v409 = vpop.f32.mrb[0].mxu0
  %v410 = vadd.f32 %v188, %v409
  %v411 = vpop.f32.mrb[0].mxu0
  %v412 = vadd.f32 %v192, %v411
  %v413 = vpop.f32.mrb[0].mxu0
  %v414 = vadd.f32 %v188, %v413
  %v415 = vpop.f32.mrb[0].mxu0
  %v416 = vadd.f32 %v192, %v415
  %417 = vmatprep.mubr.bf16.mxu0 0
  %418 = vmatmul.mubr.bf16.gmra.mrb[0].mxu0 %v150
  %v419 = vpop.f32.mrb[0].mxu0
  %v420 = vadd.f32 %v188, %v419
  %v421 = vpop.f32.mrb[0].mxu0
  %v422 = vadd.f32 %v192, %v421
  %v423 = vpop.f32.mrb[0].mxu0
  %v424 = vadd.f32 %v188, %v423
  %v425 = vpop.f32.mrb[0].mxu0
  %v426 = vadd.f32 %v192, %v425
  %427 = vdwg.mxu0
  %428 = vmatprep.subr.bf16.mxu0 %v304
  %429 = vmatpush1.bf16.msra.mxu0 %v303
  %430 = vmatprep.subr.bf16.mxu0 %v308
  %431 = vmatpush1.bf16.msra.mxu0 %v307
  %432 = vmatprep.subr.bf16.mxu0 %v312
  %433 = vmatpush1.bf16.msra.mxu0 %v311
  %434 = vmatprep.subr.bf16.mxu0 %v316
  %435 = vmatpush1.bf16.msra.mxu0 %v315
  %436 = vmatprep.subr.bf16.mxu0 %v320
  %437 = vmatpush1.bf16.msra.mxu0 %v319
  %438 = vmatprep.subr.bf16.mxu0 %v324
  %439 = vmatpush1.bf16.msra.mxu0 %v323
  %440 = vmatprep.subr.bf16.mxu0 %v328
  %441 = vmatpush1.bf16.msra.mxu0 %v327
  %442 = vmatprep.subr.bf16.mxu0 %v332
  %443 = vmatpush1.bf16.msra.mxu0 %v331
  %444 = vmatprep.subr.bf16.mxu0 0
  %445 = vmatpush1.bf16.msra.mxu0 0
  %446 = vmatprep.subr.bf16.mxu0 0
  %447 = vmatpush1.bf16.msra.mxu0 0
  %448 = vmatprep.subr.bf16.mxu0 0
  %449 = vmatpush1.bf16.msra.mxu0 0
  %450 = vmatprep.subr.bf16.mxu0 0
  %451 = vmatpush1.bf16.msra.mxu0 0
  %452 = vmatprep.subr.bf16.mxu0 0
  %453 = vmatpush1.bf16.msra.mxu0 0
  %454 = vmatprep.subr.bf16.mxu0 0
  %455 = vmatpush1.bf16.msra.mxu0 0
  %456 = vmatprep.subr.bf16.mxu0 0
  %457 = vmatpush1.bf16.msra.mxu0 0
  %458 = vmatprep.subr.bf16.mxu0 0
  %459 = vmatpush1.bf16.msra.mxu0 0
  %460 = vmatprep.mubr.bf16.mxu0 0
  %461 = vmatmul.mubr.bf16.gmra.mrb[0].mxu0 %v148
  %v462 = vpop.f32.mrb[0].mxu0
  %v463 = vadd.f32 %v196, %v462
  %v464 = vpop.f32.mrb[0].mxu0
  %v465 = vadd.f32 %v200, %v464
  %v466 = vpop.f32.mrb[0].mxu0
  %v467 = vadd.f32 %v196, %v466
  %v468 = vpop.f32.mrb[0].mxu0
  %v469 = vadd.f32 %v200, %v468
  %470 = vmatprep.mubr.bf16.mxu0 0
  %471 = vmatmul.mubr.bf16.gmra.mrb[0].mxu0 %v149
  %v472 = vpop.f32.mrb[0].mxu0
  %v473 = vadd.f32 %v196, %v472
  %v474 = vpop.f32.mrb[0].mxu0
  %v475 = vadd.f32 %v200, %v474
  %v476 = vpop.f32.mrb[0].mxu0
  %v477 = vadd.f32 %v196, %v476
  %v478 = vpop.f32.mrb[0].mxu0
  %v479 = vadd.f32 %v200, %v478
  %480 = vmatprep.mubr.bf16.mxu0 0
  %481 = vmatmul.mubr.bf16.gmra.mrb[0].mxu0 %v150
  %v482 = vpop.f32.mrb[0].mxu0
  %v483 = vadd.f32 %v196, %v482
  %v484 = vpop.f32.mrb[0].mxu0
  %v485 = vadd.f32 %v200, %v484
  %v486 = vpop.f32.mrb[0].mxu0
  %v487 = vadd.f32 %v196, %v486
  %v488 = vpop.f32.mrb[0].mxu0
  %v489 = vadd.f32 %v200, %v488
  %490 = vdwg.mxu0
  %v491 = vmul.f32 %v400, %v400
  %v492 = vmul.f32 %v402, %v402
  %v493 = vmul.f32 %v463, %v463
  %v494 = vmul.f32 %v465, %v465
  %v495 = vmul.f32 %v404, %v404
  %v496 = vmul.f32 %v406, %v406
  %v497 = vmul.f32 %v467, %v467
  %v498 = vmul.f32 %v469, %v469
  %v499 = vmul.f32 %v410, %v410
  %v500 = vmul.f32 %v412, %v412
  %v501 = vmul.f32 %v473, %v473
  %v502 = vmul.f32 %v475, %v475
  %v503 = vmul.f32 %v414, %v414
  %v504 = vmul.f32 %v416, %v416
  %v505 = vmul.f32 %v477, %v477
  %v506 = vmul.f32 %v479, %v479
  %v507 = vmul.f32 %v420, %v420
  %v508 = vmul.f32 %v422, %v422
  %v509 = vmul.f32 %v483, %v483
  %v510 = vmul.f32 %v485, %v485
  %v511 = vmul.f32 %v424, %v424
  %v512 = vmul.f32 %v426, %v426
  %v513 = vmul.f32 %v487, %v487
  %v514 = vmul.f32 %v489, %v489
  %v515 = vmul.f32 %v400, %v491
  %v516 = vmul.f32 %v402, %v492
  %v517 = vmul.f32 %v463, %v493
  %v518 = vmul.f32 %v465, %v494
  %v519 = vmul.f32 %v404, %v495
  %v520 = vmul.f32 %v406, %v496
  %v521 = vmul.f32 %v467, %v497
  %v522 = vmul.f32 %v469, %v498
  %v523 = vmul.f32 %v410, %v499
  %v524 = vmul.f32 %v412, %v500
  %v525 = vmul.f32 %v473, %v501
  %v526 = vmul.f32 %v475, %v502
  %v527 = vmul.f32 %v414, %v503
  %v528 = vmul.f32 %v416, %v504
  %v529 = vmul.f32 %v477, %v505
  %v530 = vmul.f32 %v479, %v506
  %v531 = vmul.f32 %v420, %v507
  %v532 = vmul.f32 %v422, %v508
  %v533 = vmul.f32 %v483, %v509
  %v534 = vmul.f32 %v485, %v510
  %v535 = vmul.f32 %v424, %v511
  %v536 = vmul.f32 %v426, %v512
  %v537 = vmul.f32 %v487, %v513
  %v538 = vmul.f32 %v489, %v514
  %v539 = vmul.f32 %v515, 0.044715
  %v540 = vmul.f32 %v516, 0.044715
  %v541 = vmul.f32 %v517, 0.044715
  %v542 = vmul.f32 %v518, 0.044715
  %v543 = vmul.f32 %v519, 0.044715
  %v544 = vmul.f32 %v520, 0.044715
  %v545 = vmul.f32 %v521, 0.044715
  %v546 = vmul.f32 %v522, 0.044715
  %v547 = vmul.f32 %v523, 0.044715
  %v548 = vmul.f32 %v524, 0.044715
  %v549 = vmul.f32 %v525, 0.044715
  %v550 = vmul.f32 %v526, 0.044715
  %v551 = vmul.f32 %v527, 0.044715
  %v552 = vmul.f32 %v528, 0.044715
  %v553 = vmul.f32 %v529, 0.044715
  %v554 = vmul.f32 %v530, 0.044715
  %v555 = vmul.f32 %v531, 0.044715
  %v556 = vmul.f32 %v532, 0.044715
  %v557 = vmul.f32 %v533, 0.044715
  %v558 = vmul.f32 %v534, 0.044715
  %v559 = vmul.f32 %v535, 0.044715
  %v560 = vmul.f32 %v536, 0.044715
  %v561 = vmul.f32 %v537, 0.044715
  %v562 = vmul.f32 %v538, 0.044715
  %v563 = vadd.f32 %v400, %v539
  %v564 = vadd.f32 %v402, %v540
  %v565 = vadd.f32 %v463, %v541
  %v566 = vadd.f32 %v465, %v542
  %v567 = vadd.f32 %v404, %v543
  %v568 = vadd.f32 %v406, %v544
  %v569 = vadd.f32 %v467, %v545
  %v570 = vadd.f32 %v469, %v546
  %v571 = vadd.f32 %v410, %v547
  %v572 = vadd.f32 %v412, %v548
  %v573 = vadd.f32 %v473, %v549
  %v574 = vadd.f32 %v475, %v550
  %v575 = vadd.f32 %v414, %v551
  %v576 = vadd.f32 %v416, %v552
  %v577 = vadd.f32 %v477, %v553
  %v578 = vadd.f32 %v479, %v554
  %v579 = vadd.f32 %v420, %v555
  %v580 = vadd.f32 %v422, %v556
  %v581 = vadd.f32 %v483, %v557
  %v582 = vadd.f32 %v485, %v558
  %v583 = vadd.f32 %v424, %v559
  %v584 = vadd.f32 %v426, %v560
  %v585 = vadd.f32 %v487, %v561
  %v586 = vadd.f32 %v489, %v562
  %v587 = vmul.f32 %v563, 0.7978846
  %v588 = vmul.f32 %v564, 0.7978846
  %v589 = vmul.f32 %v565, 0.7978846
  %v590 = vmul.f32 %v566, 0.7978846
  %v591 = vmul.f32 %v567, 0.7978846
  %v592 = vmul.f32 %v568, 0.7978846
  %v593 = vmul.f32 %v569, 0.7978846
  %v594 = vmul.f32 %v570, 0.7978846
  %v595 = vmul.f32 %v571, 0.7978846
  %v596 = vmul.f32 %v572, 0.7978846
  %v597 = vmul.f32 %v573, 0.7978846
  %v598 = vmul.f32 %v574, 0.7978846
  %v599 = vmul.f32 %v575, 0.7978846
  %v600 = vmul.f32 %v576, 0.7978846
  %v601 = vmul.f32 %v577, 0.7978846
  %v602 = vmul.f32 %v578, 0.7978846
  %v603 = vmul.f32 %v579, 0.7978846
  %v604 = vmul.f32 %v580, 0.7978846
  %v605 = vmul.f32 %v581, 0.7978846
  %v606 = vmul.f32 %v582, 0.7978846
  %v607 = vmul.f32 %v583, 0.7978846
  %v608 = vmul.f32 %v584, 0.7978846
  %v609 = vmul.f32 %v585, 0.7978846
  %v610 = vmul.f32 %v586, 0.7978846
  %v611 = vtanh.pop %v587
  %v612 = vtanh.pop %v588
  %v613 = vtanh.pop %v589
  %v614 = vtanh.pop %v590
  %v615 = vtanh.pop %v591
  %v616 = vtanh.pop %v592
  %v617 = vtanh.pop %v593
  %v618 = vtanh.pop %v594
  %v619 = vtanh.pop %v595
  %v620 = vtanh.pop %v596
  %v621 = vtanh.pop %v597
  %v622 = vtanh.pop %v598
  %v623 = vtanh.pop %v599
  %v624 = vtanh.pop %v600
  %v625 = vtanh.pop %v601
  %v626 = vtanh.pop %v602
  %v627 = vtanh.pop %v603
  %v628 = vtanh.pop %v604
  %v629 = vtanh.pop %v605
  %v630 = vtanh.pop %v606
  %v631 = vtanh.pop %v607
  %v632 = vtanh.pop %v608
  %v633 = vtanh.pop %v609
  %v634 = vtanh.pop %v610
  %v635 = vadd.f32 %v611, 1.0
  %v636 = vadd.f32 %v612, 1.0
  %v637 = vadd.f32 %v613, 1.0
  %v638 = vadd.f32 %v614, 1.0
  %v639 = vadd.f32 %v615, 1.0
  %v640 = vadd.f32 %v616, 1.0
  %v641 = vadd.f32 %v617, 1.0
  %v642 = vadd.f32 %v618, 1.0
  %v643 = vadd.f32 %v619, 1.0
  %v644 = vadd.f32 %v620, 1.0
  %v645 = vadd.f32 %v621, 1.0
  %v646 = vadd.f32 %v622, 1.0
  %v647 = vadd.f32 %v623, 1.0
  %v648 = vadd.f32 %v624, 1.0
  %v649 = vadd.f32 %v625, 1.0
  %v650 = vadd.f32 %v626, 1.0
  %v651 = vadd.f32 %v627, 1.0
  %v652 = vadd.f32 %v628, 1.0
  %v653 = vadd.f32 %v629, 1.0
  %v654 = vadd.f32 %v630, 1.0
  %v655 = vadd.f32 %v631, 1.0
  %v656 = vadd.f32 %v632, 1.0
  %v657 = vadd.f32 %v633, 1.0
  %v658 = vadd.f32 %v634, 1.0
  %v659 = vmul.f32 %v635, 0.5
  %v660 = vmul.f32 %v636, 0.5
  %v661 = vmul.f32 %v637, 0.5
  %v662 = vmul.f32 %v638, 0.5
  %v663 = vmul.f32 %v639, 0.5
  %v664 = vmul.f32 %v640, 0.5
  %v665 = vmul.f32 %v641, 0.5
  %v666 = vmul.f32 %v642, 0.5
  %v667 = vmul.f32 %v643, 0.5
  %v668 = vmul.f32 %v644, 0.5
  %v669 = vmul.f32 %v645, 0.5
  %v670 = vmul.f32 %v646, 0.5
  %v671 = vmul.f32 %v647, 0.5
  %v672 = vmul.f32 %v648, 0.5
  %v673 = vmul.f32 %v649, 0.5
  %v674 = vmul.f32 %v650, 0.5
  %v675 = vmul.f32 %v651, 0.5
  %v676 = vmul.f32 %v652, 0.5
  %v677 = vmul.f32 %v653, 0.5
  %v678 = vmul.f32 %v654, 0.5
  %v679 = vmul.f32 %v655, 0.5
  %v680 = vmul.f32 %v656, 0.5
  %v681 = vmul.f32 %v657, 0.5
  %v682 = vmul.f32 %v658, 0.5
  %v683 = vmul.f32 %v400, %v659
  %v684 = vmul.f32 %v402, %v660
  %v685 = vmul.f32 %v463, %v661
  %v686 = vmul.f32 %v465, %v662
  %v687 = vmul.f32 %v404, %v663
  %v688 = vmul.f32 %v406, %v664
  %v689 = vmul.f32 %v467, %v665
  %v690 = vmul.f32 %v469, %v666
  %v691 = vmul.f32 %v410, %v667
  %v692 = vmul.f32 %v412, %v668
  %v693 = vmul.f32 %v473, %v669
  %v694 = vmul.f32 %v475, %v670
  %v695 = vmul.f32 %v414, %v671
  %v696 = vmul.f32 %v416, %v672
  %v697 = vmul.f32 %v477, %v673
  %v698 = vmul.f32 %v479, %v674
  %v699 = vmul.f32 %v420, %v675
  %v700 = vmul.f32 %v422, %v676
  %v701 = vmul.f32 %v483, %v677
  %v702 = vmul.f32 %v485, %v678
  %v703 = vmul.f32 %v424, %v679
  %v704 = vmul.f32 %v426, %v680
  %v705 = vmul.f32 %v487, %v681
  %v706 = vmul.f32 %v489, %v682
  %v707 = vld [vmem:[#allocation3] sm:$0xff]
  %v708 = vld [vmem:[#allocation3 + $0x8] sm:$0xff]
  %v709 = vld [vmem:[#allocation3 + $0x10] sm:$0xff]
  %v710 = vld [vmem:[#allocation3 + $0x18] sm:$0xff]
  %v711 = vld [vmem:[#allocation3 + $0x20] sm:$0xff]
  %v712 = vld [vmem:[#allocation3 + $0x28] sm:$0xff]
  %v713 = vpack.c.bf16 %v687, %v683
  %v714 = vpack.c.bf16 %v688, %v684
  %v715 = vpack.c.bf16 %v689, %v685
  %v716 = vpack.c.bf16 %v690, %v686
  %v717 = vpack.c.bf16 %v695, %v691
  %v718 = vpack.c.bf16 %v696, %v692
  %v719 = vpack.c.bf16 %v697, %v693
  %v720 = vpack.c.bf16 %v698, %v694
  %v721 = vpack.c.bf16 %v703, %v699
  %v722 = vpack.c.bf16 %v704, %v700
  %v723 = vpack.c.bf16 %v705, %v701
  %v724 = vpack.c.bf16 %v706, %v702
  %v725 = vld [vmem:[%s5] sm:$0xf]
  %v726 = vld [vmem:[%s5 + $0x4] sm:$0xf]
  %v727 = vld [vmem:[%s5 + $0x8] sm:$0xf]
  %v728 = vld [vmem:[%s5 + $0xc] sm:$0xf]
  %v729 = vld [vmem:[%s5 + $0x10] sm:$0xf]
  %v730 = vld [vmem:[%s5 + $0x14] sm:$0xf]
  %v731 = vld [vmem:[%s5 + $0x18] sm:$0xf]
  %v732 = vld [vmem:[%s5 + $0x1c] sm:$0xf]
  %v733 = vld [vmem:[%s5 + $0x20] sm:$0xf]
  %v734 = vld [vmem:[%s5 + $0x24] sm:$0xf]
  %v735 = vld [vmem:[%s5 + $0x28] sm:$0xf]
  %v736 = vld [vmem:[%s5 + $0x2c] sm:$0xf]
  %v737 = vld [vmem:[%s5 + $0x30] sm:$0xf]
  %v738 = vld [vmem:[%s5 + $0x34] sm:$0xf]
  %v739 = vld [vmem:[%s5 + $0x38] sm:$0xf]
  %v740 = vld [vmem:[%s5 + $0x3c] sm:$0xf]
  %v741 = vld [vmem:[%s5 + $0x40] sm:$0xf]
  %v742 = vld [vmem:[%s5 + $0x44] sm:$0xf]
  %v743 = vld [vmem:[%s5 + $0x48] sm:$0xf]
  %v744 = vld [vmem:[%s5 + $0x4c] sm:$0xf]
  %v745 = vld [vmem:[%s5 + $0x50] sm:$0xf]
  %v746 = vld [vmem:[%s5 + $0x54] sm:$0xf]
  %v747 = vld [vmem:[%s5 + $0x58] sm:$0xf]
  %v748 = vld [vmem:[%s5 + $0x5c] sm:$0xf]
  %v749 = vld [vmem:[%s5 + $0x60] sm:$0xf]
  %v750 = vld [vmem:[%s5 + $0x64] sm:$0xf]
  %v751 = vld [vmem:[%s5 + $0x68] sm:$0xf]
  %v752 = vld [vmem:[%s5 + $0x6c] sm:$0xf]
  %v753 = vld [vmem:[%s5 + $0x70] sm:$0xf]
  %v754 = vld [vmem:[%s5 + $0x74] sm:$0xf]
  %v755 = vld [vmem:[%s5 + $0x78] sm:$0xf]
  %v756 = vld [vmem:[%s5 + $0x7c] sm:$0xf]
  %v757 = vld [vmem:[%s5 + $0x80] sm:$0xf]
  %v758 = vld [vmem:[%s5 + $0x84] sm:$0xf]
  %v759 = vld [vmem:[%s5 + $0x88] sm:$0xf]
  %v760 = vld [vmem:[%s5 + $0x8c] sm:$0xf]
  %v761 = vld [vmem:[%s5 + $0x90] sm:$0xf]
  %v762 = vld [vmem:[%s5 + $0x94] sm:$0xf]
  %v763 = vld [vmem:[%s5 + $0x98] sm:$0xf]
  %v764 = vld [vmem:[%s5 + $0x9c] sm:$0xf]
  %v765 = vld [vmem:[%s5 + $0xa0] sm:$0xf]
  %v766 = vld [vmem:[%s5 + $0xa4] sm:$0xf]
  %v767 = vld [vmem:[%s5 + $0xa8] sm:$0xf]
  %v768 = vld [vmem:[%s5 + $0xac] sm:$0xf]
  %v769 = vld [vmem:[%s5 + $0xb0] sm:$0xf]
  %v770 = vld [vmem:[%s5 + $0xb4] sm:$0xf]
  %v771 = vld [vmem:[%s5 + $0xb8] sm:$0xf]
  %v772 = vld [vmem:[%s5 + $0xbc] sm:$0xf]
  %v773 = vld [vmem:[%s5 + $0xc0] sm:$0xf]
  %v774 = vld [vmem:[%s5 + $0xc4] sm:$0xf]
  %v775 = vld [vmem:[%s5 + $0xc8] sm:$0xf]
  %v776 = vld [vmem:[%s5 + $0xcc] sm:$0xf]
  %v777 = vld [vmem:[%s5 + $0xd0] sm:$0xf]
  %v778 = vld [vmem:[%s5 + $0xd4] sm:$0xf]
  %v779 = vld [vmem:[%s5 + $0xd8] sm:$0xf]
  %v780 = vld [vmem:[%s5 + $0xdc] sm:$0xf]
  %v781 = vld [vmem:[%s5 + $0xe0] sm:$0xf]
  %v782 = vld [vmem:[%s5 + $0xe4] sm:$0xf]
  %v783 = vld [vmem:[%s5 + $0xe8] sm:$0xf]
  %v784 = vld [vmem:[%s5 + $0xec] sm:$0xf]
  %v785 = vld [vmem:[%s5 + $0xf0] sm:$0xf]
  %v786 = vld [vmem:[%s5 + $0xf4] sm:$0xf]
  %v787 = vld [vmem:[%s5 + $0xf8] sm:$0xf]
  %v788 = vld [vmem:[%s5 + $0xfc] sm:$0xf]
  %v853 = vunpack.c.l.b16 %v725
  %v854 = vunpack.c.l.b16 %v726
  %v855 = vunpack.c.l.b16 %v727
  %v856 = vunpack.c.l.b16 %v728
  %v857 = vunpack.c.l.b16 %v729
  %v858 = vunpack.c.l.b16 %v730
  %v859 = vunpack.c.l.b16 %v731
  %v860 = vunpack.c.l.b16 %v732
  %v861 = vunpack.c.l.b16 %v733
  %v862 = vunpack.c.l.b16 %v734
  %v863 = vunpack.c.l.b16 %v735
  %v864 = vunpack.c.l.b16 %v736
  %v865 = vunpack.c.l.b16 %v737
  %v866 = vunpack.c.l.b16 %v738
  %v867 = vunpack.c.l.b16 %v739
  %v868 = vunpack.c.l.b16 %v740
  %v869 = vunpack.c.l.b16 %v741
  %v870 = vunpack.c.l.b16 %v742
  %v871 = vunpack.c.l.b16 %v743
  %v872 = vunpack.c.l.b16 %v744
  %v873 = vunpack.c.l.b16 %v745
  %v874 = vunpack.c.l.b16 %v746
  %v875 = vunpack.c.l.b16 %v747
  %v876 = vunpack.c.l.b16 %v748
  %v877 = vunpack.c.l.b16 %v749
  %v878 = vunpack.c.l.b16 %v750
  %v879 = vunpack.c.l.b16 %v751
  %v880 = vunpack.c.l.b16 %v752
  %v881 = vunpack.c.l.b16 %v753
  %v882 = vunpack.c.l.b16 %v754
  %v883 = vunpack.c.l.b16 %v755
  %v884 = vunpack.c.l.b16 %v756
  %v885 = vunpack.c.l.b16 %v757
  %v886 = vunpack.c.l.b16 %v758
  %v887 = vunpack.c.l.b16 %v759
  %v888 = vunpack.c.l.b16 %v760
  %v889 = vunpack.c.l.b16 %v761
  %v890 = vunpack.c.l.b16 %v762
  %v891 = vunpack.c.l.b16 %v763
  %v892 = vunpack.c.l.b16 %v764
  %v893 = vunpack.c.l.b16 %v765
  %v894 = vunpack.c.l.b16 %v766
  %v895 = vunpack.c.l.b16 %v767
  %v896 = vunpack.c.l.b16 %v768
  %v897 = vunpack.c.l.b16 %v769
  %v898 = vunpack.c.l.b16 %v770
  %v899 = vunpack.c.l.b16 %v771
  %v900 = vunpack.c.l.b16 %v772
  %v901 = vunpack.c.l.b16 %v773
  %v902 = vunpack.c.l.b16 %v774
  %v903 = vunpack.c.l.b16 %v775
  %v904 = vunpack.c.l.b16 %v776
  %v905 = vunpack.c.l.b16 %v777
  %v906 = vunpack.c.l.b16 %v778
  %v907 = vunpack.c.l.b16 %v779
  %v908 = vunpack.c.l.b16 %v780
  %v909 = vunpack.c.l.b16 %v781
  %v910 = vunpack.c.l.b16 %v782
  %v911 = vunpack.c.l.b16 %v783
  %v912 = vunpack.c.l.b16 %v784
  %v913 = vunpack.c.l.b16 %v785
  %v914 = vunpack.c.l.b16 %v786
  %v915 = vunpack.c.l.b16 %v787
  %v916 = vunpack.c.l.b16 %v788
  %v917 = vpack.c.b16 %v854, %v853
  %v918 = vpack.c.b16 %v856, %v855
  %v919 = vpack.c.b16 %v858, %v857
  %v920 = vpack.c.b16 %v860, %v859
  %v921 = vpack.c.b16 %v862, %v861
  %v922 = vpack.c.b16 %v864, %v863
  %v923 = vpack.c.b16 %v866, %v865
  %v924 = vpack.c.b16 %v868, %v867
  %v925 = vpack.c.b16 %v870, %v869
  %v926 = vpack.c.b16 %v872, %v871
  %v927 = vpack.c.b16 %v874, %v873
  %v928 = vpack.c.b16 %v876, %v875
  %v929 = vpack.c.b16 %v878, %v877
  %v930 = vpack.c.b16 %v880, %v879
  %v931 = vpack.c.b16 %v882, %v881
  %v932 = vpack.c.b16 %v884, %v883
  %v933 = vpack.c.b16 %v886, %v885
  %v934 = vpack.c.b16 %v888, %v887
  %v935 = vpack.c.b16 %v890, %v889
  %v936 = vpack.c.b16 %v892, %v891
  %v937 = vpack.c.b16 %v894, %v893
  %v938 = vpack.c.b16 %v896, %v895
  %v939 = vpack.c.b16 %v898, %v897
  %v940 = vpack.c.b16 %v900, %v899
  %v941 = vpack.c.b16 %v902, %v901
  %v942 = vpack.c.b16 %v904, %v903
  %v943 = vpack.c.b16 %v906, %v905
  %v944 = vpack.c.b16 %v908, %v907
  %v945 = vpack.c.b16 %v910, %v909
  %v946 = vpack.c.b16 %v912, %v911
  %v947 = vpack.c.b16 %v914, %v913
  %v948 = vpack.c.b16 %v916, %v915
  %981 = vmatprep.subr.bf16.mxu0 0
  %982 = vmatpush1.bf16.msra.mxu0 %v917
  %983 = vmatprep.subr.bf16.mxu0 0
  %984 = vmatpush1.bf16.msra.mxu0 %v918
  %985 = vmatprep.subr.bf16.mxu0 0
  %986 = vmatpush1.bf16.msra.mxu0 %v919
  %987 = vmatprep.subr.bf16.mxu0 0
  %988 = vmatpush1.bf16.msra.mxu0 %v920
  %989 = vmatprep.subr.bf16.mxu0 0
  %990 = vmatpush1.bf16.msra.mxu0 %v921
  %991 = vmatprep.subr.bf16.mxu0 0
  %992 = vmatpush1.bf16.msra.mxu0 %v922
  %993 = vmatprep.subr.bf16.mxu0 0
  %994 = vmatpush1.bf16.msra.mxu0 %v923
  %995 = vmatprep.subr.bf16.mxu0 0
  %996 = vmatpush1.bf16.msra.mxu0 %v924
  %997 = vmatprep.subr.bf16.mxu0 0
  %998 = vmatpush1.bf16.msra.mxu0 %v925
  %999 = vmatprep.subr.bf16.mxu0 0
  %1000 = vmatpush1.bf16.msra.mxu0 %v926
  %1001 = vmatprep.subr.bf16.mxu0 0
  %1002 = vmatpush1.bf16.msra.mxu0 %v927
  %1003 = vmatprep.subr.bf16.mxu0 0
  %1004 = vmatpush1.bf16.msra.mxu0 %v928
  %1005 = vmatprep.subr.bf16.mxu0 0
  %1006 = vmatpush1.bf16.msra.mxu0 %v929
  %1007 = vmatprep.subr.bf16.mxu0 0
  %1008 = vmatpush1.bf16.msra.mxu0 %v930
  %1009 = vmatprep.subr.bf16.mxu0 0
  %1010 = vmatpush1.bf16.msra.mxu0 %v931
  %1011 = vmatprep.subr.bf16.mxu0 0
  %1012 = vmatpush1.bf16.msra.mxu0 %v932
  %1013 = vmatprep.mubr.bf16.mxu0 %v714
  %1014 = vmatmul.mubr.bf16.gmra.mrb[0].mxu0 %v713
  %v1015 = vpop.f32.mrb[0].mxu0
  %v1016 = vadd.f32 0.0, %v1015
  %v1017 = vpop.f32.mrb[0].mxu0
  %v1018 = vpop.f32.mrb[0].mxu0
  %v1019 = vadd.f32 0.0, %v1018
  %v1020 = vpop.f32.mrb[0].mxu0
  %1021 = vmatprep.mubr.bf16.mxu0 %v718
  %1022 = vmatmul.mubr.bf16.gmra.mrb[0].mxu0 %v717
  %v1023 = vpop.f32.mrb[0].mxu0
  %v1024 = vadd.f32 0.0, %v1023
  %v1025 = vpop.f32.mrb[0].mxu0
  %v1026 = vpop.f32.mrb[0].mxu0
  %v1027 = vadd.f32 0.0, %v1026
  %v1028 = vpop.f32.mrb[0].mxu0
  %1029 = vmatprep.mubr.bf16.mxu0 %v722
  %1030 = vmatmul.mubr.bf16.gmra.mrb[0].mxu0 %v721
  %v1031 = vpop.f32.mrb[0].mxu0
  %v1032 = vadd.f32 0.0, %v1031
  %v1033 = vpop.f32.mrb[0].mxu0
  %v1034 = vpop.f32.mrb[0].mxu0
  %v1035 = vadd.f32 0.0, %v1034
  %v1036 = vpop.f32.mrb[0].mxu0
  %1037 = vdwg.mxu0
  %1038 = vmatprep.subr.bf16.mxu0 0
  %1039 = vmatpush1.bf16.msra.mxu0 %v933
  %1040 = vmatprep.subr.bf16.mxu0 0
  %1041 = vmatpush1.bf16.msra.mxu0 %v934
  %1042 = vmatprep.subr.bf16.mxu0 0
  %1043 = vmatpush1.bf16.msra.mxu0 %v935
  %1044 = vmatprep.subr.bf16.mxu0 0
  %1045 = vmatpush1.bf16.msra.mxu0 %v936
  %1046 = vmatprep.subr.bf16.mxu0 0
  %1047 = vmatpush1.bf16.msra.mxu0 %v937
  %1048 = vmatprep.subr.bf16.mxu0 0
  %1049 = vmatpush1.bf16.msra.mxu0 %v938
  %1050 = vmatprep.subr.bf16.mxu0 0
  %1051 = vmatpush1.bf16.msra.mxu0 %v939
  %1052 = vmatprep.subr.bf16.mxu0 0
  %1053 = vmatpush1.bf16.msra.mxu0 %v940
  %1054 = vmatprep.subr.bf16.mxu0 0
  %1055 = vmatpush1.bf16.msra.mxu0 %v941
  %1056 = vmatprep.subr.bf16.mxu0 0
  %1057 = vmatpush1.bf16.msra.mxu0 %v942
  %1058 = vmatprep.subr.bf16.mxu0 0
  %1059 = vmatpush1.bf16.msra.mxu0 %v943
  %1060 = vmatprep.subr.bf16.mxu0 0
  %1061 = vmatpush1.bf16.msra.mxu0 %v944
  %1062 = vmatprep.subr.bf16.mxu0 0
  %1063 = vmatpush1.bf16.msra.mxu0 %v945
  %1064 = vmatprep.subr.bf16.mxu0 0
  %1065 = vmatpush1.bf16.msra.mxu0 %v946
  %1066 = vmatprep.subr.bf16.mxu0 0
  %1067 = vmatpush1.bf16.msra.mxu0 %v947
  %1068 = vmatprep.subr.bf16.mxu0 0
  %1069 = vmatpush1.bf16.msra.mxu0 %v948
  %1070 = vmatprep.mubr.bf16.mxu0 %v716
  %1071 = vmatmul.mubr.bf16.gmra.mrb[0].mxu0 %v715
  %v1072 = vpop.f32.mrb[0].mxu0
  %v1073 = vadd.f32 %v1016, %v1072
  %v1074 = vpop.f32.mrb[0].mxu0
  %v1075 = vpop.f32.mrb[0].mxu0
  %v1076 = vadd.f32 %v1019, %v1075
  %v1077 = vpop.f32.mrb[0].mxu0
  %1078 = vmatprep.mubr.bf16.mxu0 %v720
  %1079 = vmatmul.mubr.bf16.gmra.mrb[0].mxu0 %v719
  %v1080 = vpop.f32.mrb[0].mxu0
  %v1081 = vadd.f32 %v1024, %v1080
  %v1082 = vpop.f32.mrb[0].mxu0
  %v1083 = vpop.f32.mrb[0].mxu0
  %v1084 = vadd.f32 %v1027, %v1083
  %v1085 = vpop.f32.mrb[0].mxu0
  %1086 = vmatprep.mubr.bf16.mxu0 %v724
  %1087 = vmatmul.mubr.bf16.gmra.mrb[0].mxu0 %v723
  %v1088 = vpop.f32.mrb[0].mxu0
  %v1089 = vadd.f32 %v1032, %v1088
  %v1090 = vpop.f32.mrb[0].mxu0
  %v1091 = vpop.f32.mrb[0].mxu0
  %v1092 = vadd.f32 %v1035, %v1091
  %v1093 = vpop.f32.mrb[0].mxu0
  %1094 = vdwg.mxu0
  %v1095 = vadd.f32 %v707, %v1073
  %v1096 = vadd.f32 %v708, %v1076
  %v1097 = vadd.f32 %v709, %v1081
  %v1098 = vadd.f32 %v710, %v1084
  %v1099 = vadd.f32 %v711, %v1089
  %v1100 = vadd.f32 %v712, %v1092
  %1101 = vst [vmem:[#allocation3] sm:$0xff] %v1095
  %1102 = vst [vmem:[#allocation3 + $0x8] sm:$0xff] %v1096
  %1103 = vst [vmem:[#allocation3 + $0x10] sm:$0xff] %v1097
  %1104 = vst [vmem:[#allocation3 + $0x18] sm:$0xff] %v1098
  %1105 = vst [vmem:[#allocation3 + $0x20] sm:$0xff] %v1099
  %1106 = vst [vmem:[#allocation3 + $0x28] sm:$0xff] %v1100
  // Predicated region
  $region34: #{vit_forward.11} parent=0 // pred_check
    %p1107 = pneg %p27
  $region35: #{vit_forward.11} parent=0 // pred_check_branch
    %1109 = sbr.rel (%p1107) target = $region37
  $region36: #{vit_forward.11} parent=0 // pred_region
    %v1110 = vld [vmem:[#allocation3] sm:$0xff]
    %v1111 = vld [vmem:[#allocation3 + $0x8] sm:$0xff]
    %v1112 = vld [vmem:[#allocation3 + $0x10] sm:$0xff]
    %v1113 = vld [vmem:[#allocation3 + $0x18] sm:$0xff]
    %v1114 = vld [vmem:[#allocation3 + $0x20] sm:$0xff]
    %v1115 = vld [vmem:[#allocation3 + $0x28] sm:$0xff]
    %v1116 = vld [vmem:[%s6] sm:$0x1]
    %v1118 = vlaneseq
    %v1119 = vshrl.u32 %v1118, 7
    %v1120 = vsub.s32 0, %v1119
    %v1121 = vrot.slane %v1116, %v1120
    %v1123 = vadd.f32 %v1110, %v1121
    %v1124 = vadd.f32 %v1111, %v1121
    %v1125 = vadd.f32 %v1112, %v1121
    %v1126 = vadd.f32 %v1113, %v1121
    %v1127 = vadd.f32 %v1114, %v1121
    %v1128 = vadd.f32 %v1115, %v1121
    %v1129 = vld [vmem:[%s0] sm:$0xf]
    %v1130 = vld [vmem:[%s0 + $0x4] sm:$0xf]
    %v1131 = vld [vmem:[%s0 + $0x8] sm:$0xf]
    %v1132 = vld [vmem:[%s0 + $0xc] sm:$0xf]
    %v1133 = vld [vmem:[%s0 + $0x10] sm:$0xf]
    %v1134 = vld [vmem:[%s0 + $0x14] sm:$0xf]
    %v1135 = vunpack.c.l.bf16 %v1129
    %v1136 = vunpack.c.l.bf16 %v1130
    %v1137 = vunpack.c.l.bf16 %v1131
    %v1138 = vunpack.c.l.bf16 %v1132
    %v1139 = vunpack.c.l.bf16 %v1133
    %v1140 = vunpack.c.l.bf16 %v1134
    %v1141 = vadd.f32 %v1123, %v1135
    %v1142 = vadd.f32 %v1124, %v1136
    %v1143 = vadd.f32 %v1125, %v1137
    %v1144 = vadd.f32 %v1126, %v1138
    %v1145 = vadd.f32 %v1127, %v1139
    %v1146 = vadd.f32 %v1128, %v1140
    %v1147 = vpack.c.bf16 %v1142, %v1141
    %v1148 = vpack.c.bf16 %v1144, %v1143
    %v1149 = vpack.c.bf16 %v1146, %v1145
    %v1153 = vunpack.c.l.b16 %v1147
    %v1154 = vunpack.c.h.b16 %v1147
    %v1155 = vunpack.c.l.b16 %v1148
    %v1156 = vunpack.c.h.b16 %v1148
    %v1157 = vunpack.c.l.b16 %v1149
    %v1158 = vunpack.c.h.b16 %v1149
    %v1159 = vpack.c.b16 %v1153, %v1153
    %v1160 = vpack.c.b16 %v1154, %v1154
    %v1161 = vpack.c.b16 %v1155, %v1155
    %v1162 = vpack.c.b16 %v1156, %v1156
    %v1163 = vpack.c.b16 %v1157, %v1157
    %v1164 = vpack.c.b16 %v1158, %v1158
    %1171 = vst [vmem:[%s7] sm:$0xf] %v1159
    %1172 = vst [vmem:[%s7 + $0x4] sm:$0xf] %v1160
    %1173 = vst [vmem:[%s7 + $0x8] sm:$0xf] %v1161
    %1174 = vst [vmem:[%s7 + $0xc] sm:$0xf] %v1162
    %1175 = vst [vmem:[%s7 + $0x10] sm:$0xf] %v1163
    %1176 = vst [vmem:[%s7 + $0x14] sm:$0xf] %v1164
  $region37: #{vit_forward.11} parent=0 // pred_fallthru
    _
  // Predicated region
  $region38: #{vit_forward.11} parent=0 // pred_check
    _
  $region39: #{vit_forward.11} parent=0 // pred_check_branch
    %1178 = sbr.rel (0) target = $region41
  $region40: #{vit_forward.11} parent=0 // pred_region
    _
  $region41: #{vit_forward.11} parent=0 // pred_fallthru
    _
  // Predicated region
  $region42: #{vit_forward.11} parent=0 // pred_check
    _
  $region43: #{vit_forward.11} parent=0 // pred_check_branch
    %1180 = sbr.rel (0) target = $region45
  $region44: #{vit_forward.11} parent=0 // pred_region
    _
  $region45: #{vit_forward.11} parent=0 // pred_fallthru
    _

// kernel: vit_forward.15
$region0: #{vit_forward.15}
  #allocation0 [shape = 'u32[]', space=smem, size = 0x4, offset = 0x4, fixed_abs, tag = 'smem constant byte address 0x4 - core index']
  #allocation1 [shape = 'u32[144,128]{1,0:T(1,128)}', space=vmem, size = 0x12000, scoped, tag = 'internal scratch']
  #allocation2 [shape = 'bf16[2,128]{1,0:T(2,128)(2,1)}', space=vmem, size = 0x200, scoped, tag = 'scratch operand']
  %s0 = inlined_call_operand.vmem [shape: bf16[2,128], index: 0, kind: input, shape index: {}]
  %s1 = inlined_call_operand.vmem [shape: f32[1,128], index: 1, kind: input, shape index: {}]
  %s2 = inlined_call_operand.vmem [shape: f32[1,128], index: 2, kind: input, shape index: {}]
  %s3 = inlined_call_operand.vmem [shape: bf16[128,128], index: 3, kind: input, shape index: {}]
  %s4 = inlined_call_operand.vmem [shape: f32[1,128], index: 4, kind: input, shape index: {}]
  %s5 = inlined_call_operand.hbm [shape: f32[2,128], index: 5, kind: output, shape index: {}]
  %s6 = sld [smem:[#allocation0]]
  $region34: #{vit_forward.15} parent=0
    _
  %s8 = ssub.s32 1, %s6
  %s9 = scalar_select 0, %s8, %s6
  $region1: #{vit_forward.15} parent=0
    #allocation3 [shape = 'u8[1024]{0}', space=vmem, size = 0x400, scoped, tag = 'output window, operand 0, single buffered']
    #allocation4 [shape = 's32[1]{0}', space=sflag, size = 0x4, scoped, tag = 'scoped memory for vit_forward.15']
    %10 = vsyncpa [#allocation4], 0
    // Predicated region
    $region2: #{vit_forward.15} parent=1 // pred_check
      _
    $region3: #{vit_forward.15} parent=1 // pred_check_branch
      %12 = sbr.rel (0) target = $region5
    $region4: #{vit_forward.15} parent=1 // pred_region
      _
    $region5: #{vit_forward.15} parent=1 // pred_fallthru
      _
    // Predicated region
    $region6: #{vit_forward.15} parent=1 // pred_check
      _
    $region7: #{vit_forward.15} parent=1 // pred_check_branch
      %14 = sbr.rel (0) target = $region9
    $region8: #{vit_forward.15} parent=1 // pred_region
      _
    $region9: #{vit_forward.15} parent=1 // pred_fallthru
      _
    // Predicated region
    $region10: #{vit_forward.15} parent=1 // pred_check
      _
    $region11: #{vit_forward.15} parent=1 // pred_check_branch
      %16 = sbr.rel (0) target = $region13
    $region12: #{vit_forward.15} parent=1 // pred_region
      _
    $region13: #{vit_forward.15} parent=1 // pred_fallthru
      _
    // Predicated region
    $region14: #{vit_forward.15} parent=1 // pred_check
      _
    $region15: #{vit_forward.15} parent=1 // pred_check_branch
      %18 = sbr.rel (0) target = $region17
    $region16: #{vit_forward.15} parent=1 // pred_region
      _
    $region17: #{vit_forward.15} parent=1 // pred_fallthru
      _
    // Predicated region
    $region18: #{vit_forward.15} parent=1 // pred_check
      _
    $region19: #{vit_forward.15} parent=1 // pred_check_branch
      %20 = sbr.rel (0) target = $region21
    $region20: #{vit_forward.15} parent=1 // pred_region
      _
    $region21: #{vit_forward.15} parent=1 // pred_fallthru
      _
    %p22 = scmp.eq.s32.totalorder 0, 0
    // Predicated region
    $region22: #{vit_forward.15} parent=1 // pred_check
      %p23 = pneg %p22
    $region23: #{vit_forward.15} parent=1 // pred_check_branch
      %25 = sbr.rel (%p23) target = $region25
    $region24: #{vit_forward.15} parent=1 // pred_region
      %v26 = vld [vmem:[%s0] sm:$0x1]
      %v27 = vunpack.c.l.bf16 %v26
      %vm28 = vcmask 1041408
      %v29 = vsel %vm28, %v27, 0.0
      %30 = vadd.xlane.f32.xlu0 %v29
      %v31 = vpop.xlane.xlu0 %30
      %v32 = vrcp.pop 128.0
      %v33 = vmul.f32 %v31, %v32
      %v34 = vsub.f32 %v27, %v33
      %v35 = vmul.f32 %v34, %v34
      %v36 = vsel %vm28, %v35, 0.0
      %37 = vadd.xlane.f32.xlu0 %v36
      %v38 = vpop.xlane.xlu0 %37
      %v39 = vmul.f32 %v38, %v32
      %v40 = vadd.f32 %v39, 1e-06
      %v41 = vrsqrt.pop %v40
      %v42 = vmul.f32 %v34, %v41
      %v43 = vld [vmem:[%s1] sm:$0x1]
      %v45 = vlaneseq
      %v46 = vshrl.u32 %v45, 7
      %v47 = vsub.s32 0, %v46
      %v48 = vrot.slane %v43, %v47
      %v50 = vmul.f32 %v42, %v48
      %v51 = vld [vmem:[%s2] sm:$0x1]
      %v53 = vlaneseq
      %v54 = vshrl.u32 %v53, 7
      %v55 = vsub.s32 0, %v54
      %v56 = vrot.slane %v51, %v55
      %v58 = vadd.f32 %v50, %v56
      %v59 = vpack.c.bf16 %v58, %v58
      %60 = vst [vmem:[#allocation2] sm:$0x1] %v59
    $region25: #{vit_forward.15} parent=1 // pred_fallthru
      _
    %v61 = vld [vmem:[#allocation2] sm:$0x1]
    %v62 = vld [vmem:[%s3] sm:$0xf]
    %v63 = vld [vmem:[%s3 + $0x4] sm:$0xf]
    %v64 = vld [vmem:[%s3 + $0x8] sm:$0xf]
    %v65 = vld [vmem:[%s3 + $0xc] sm:$0xf]
    %v66 = vld [vmem:[%s3 + $0x10] sm:$0xf]
    %v67 = vld [vmem:[%s3 + $0x14] sm:$0xf]
    %v68 = vld [vmem:[%s3 + $0x18] sm:$0xf]
    %v69 = vld [vmem:[%s3 + $0x1c] sm:$0xf]
    %v70 = vld [vmem:[%s3 + $0x20] sm:$0xf]
    %v71 = vld [vmem:[%s3 + $0x24] sm:$0xf]
    %v72 = vld [vmem:[%s3 + $0x28] sm:$0xf]
    %v73 = vld [vmem:[%s3 + $0x2c] sm:$0xf]
    %v74 = vld [vmem:[%s3 + $0x30] sm:$0xf]
    %v75 = vld [vmem:[%s3 + $0x34] sm:$0xf]
    %v76 = vld [vmem:[%s3 + $0x38] sm:$0xf]
    %v77 = vld [vmem:[%s3 + $0x3c] sm:$0xf]
    %v78 = vld [vmem:[%s4] sm:$0x1]
    %v80 = vlaneseq
    %v81 = vshrl.u32 %v80, 7
    %v82 = vsub.s32 0, %v81
    %v83 = vrot.slane %v78, %v82
    %v101 = vunpack.c.l.b16 %v62
    %v102 = vunpack.c.l.b16 %v63
    %v103 = vunpack.c.l.b16 %v64
    %v104 = vunpack.c.l.b16 %v65
    %v105 = vunpack.c.l.b16 %v66
    %v106 = vunpack.c.l.b16 %v67
    %v107 = vunpack.c.l.b16 %v68
    %v108 = vunpack.c.l.b16 %v69
    %v109 = vunpack.c.l.b16 %v70
    %v110 = vunpack.c.l.b16 %v71
    %v111 = vunpack.c.l.b16 %v72
    %v112 = vunpack.c.l.b16 %v73
    %v113 = vunpack.c.l.b16 %v74
    %v114 = vunpack.c.l.b16 %v75
    %v115 = vunpack.c.l.b16 %v76
    %v116 = vunpack.c.l.b16 %v77
    %v117 = vpack.c.b16 %v102, %v101
    %v118 = vpack.c.b16 %v104, %v103
    %v119 = vpack.c.b16 %v106, %v105
    %v120 = vpack.c.b16 %v108, %v107
    %v121 = vpack.c.b16 %v110, %v109
    %v122 = vpack.c.b16 %v112, %v111
    %v123 = vpack.c.b16 %v114, %v113
    %v124 = vpack.c.b16 %v116, %v115
    %133 = vmatprep.subr.bf16.mxu0 0
    %134 = vmatpush1.bf16.msra.mxu0 %v117
    %135 = vmatprep.subr.bf16.mxu0 0
    %136 = vmatpush1.bf16.msra.mxu0 %v118
    %137 = vmatprep.subr.bf16.mxu0 0
    %138 = vmatpush1.bf16.msra.mxu0 %v119
    %139 = vmatprep.subr.bf16.mxu0 0
    %140 = vmatpush1.bf16.msra.mxu0 %v120
    %141 = vmatprep.subr.bf16.mxu0 0
    %142 = vmatpush1.bf16.msra.mxu0 %v121
    %143 = vmatprep.subr.bf16.mxu0 0
    %144 = vmatpush1.bf16.msra.mxu0 %v122
    %145 = vmatprep.subr.bf16.mxu0 0
    %146 = vmatpush1.bf16.msra.mxu0 %v123
    %147 = vmatprep.subr.bf16.mxu0 0
    %148 = vmatpush1.bf16.msra.mxu0 %v124
    %149 = vmatprep.subr.bf16.mxu0 0
    %150 = vmatpush1.bf16.msra.mxu0 0
    %151 = vmatprep.subr.bf16.mxu0 0
    %152 = vmatpush1.bf16.msra.mxu0 0
    %153 = vmatprep.subr.bf16.mxu0 0
    %154 = vmatpush1.bf16.msra.mxu0 0
    %155 = vmatprep.subr.bf16.mxu0 0
    %156 = vmatpush1.bf16.msra.mxu0 0
    %157 = vmatprep.subr.bf16.mxu0 0
    %158 = vmatpush1.bf16.msra.mxu0 0
    %159 = vmatprep.subr.bf16.mxu0 0
    %160 = vmatpush1.bf16.msra.mxu0 0
    %161 = vmatprep.subr.bf16.mxu0 0
    %162 = vmatpush1.bf16.msra.mxu0 0
    %163 = vmatprep.subr.bf16.mxu0 0
    %164 = vmatpush1.bf16.msra.mxu0 0
    %165 = vmatprep.mubr.bf16.mxu0 0
    %166 = vmatmul.mubr.bf16.gmra.mrb[0].mxu0 %v61
    %v167 = vpop.f32.mrb[0].mxu0
    %v168 = vadd.f32 %v83, %v167
    %v169 = vpop.f32.mrb[0].mxu0
    %v170 = vpop.f32.mrb[0].mxu0
    %v171 = vpop.f32.mrb[0].mxu0
    %172 = vdwg.mxu0
    %173 = vst [vmem:[#allocation3] sm:$0x3] %v168
    // Predicated region
    $region26: #{vit_forward.15} parent=1 // pred_check
      _
    $region27: #{vit_forward.15} parent=1 // pred_check_branch
      %175 = sbr.rel (0) target = $region29
    $region28: #{vit_forward.15} parent=1 // pred_region
      %s177 = ssub.s32 32, 32
      %178 = vsyncadd [#allocation4], %s177
      %s180 = sshll.u32 [#allocation3], 4
      %s181 = int_to_ptr.vmem [resolvable:$true] %s180
      %183 = dma.vmem_to_hbm [thread:$0]  %s181, 32, %s5, [#allocation4]
    $region29: #{vit_forward.15} parent=1 // pred_fallthru
      _
    // Predicated region
    $region30: #{vit_forward.15} parent=1 // pred_check
      _
    $region31: #{vit_forward.15} parent=1 // pred_check_branch
      %185 = sbr.rel (0) target = $region33
    $region32: #{vit_forward.15} parent=1 // pred_region
      %186 = dma.done [#allocation4], 32
    $region33: #{vit_forward.15} parent=1 // pred_fallthru
      _
    %187 = vsyncpa [#allocation4], 1

</llo_original>
